<compile_context>
chip_gen: v7x
topology: tpu7x:2x2x1
jax: 0.10.0
libtpu: 0.0.40
codegen_flags: <defaults>
</compile_context>

<pallas_src>
import functools

import jax
import jax.numpy as jnp
from jax import lax
from jax.experimental import pallas as pl
from jax.experimental.pallas import tpu as pltpu


# -----------------------------------------------------------------------------
# Fully fused kernel: Conv3d projections (im2col'd) + physics attention + to_out
# -----------------------------------------------------------------------------
def _fused_kernel(cols_ref, wproj_ref, bproj_ref, ws_ref, bs_ref,
                  wq_ref, wk_ref, wv_ref, wo_ref, bo_ref,
                  o_ref, proj_scr, *, heads, dim_head, scale):
    f32 = jnp.float32
    nt = (((1,), (1,)), ((), ()))          # contract last dims: A @ B^T
    C = dim_head
    inner = heads * C
    N = cols_ref.shape[1]
    out_dim = o_ref.shape[1]

    # --- fused Conv3d projections: one (N, K) @ (K, 2*inner) MXU matmul ------
    cm = cols_ref[0]                                             # (N, K) bf16
    proj = jnp.dot(cm, wproj_ref[...], preferred_element_type=f32)
    proj_scr[...] = (proj + bproj_ref[...]).astype(proj_scr.dtype)  # (N, 2*inner)

    acc = jnp.zeros((out_dim, N), f32)

    for h in range(heads):                  # all heads unrolled per grid step
        c0 = h * C
        fm = proj_scr[:, c0:c0 + C]                      # (N, C) in_project_fx
        xm = proj_scr[:, inner + c0:inner + c0 + C]      # (N, C) in_project_x

        # Slice logits, transposed (G, N): lane-dense softmax over the G axis.
        # clamp(temperature) is pre-folded into ws/bs in the wrapper.
        logits = lax.dot_general(ws_ref[h], xm, nt,
                                 preferred_element_type=f32)          # (G, N)
        logits = logits + bs_ref[h]                                   # + (G, 1)

        m = jnp.max(logits, axis=0, keepdims=True)                    # (1, N)
        e = jnp.exp(logits - m)                                       # (G, N)
        s = jnp.sum(e, axis=0, keepdims=True)                         # (1, N)
        swT = e * pl.reciprocal(s, approx=True)                       # (G, N)

        # Slice tokens: st[g, c] = sum_n swT[g, n] * fm[n, c], then normalized.
        st = jnp.dot(swT.astype(jnp.bfloat16), fm,
                     preferred_element_type=f32)                      # (G, C)
        snorm = jnp.sum(swT, axis=1, keepdims=True)                   # (G, 1)
        st = st * pl.reciprocal(snorm + 1e-5, approx=True)

        # Slice-level attention (tiny G x G problem, kept in f32).
        q = jnp.dot(st, wq_ref[...], preferred_element_type=f32)      # (G, C)
        k = jnp.dot(st, wk_ref[...], preferred_element_type=f32)
        v = jnp.dot(st, wv_ref[...], preferred_element_type=f32)
        dots = lax.dot_general(q, k, nt, preferred_element_type=f32) * scale
        dm = jnp.max(dots, axis=-1, keepdims=True)
        de = jnp.exp(dots - dm)
        attn = de * pl.reciprocal(jnp.sum(de, axis=-1, keepdims=True),
                                  approx=True)                        # (G, G)
        ost = jnp.dot(attn, v, preferred_element_type=f32)            # (G, C)

        # Fused to_out for this head: (out_dim, G) @ (G, N), accumulated.
        row = lax.dot_general(wo_ref[h], ost, nt,
                              preferred_element_type=f32)             # (out_dim, G)
        acc = acc + jnp.dot(row, swT, preferred_element_type=f32)     # (out_dim, N)

    o_ref[0] = acc + bo_ref[...]


def physics_attention_fused(cols, w_proj, b_proj, ws_t, bs_t, wqT, wkT, wvT,
                            wo_h, b_out, *, heads, dim_head, slice_num, scale):
    B, N, K = cols.shape
    inner = heads * dim_head
    two_inner = 2 * inner
    assert w_proj.shape == (K, two_inner)
    out_dim = wo_h.shape[1]
    G, C = slice_num, dim_head

    kern = functools.partial(_fused_kernel, heads=heads, dim_head=dim_head,
                             scale=scale)

    flops = B * (2 * N * K * two_inner
                 + heads * (4 * G * C * N + 6 * G * C * C + 4 * G * G * C
                            + 2 * out_dim * G * (C + N)))
    bytes_accessed = (B * (N * K * 2 + out_dim * N * 4)
                      + K * two_inner * 2 + two_inner * 4
                      + 4 * (heads * G * (C + 1) + 3 * C * C
                             + heads * out_dim * C + out_dim))

    return pl.pallas_call(
        kern,
        out_shape=jax.ShapeDtypeStruct((B, out_dim, N), jnp.float32),
        grid=(B,),
        in_specs=[
            pl.BlockSpec((1, N, K), lambda b: (b, 0, 0)),          # im2col patches
            pl.BlockSpec((K, two_inner), lambda b: (0, 0)),        # fused conv W
            pl.BlockSpec((1, two_inner), lambda b: (0, 0)),        # fused conv b
            pl.BlockSpec((heads, G, C), lambda b: (0, 0, 0)),      # slice W / temp
            pl.BlockSpec((heads, G, 1), lambda b: (0, 0, 0)),      # slice b / temp
            pl.BlockSpec((C, C), lambda b: (0, 0)),                # Wq^T
            pl.BlockSpec((C, C), lambda b: (0, 0)),                # Wk^T
            pl.BlockSpec((C, C), lambda b: (0, 0)),                # Wv^T
            pl.BlockSpec((heads, out_dim, C), lambda b: (0, 0, 0)),  # to_out W
            pl.BlockSpec((out_dim, 1), lambda b: (0, 0)),          # to_out b
        ],
        out_specs=pl.BlockSpec((1, out_dim, N), lambda b: (b, 0, 0)),
        scratch_shapes=[pltpu.VMEM((N, two_inner), jnp.bfloat16)],
        compiler_params=pltpu.CompilerParams(
            dimension_semantics=("parallel",)),
        cost_estimate=pl.CostEstimate(
            flops=int(flops),
            transcendentals=int(B * heads * G * (N + G)),
            bytes_accessed=int(bytes_accessed)),
    )(cols, w_proj, b_proj, ws_t, bs_t, wqT, wkT, wvT, wo_h, b_out)


# -----------------------------------------------------------------------------
# Glue: channel stacking, im2col for Conv3d, full forward
# -----------------------------------------------------------------------------
def _im2col3d(x, k=3):
    """x: (B, Cin, T, H, W) -> (B, T*H*W, Cin*k^3); patch order (c, kt, kh, kw)
    matches PyTorch Conv3d weight.reshape(out, -1)."""
    # TODO(synk): at production resolutions fold the 27 taps into the Pallas
    # kernel (shifted pl.ds reads) instead of materializing the im2col in HBM.
    B, Cin, T, H, W = x.shape
    p = k // 2
    xp = jnp.pad(x, ((0, 0), (0, 0), (p, p), (p, p), (p, p)))
    cols = []
    for kt in range(k):
        for kh in range(k):
            for kw in range(k):
                cols.append(xp[:, :, kt:kt + T, kh:kh + H, kw:kw + W])
    cols = jnp.stack(cols, axis=2)              # (B, Cin, k^3, T, H, W)
    cols = cols.transpose(0, 3, 4, 5, 1, 2)     # (B, T, H, W, Cin, k^3)
    return cols.reshape(B, T * H * W, Cin * k * k * k)


def physics_attention_forward(x, params, *, heads, dim_head, slice_num,
                              time_window=5):
    """dataset_name == 'temp_input_dataset' path of the PyTorch module."""
    B, _, Hs, Ws = x.shape
    tw = time_window

    temp_c = x[:, :tw]
    u = x[:, tw:2 * tw]
    v = x[:, 3 * tw:4 * tw]
    hh = jnp.broadcast_to(x[:, -2][:, None], (B, tw, Hs, Ws))
    ww = jnp.broadcast_to(x[:, -1][:, None], (B, tw, Hs, Ws))
    u_future = x[:, 2 * tw:3 * tw]
    v_future = x[:, 4 * tw:5 * tw]
    xs = jnp.stack([temp_c, u, v, hh, ww, u_future, v_future], axis=1)  # (B,7,T,Hs,Ws)

    T = tw
    C = dim_head
    inner = heads * dim_head

    # Shared im2col feeds both Conv3d projections inside the Pallas kernel.
    cols = _im2col3d(xs.astype(jnp.bfloat16))                      # (B, N, K)
    K = cols.shape[-1]
    w_proj = jnp.concatenate(
        [params['w_fx'].reshape(inner, K), params['w_x'].reshape(inner, K)],
        axis=0).T.astype(jnp.bfloat16)                             # (K, 2*inner)
    b_proj = jnp.concatenate([params['b_fx'], params['b_x']]
                             ).reshape(1, 2 * inner).astype(jnp.float32)

    # Fold clamp(temperature) into the slice projection (per head).
    inv_t = 1.0 / jnp.clip(params['temperature'].reshape(heads), 0.1, 5.0)
    ws_t = (params['w_slice'][None] * inv_t[:, None, None]).astype(jnp.bfloat16)
    bs_t = (params['b_slice'][None, :, None] * inv_t[:, None, None]).astype(jnp.float32)
    out_dim = params['w_out'].shape[0]
    wo_h = params['w_out'].reshape(out_dim, heads, C).transpose(1, 0, 2)  # (H,out_dim,C)
    b_out = params['b_out'].reshape(out_dim, 1).astype(jnp.float32)

    out = physics_attention_fused(
        cols, w_proj, b_proj, ws_t, bs_t,
        params['w_q'].T, params['w_k'].T, params['w_v'].T,
        wo_h, b_out,
        heads=heads, dim_head=dim_head, slice_num=slice_num,
        scale=dim_head ** -0.5)                                    # (B, out_dim, N)

    # rearrange 'b (h w t) d -> b d t h w': the reference module unpacks its
    # (t, h, w)-major token axis as (h, w, t); reproduced here verbatim.
    out = out.reshape(B, out_dim, Hs, Ws, T).transpose(0, 1, 4, 2, 3)
    out = jnp.squeeze(out, axis=1)   # temp_input_dataset: out_dim == 1
    return out


# -----------------------------------------------------------------------------
# Deterministic parameter init + driver
# -----------------------------------------------------------------------------
def init_params(key, *, heads, dim_head, slice_num, in_dim=7, out_dim=1,
                kernel=3):
    inner = heads * dim_head
    ks = jax.random.split(key, 10)
    fan_conv = in_dim * kernel ** 3
    return {
        'w_fx': jax.random.normal(ks[0], (inner, in_dim, kernel, kernel, kernel),
                                  jnp.float32) / jnp.sqrt(fan_conv),
        'b_fx': jax.random.normal(ks[1], (inner,), jnp.float32) * 0.01,
        'w_x': jax.random.normal(ks[2], (inner, in_dim, kernel, kernel, kernel),
                                 jnp.float32) / jnp.sqrt(fan_conv),
        'b_x': jax.random.normal(ks[3], (inner,), jnp.float32) * 0.01,
        # TODO(synk): PyTorch uses torch.nn.init.orthogonal_ here; deterministic
        # gaussian init is used instead for this synthetic kernel.
        'w_slice': jax.random.normal(ks[4], (slice_num, dim_head),
                                     jnp.float32) / jnp.sqrt(dim_head),
        'b_slice': jnp.zeros((slice_num,), jnp.float32),
        'w_q': jax.random.normal(ks[5], (dim_head, dim_head),
                                 jnp.float32) / jnp.sqrt(dim_head),
        'w_k': jax.random.normal(ks[6], (dim_head, dim_head),
                                 jnp.float32) / jnp.sqrt(dim_head),
        'w_v': jax.random.normal(ks[7], (dim_head, dim_head),
                                 jnp.float32) / jnp.sqrt(dim_head),
        'w_out': jax.random.normal(ks[8], (out_dim, inner),
                                   jnp.float32) / jnp.sqrt(inner),
        'b_out': jnp.zeros((out_dim,), jnp.float32),
        'temperature': jnp.ones((1, heads, 1, 1), jnp.float32) * 0.5,
    }


if __name__ == "__main__":
    heads = 2
    dim_head = 16
    slice_num = 8
    time_window = 5
    B, Hs, Ws = 2, 8, 8
    C_raw = 5 * time_window + 2   # 27 channels: 25 time-window fields + 2 grids

    key = jax.random.PRNGKey(0)
    kx, kp = jax.random.split(key)
    x = jax.random.normal(kx, (B, C_raw, Hs, Ws), jnp.float32)
    params = init_params(kp, heads=heads, dim_head=dim_head,
                         slice_num=slice_num)

    fwd = jax.jit(functools.partial(physics_attention_forward,
                                    heads=heads, dim_head=dim_head,
                                    slice_num=slice_num,
                                    time_window=time_window))
    out = fwd(x, params)
    jax.block_until_ready(out)
    assert out.shape == (B, time_window, Hs, Ws), out.shape
    assert bool(jnp.all(jnp.isfinite(out)))
    print("KERNEL_OK")
</pallas_src>

<mosaic_0001>
module attributes {stable_mosaic.version = 11 : i64} {
  func.func @_fused_kernel(%arg0: i32, %arg1: memref<1x320x189xbf16, #tpu.memory_space<vmem>>, %arg2: memref<189x64xbf16, #tpu.memory_space<vmem>>, %arg3: memref<1x64xf32, #tpu.memory_space<vmem>>, %arg4: memref<2x8x16xbf16, #tpu.memory_space<vmem>>, %arg5: memref<2x8x1xf32, #tpu.memory_space<vmem>>, %arg6: memref<16x16xf32, #tpu.memory_space<vmem>>, %arg7: memref<16x16xf32, #tpu.memory_space<vmem>>, %arg8: memref<16x16xf32, #tpu.memory_space<vmem>>, %arg9: memref<2x1x16xf32, #tpu.memory_space<vmem>>, %arg10: memref<1x1xf32, #tpu.memory_space<vmem>>, %arg11: memref<1x1x320xf32, #tpu.memory_space<vmem>>, %arg12: memref<320x64xbf16, #tpu.memory_space<vmem>>) attributes {dimension_semantics = [#tpu.dimension_semantics<parallel>], iteration_bounds = array<i64: 2>, scalar_prefetch = 0 : i64, scratch_operands = 1 : i64, tpu.core_type = #tpu.core_type<tc>, window_params = [{transform_indices = @transform_0, window_bounds = array<i64: 1, 320, 189>}, {pipeline_mode = #tpu.pipeline_mode<synchronous>, transform_indices = @transform_1, window_bounds = array<i64: 189, 64>}, {pipeline_mode = #tpu.pipeline_mode<synchronous>, transform_indices = @transform_2, window_bounds = array<i64: 1, 64>}, {pipeline_mode = #tpu.pipeline_mode<synchronous>, transform_indices = @transform_3, window_bounds = array<i64: 2, 8, 16>}, {pipeline_mode = #tpu.pipeline_mode<synchronous>, transform_indices = @transform_4, window_bounds = array<i64: 2, 8, 1>}, {pipeline_mode = #tpu.pipeline_mode<synchronous>, transform_indices = @transform_5, window_bounds = array<i64: 16, 16>}, {pipeline_mode = #tpu.pipeline_mode<synchronous>, transform_indices = @transform_6, window_bounds = array<i64: 16, 16>}, {pipeline_mode = #tpu.pipeline_mode<synchronous>, transform_indices = @transform_7, window_bounds = array<i64: 16, 16>}, {pipeline_mode = #tpu.pipeline_mode<synchronous>, transform_indices = @transform_8, window_bounds = array<i64: 2, 1, 16>}, {pipeline_mode = #tpu.pipeline_mode<synchronous>, transform_indices = @transform_9, window_bounds = array<i64: 1, 1>}, {transform_indices = @transform_10, window_bounds = array<i64: 1, 1, 320>}]} {
    %c0 = arith.constant 0 : index
    %c0_0 = arith.constant 0 : index
    %c0_1 = arith.constant 0 : index
    %0 = vector.load %arg1[%c0, %c0_0, %c0_1] : memref<1x320x189xbf16, #tpu.memory_space<vmem>>, vector<1x320x189xbf16>
    %1 = vector.shape_cast %0 : vector<1x320x189xbf16> to vector<320x189xbf16>
    %c0_2 = arith.constant 0 : index
    %c0_3 = arith.constant 0 : index
    %2 = vector.load %arg2[%c0_2, %c0_3] : memref<189x64xbf16, #tpu.memory_space<vmem>>, vector<189x64xbf16>
    %cst = arith.constant dense<0.000000e+00> : vector<320x64xf32>
    %3 = tpu.matmul %1, %2, %cst {dimension_numbers = #tpu.dot_dimension_numbers<[1], [0], [0], [1], [0, 0, 1, 1], [], []>} : vector<320x189xbf16>, vector<189x64xbf16>, vector<320x64xf32> -> vector<320x64xf32>
    %c0_4 = arith.constant 0 : index
    %c0_5 = arith.constant 0 : index
    %4 = vector.load %arg3[%c0_4, %c0_5] : memref<1x64xf32, #tpu.memory_space<vmem>>, vector<1x64xf32>
    %5 = vector.broadcast %4 : vector<1x64xf32> to vector<320x64xf32>
    %6 = arith.addf %3, %5 : vector<320x64xf32>
    %7 = arith.truncf %6 : vector<320x64xf32> to vector<320x64xbf16>
    %c0_6 = arith.constant 0 : index
    %c0_7 = arith.constant 0 : index
    %8 = vector.load %arg12[%c0_6, %c0_7] : memref<320x64xbf16, #tpu.memory_space<vmem>>, vector<320x64xbf16>
    tpu.vector_store %arg12[%c0_6, %c0_7], %7 {strides = array<i32>} : memref<320x64xbf16, #tpu.memory_space<vmem>>, vector<320x64xbf16>,
    %cst_8 = arith.constant 0.000000e+00 : f32
    %9 = vector.broadcast %cst_8 : f32 to vector<1x320xf32>
    %c0_9 = arith.constant 0 : index
    %c0_10 = arith.constant 0 : index
    %10 = vector.load %arg12[%c0_9, %c0_10] : memref<320x64xbf16, #tpu.memory_space<vmem>>, vector<320x16xbf16>
    %c0_11 = arith.constant 0 : index
    %c32 = arith.constant 32 : index
    %11 = vector.load %arg12[%c0_11, %c32] : memref<320x64xbf16, #tpu.memory_space<vmem>>, vector<320x16xbf16>
    %c0_12 = arith.constant 0 : index
    %c0_13 = arith.constant 0 : index
    %c0_14 = arith.constant 0 : index
    %12 = vector.load %arg4[%c0_12, %c0_13, %c0_14] : memref<2x8x16xbf16, #tpu.memory_space<vmem>>, vector<1x8x16xbf16>
    %13 = vector.shape_cast %12 : vector<1x8x16xbf16> to vector<8x16xbf16>
    %cst_15 = arith.constant dense<0.000000e+00> : vector<8x320xf32>
    %14 = tpu.matmul %13, %11, %cst_15 {dimension_numbers = #tpu.dot_dimension_numbers<[1], [1], [0], [0], [0, 0, 1, 0], [], []>} : vector<8x16xbf16>, vector<320x16xbf16>, vector<8x320xf32> -> vector<8x320xf32>
    %c0_16 = arith.constant 0 : index
    %c0_17 = arith.constant 0 : index
    %c0_18 = arith.constant 0 : index
    %15 = vector.load %arg5[%c0_16, %c0_17, %c0_18] : memref<2x8x1xf32, #tpu.memory_space<vmem>>, vector<1x8x1xf32>
    %16 = vector.shape_cast %15 : vector<1x8x1xf32> to vector<8x1xf32>
    %17 = vector.broadcast %16 : vector<8x1xf32> to vector<8x320xf32>
    %18 = arith.addf %14, %17 : vector<8x320xf32>
    %cst_19 = arith.constant dense<0xFF800000> : vector<320xf32>
    %19 = vector.multi_reduction <maximumf>, %18, %cst_19 [0] : vector<8x320xf32> to vector<320xf32>
    %20 = vector.shape_cast %19 : vector<320xf32> to vector<1x320xf32>
    %21 = vector.broadcast %20 : vector<1x320xf32> to vector<8x320xf32>
    %22 = arith.subf %18, %21 : vector<8x320xf32>
    %23 = math.exp %22 : vector<8x320xf32>
    %cst_20 = arith.constant dense<0.000000e+00> : vector<320xf32>
    %24 = vector.multi_reduction <add>, %23, %cst_20 [0] : vector<8x320xf32> to vector<320xf32>
    %25 = vector.shape_cast %24 : vector<320xf32> to vector<1x320xf32>
    %26 = tpu.reciprocal %25 {approx = true} : vector<1x320xf32> -> vector<1x320xf32>
    %27 = vector.broadcast %26 : vector<1x320xf32> to vector<8x320xf32>
    %28 = arith.mulf %23, %27 : vector<8x320xf32>
    %29 = arith.truncf %28 : vector<8x320xf32> to vector<8x320xbf16>
    %cst_21 = arith.constant dense<0.000000e+00> : vector<8x16xf32>
    %30 = tpu.matmul %29, %10, %cst_21 {dimension_numbers = #tpu.dot_dimension_numbers<[1], [0], [0], [1], [0, 0, 1, 1], [], []>} : vector<8x320xbf16>, vector<320x16xbf16>, vector<8x16xf32> -> vector<8x16xf32>
    %cst_22 = arith.constant dense<0.000000e+00> : vector<8xf32>
    %31 = vector.multi_reduction <add>, %28, %cst_22 [1] : vector<8x320xf32> to vector<8xf32>
    %32 = vector.shape_cast %31 : vector<8xf32> to vector<8x1xf32>
    %cst_23 = arith.constant 9.99999974E-6 : f32
    %33 = vector.broadcast %cst_23 : f32 to vector<8x1xf32>
    %34 = arith.addf %32, %33 : vector<8x1xf32>
    %35 = tpu.reciprocal %34 {approx = true} : vector<8x1xf32> -> vector<8x1xf32>
    %36 = vector.broadcast %35 : vector<8x1xf32> to vector<8x16xf32>
    %37 = arith.mulf %30, %36 : vector<8x16xf32>
    %c0_24 = arith.constant 0 : index
    %c0_25 = arith.constant 0 : index
    %38 = vector.load %arg6[%c0_24, %c0_25] : memref<16x16xf32, #tpu.memory_space<vmem>>, vector<16x16xf32>
    %cst_26 = arith.constant dense<0.000000e+00> : vector<8x16xf32>
    %39 = tpu.matmul %37, %38, %cst_26 {dimension_numbers = #tpu.dot_dimension_numbers<[1], [0], [0], [1], [0, 0, 1, 1], [], []>} : vector<8x16xf32>, vector<16x16xf32>, vector<8x16xf32> -> vector<8x16xf32>
    %c0_27 = arith.constant 0 : index
    %c0_28 = arith.constant 0 : index
    %40 = vector.load %arg7[%c0_27, %c0_28] : memref<16x16xf32, #tpu.memory_space<vmem>>, vector<16x16xf32>
    %cst_29 = arith.constant dense<0.000000e+00> : vector<8x16xf32>
    %41 = tpu.matmul %37, %40, %cst_29 {dimension_numbers = #tpu.dot_dimension_numbers<[1], [0], [0], [1], [0, 0, 1, 1], [], []>} : vector<8x16xf32>, vector<16x16xf32>, vector<8x16xf32> -> vector<8x16xf32>
    %c0_30 = arith.constant 0 : index
    %c0_31 = arith.constant 0 : index
    %42 = vector.load %arg8[%c0_30, %c0_31] : memref<16x16xf32, #tpu.memory_space<vmem>>, vector<16x16xf32>
    %cst_32 = arith.constant dense<0.000000e+00> : vector<8x16xf32>
    %43 = tpu.matmul %37, %42, %cst_32 {dimension_numbers = #tpu.dot_dimension_numbers<[1], [0], [0], [1], [0, 0, 1, 1], [], []>} : vector<8x16xf32>, vector<16x16xf32>, vector<8x16xf32> -> vector<8x16xf32>
    %cst_33 = arith.constant dense<0.000000e+00> : vector<8x8xf32>
    %44 = tpu.matmul %39, %41, %cst_33 {dimension_numbers = #tpu.dot_dimension_numbers<[1], [1], [0], [0], [0, 0, 1, 0], [], []>} : vector<8x16xf32>, vector<8x16xf32>, vector<8x8xf32> -> vector<8x8xf32>
    %cst_34 = arith.constant 2.500000e-01 : f32
    %45 = vector.broadcast %cst_34 : f32 to vector<8x8xf32>
    %46 = arith.mulf %44, %45 : vector<8x8xf32>
    %cst_35 = arith.constant dense<0xFF800000> : vector<8xf32>
    %47 = vector.multi_reduction <maximumf>, %46, %cst_35 [1] : vector<8x8xf32> to vector<8xf32>
    %48 = vector.shape_cast %47 : vector<8xf32> to vector<8x1xf32>
    %49 = vector.broadcast %48 : vector<8x1xf32> to vector<8x8xf32>
    %50 = arith.subf %46, %49 : vector<8x8xf32>
    %51 = math.exp %50 : vector<8x8xf32>
    %cst_36 = arith.constant dense<0.000000e+00> : vector<8xf32>
    %52 = vector.multi_reduction <add>, %51, %cst_36 [1] : vector<8x8xf32> to vector<8xf32>
    %53 = vector.shape_cast %52 : vector<8xf32> to vector<8x1xf32>
    %54 = tpu.reciprocal %53 {approx = true} : vector<8x1xf32> -> vector<8x1xf32>
    %55 = vector.broadcast %54 : vector<8x1xf32> to vector<8x8xf32>
    %56 = arith.mulf %51, %55 : vector<8x8xf32>
    %cst_37 = arith.constant dense<0.000000e+00> : vector<8x16xf32>
    %57 = tpu.matmul %56, %43, %cst_37 {dimension_numbers = #tpu.dot_dimension_numbers<[1], [0], [0], [1], [0, 0, 1, 1], [], []>} : vector<8x8xf32>, vector<8x16xf32>, vector<8x16xf32> -> vector<8x16xf32>
    %c0_38 = arith.constant 0 : index
    %c0_39 = arith.constant 0 : index
    %c0_40 = arith.constant 0 : index
    %58 = vector.load %arg9[%c0_38, %c0_39, %c0_40] : memref<2x1x16xf32, #tpu.memory_space<vmem>>, vector<1x1x16xf32>
    %59 = vector.shape_cast %58 : vector<1x1x16xf32> to vector<1x16xf32>
    %cst_41 = arith.constant dense<0.000000e+00> : vector<1x8xf32>
    %60 = tpu.matmul %59, %57, %cst_41 {dimension_numbers = #tpu.dot_dimension_numbers<[1], [1], [0], [0], [0, 0, 1, 0], [], []>} : vector<1x16xf32>, vector<8x16xf32>, vector<1x8xf32> -> vector<1x8xf32>
    %cst_42 = arith.constant dense<0.000000e+00> : vector<1x320xf32>
    %61 = tpu.matmul %60, %28, %cst_42 {dimension_numbers = #tpu.dot_dimension_numbers<[1], [0], [0], [1], [0, 0, 1, 1], [], []>} : vector<1x8xf32>, vector<8x320xf32>, vector<1x320xf32> -> vector<1x320xf32>
    %62 = arith.addf %9, %61 : vector<1x320xf32>
    %c0_43 = arith.constant 0 : index
    %c16 = arith.constant 16 : index
    %63 = vector.load %arg12[%c0_43, %c16] : memref<320x64xbf16, #tpu.memory_space<vmem>>, vector<320x16xbf16>
    %c0_44 = arith.constant 0 : index
    %c48 = arith.constant 48 : index
    %64 = vector.load %arg12[%c0_44, %c48] : memref<320x64xbf16, #tpu.memory_space<vmem>>, vector<320x16xbf16>
    %c1 = arith.constant 1 : index
    %c0_45 = arith.constant 0 : index
    %c0_46 = arith.constant 0 : index
    %65 = vector.load %arg4[%c1, %c0_45, %c0_46] : memref<2x8x16xbf16, #tpu.memory_space<vmem>>, vector<1x8x16xbf16>
    %66 = vector.shape_cast %65 : vector<1x8x16xbf16> to vector<8x16xbf16>
    %cst_47 = arith.constant dense<0.000000e+00> : vector<8x320xf32>
    %67 = tpu.matmul %66, %64, %cst_47 {dimension_numbers = #tpu.dot_dimension_numbers<[1], [1], [0], [0], [0, 0, 1, 0], [], []>} : vector<8x16xbf16>, vector<320x16xbf16>, vector<8x320xf32> -> vector<8x320xf32>
    %c1_48 = arith.constant 1 : index
    %c0_49 = arith.constant 0 : index
    %c0_50 = arith.constant 0 : index
    %68 = vector.load %arg5[%c1_48, %c0_49, %c0_50] : memref<2x8x1xf32, #tpu.memory_space<vmem>>, vector<1x8x1xf32>
    %69 = vector.shape_cast %68 : vector<1x8x1xf32> to vector<8x1xf32>
    %70 = vector.broadcast %69 : vector<8x1xf32> to vector<8x320xf32>
    %71 = arith.addf %67, %70 : vector<8x320xf32>
    %cst_51 = arith.constant dense<0xFF800000> : vector<320xf32>
    %72 = vector.multi_reduction <maximumf>, %71, %cst_51 [0] : vector<8x320xf32> to vector<320xf32>
    %73 = vector.shape_cast %72 : vector<320xf32> to vector<1x320xf32>
    %74 = vector.broadcast %73 : vector<1x320xf32> to vector<8x320xf32>
    %75 = arith.subf %71, %74 : vector<8x320xf32>
    %76 = math.exp %75 : vector<8x320xf32>
    %cst_52 = arith.constant dense<0.000000e+00> : vector<320xf32>
    %77 = vector.multi_reduction <add>, %76, %cst_52 [0] : vector<8x320xf32> to vector<320xf32>
    %78 = vector.shape_cast %77 : vector<320xf32> to vector<1x320xf32>
    %79 = tpu.reciprocal %78 {approx = true} : vector<1x320xf32> -> vector<1x320xf32>
    %80 = vector.broadcast %79 : vector<1x320xf32> to vector<8x320xf32>
    %81 = arith.mulf %76, %80 : vector<8x320xf32>
    %82 = arith.truncf %81 : vector<8x320xf32> to vector<8x320xbf16>
    %cst_53 = arith.constant dense<0.000000e+00> : vector<8x16xf32>
    %83 = tpu.matmul %82, %63, %cst_53 {dimension_numbers = #tpu.dot_dimension_numbers<[1], [0], [0], [1], [0, 0, 1, 1], [], []>} : vector<8x320xbf16>, vector<320x16xbf16>, vector<8x16xf32> -> vector<8x16xf32>
    %cst_54 = arith.constant dense<0.000000e+00> : vector<8xf32>
    %84 = vector.multi_reduction <add>, %81, %cst_54 [1] : vector<8x320xf32> to vector<8xf32>
    %85 = vector.shape_cast %84 : vector<8xf32> to vector<8x1xf32>
    %cst_55 = arith.constant 9.99999974E-6 : f32
    %86 = vector.broadcast %cst_55 : f32 to vector<8x1xf32>
    %87 = arith.addf %85, %86 : vector<8x1xf32>
    %88 = tpu.reciprocal %87 {approx = true} : vector<8x1xf32> -> vector<8x1xf32>
    %89 = vector.broadcast %88 : vector<8x1xf32> to vector<8x16xf32>
    %90 = arith.mulf %83, %89 : vector<8x16xf32>
    %c0_56 = arith.constant 0 : index
    %c0_57 = arith.constant 0 : index
    %91 = vector.load %arg6[%c0_56, %c0_57] : memref<16x16xf32, #tpu.memory_space<vmem>>, vector<16x16xf32>
    %cst_58 = arith.constant dense<0.000000e+00> : vector<8x16xf32>
    %92 = tpu.matmul %90, %91, %cst_58 {dimension_numbers = #tpu.dot_dimension_numbers<[1], [0], [0], [1], [0, 0, 1, 1], [], []>} : vector<8x16xf32>, vector<16x16xf32>, vector<8x16xf32> -> vector<8x16xf32>
    %c0_59 = arith.constant 0 : index
    %c0_60 = arith.constant 0 : index
    %93 = vector.load %arg7[%c0_59, %c0_60] : memref<16x16xf32, #tpu.memory_space<vmem>>, vector<16x16xf32>
    %cst_61 = arith.constant dense<0.000000e+00> : vector<8x16xf32>
    %94 = tpu.matmul %90, %93, %cst_61 {dimension_numbers = #tpu.dot_dimension_numbers<[1], [0], [0], [1], [0, 0, 1, 1], [], []>} : vector<8x16xf32>, vector<16x16xf32>, vector<8x16xf32> -> vector<8x16xf32>
    %c0_62 = arith.constant 0 : index
    %c0_63 = arith.constant 0 : index
    %95 = vector.load %arg8[%c0_62, %c0_63] : memref<16x16xf32, #tpu.memory_space<vmem>>, vector<16x16xf32>
    %cst_64 = arith.constant dense<0.000000e+00> : vector<8x16xf32>
    %96 = tpu.matmul %90, %95, %cst_64 {dimension_numbers = #tpu.dot_dimension_numbers<[1], [0], [0], [1], [0, 0, 1, 1], [], []>} : vector<8x16xf32>, vector<16x16xf32>, vector<8x16xf32> -> vector<8x16xf32>
    %cst_65 = arith.constant dense<0.000000e+00> : vector<8x8xf32>
    %97 = tpu.matmul %92, %94, %cst_65 {dimension_numbers = #tpu.dot_dimension_numbers<[1], [1], [0], [0], [0, 0, 1, 0], [], []>} : vector<8x16xf32>, vector<8x16xf32>, vector<8x8xf32> -> vector<8x8xf32>
    %cst_66 = arith.constant 2.500000e-01 : f32
    %98 = vector.broadcast %cst_66 : f32 to vector<8x8xf32>
    %99 = arith.mulf %97, %98 : vector<8x8xf32>
    %cst_67 = arith.constant dense<0xFF800000> : vector<8xf32>
    %100 = vector.multi_reduction <maximumf>, %99, %cst_67 [1] : vector<8x8xf32> to vector<8xf32>
    %101 = vector.shape_cast %100 : vector<8xf32> to vector<8x1xf32>
    %102 = vector.broadcast %101 : vector<8x1xf32> to vector<8x8xf32>
    %103 = arith.subf %99, %102 : vector<8x8xf32>
    %104 = math.exp %103 : vector<8x8xf32>
    %cst_68 = arith.constant dense<0.000000e+00> : vector<8xf32>
    %105 = vector.multi_reduction <add>, %104, %cst_68 [1] : vector<8x8xf32> to vector<8xf32>
    %106 = vector.shape_cast %105 : vector<8xf32> to vector<8x1xf32>
    %107 = tpu.reciprocal %106 {approx = true} : vector<8x1xf32> -> vector<8x1xf32>
    %108 = vector.broadcast %107 : vector<8x1xf32> to vector<8x8xf32>
    %109 = arith.mulf %104, %108 : vector<8x8xf32>
    %cst_69 = arith.constant dense<0.000000e+00> : vector<8x16xf32>
    %110 = tpu.matmul %109, %96, %cst_69 {dimension_numbers = #tpu.dot_dimension_numbers<[1], [0], [0], [1], [0, 0, 1, 1], [], []>} : vector<8x8xf32>, vector<8x16xf32>, vector<8x16xf32> -> vector<8x16xf32>
    %c1_70 = arith.constant 1 : index
    %c0_71 = arith.constant 0 : index
    %c0_72 = arith.constant 0 : index
    %111 = vector.load %arg9[%c1_70, %c0_71, %c0_72] : memref<2x1x16xf32, #tpu.memory_space<vmem>>, vector<1x1x16xf32>
    %112 = vector.shape_cast %111 : vector<1x1x16xf32> to vector<1x16xf32>
    %cst_73 = arith.constant dense<0.000000e+00> : vector<1x8xf32>
    %113 = tpu.matmul %112, %110, %cst_73 {dimension_numbers = #tpu.dot_dimension_numbers<[1], [1], [0], [0], [0, 0, 1, 0], [], []>} : vector<1x16xf32>, vector<8x16xf32>, vector<1x8xf32> -> vector<1x8xf32>
    %cst_74 = arith.constant dense<0.000000e+00> : vector<1x320xf32>
    %114 = tpu.matmul %113, %81, %cst_74 {dimension_numbers = #tpu.dot_dimension_numbers<[1], [0], [0], [1], [0, 0, 1, 1], [], []>} : vector<1x8xf32>, vector<8x320xf32>, vector<1x320xf32> -> vector<1x320xf32>
    %115 = arith.addf %62, %114 : vector<1x320xf32>
    %c0_75 = arith.constant 0 : index
    %c0_76 = arith.constant 0 : index
    %116 = vector.load %arg10[%c0_75, %c0_76] : memref<1x1xf32, #tpu.memory_space<vmem>>, vector<1x1xf32>
    %117 = vector.broadcast %116 : vector<1x1xf32> to vector<1x320xf32>
    %118 = arith.addf %115, %117 : vector<1x320xf32>
    %c0_77 = arith.constant 0 : index
    %c0_78 = arith.constant 0 : index
    %c0_79 = arith.constant 0 : index
    %119 = vector.load %arg11[%c0_77, %c0_78, %c0_79] : memref<1x1x320xf32, #tpu.memory_space<vmem>>, vector<1x1x320xf32>
    %120 = vector.shape_cast %119 : vector<1x1x320xf32> to vector<1x320xf32>
    %121 = vector.shape_cast %118 : vector<1x320xf32> to vector<1x1x320xf32>
    tpu.vector_store %arg11[%c0_77, %c0_78, %c0_79], %121 {strides = array<i32>} : memref<1x1x320xf32, #tpu.memory_space<vmem>>, vector<1x1x320xf32>,
    return
  }
  func.func @transform_0(%arg0: i32) -> (i32, i32, i32) {
    %c0_i32 = arith.constant 0 : i32
    %c0_i32_0 = arith.constant 0 : i32
    %c0_i32_1 = arith.constant 0 : i32
    return %arg0, %c0_i32, %c0_i32_0 : i32, i32, i32
  }
  func.func @transform_1(%arg0: i32) -> (i32, i32) {
    %c0_i32 = arith.constant 0 : i32
    %c0_i32_0 = arith.constant 0 : i32
    %c0_i32_1 = arith.constant 0 : i32
    return %c0_i32, %c0_i32_0 : i32, i32
  }
  func.func @transform_2(%arg0: i32) -> (i32, i32) {
    %c0_i32 = arith.constant 0 : i32
    %c0_i32_0 = arith.constant 0 : i32
    %c0_i32_1 = arith.constant 0 : i32
    return %c0_i32, %c0_i32_0 : i32, i32
  }
  func.func @transform_3(%arg0: i32) -> (i32, i32, i32) {
    %c0_i32 = arith.constant 0 : i32
    %c0_i32_0 = arith.constant 0 : i32
    %c0_i32_1 = arith.constant 0 : i32
    %c0_i32_2 = arith.constant 0 : i32
    return %c0_i32, %c0_i32_0, %c0_i32_1 : i32, i32, i32
  }
  func.func @transform_4(%arg0: i32) -> (i32, i32, i32) {
    %c0_i32 = arith.constant 0 : i32
    %c0_i32_0 = arith.constant 0 : i32
    %c0_i32_1 = arith.constant 0 : i32
    %c0_i32_2 = arith.constant 0 : i32
    return %c0_i32, %c0_i32_0, %c0_i32_1 : i32, i32, i32
  }
  func.func @transform_5(%arg0: i32) -> (i32, i32) {
    %c0_i32 = arith.constant 0 : i32
    %c0_i32_0 = arith.constant 0 : i32
    %c0_i32_1 = arith.constant 0 : i32
    return %c0_i32, %c0_i32_0 : i32, i32
  }
  func.func @transform_6(%arg0: i32) -> (i32, i32) {
    %c0_i32 = arith.constant 0 : i32
    %c0_i32_0 = arith.constant 0 : i32
    %c0_i32_1 = arith.constant 0 : i32
    return %c0_i32, %c0_i32_0 : i32, i32
  }
  func.func @transform_7(%arg0: i32) -> (i32, i32) {
    %c0_i32 = arith.constant 0 : i32
    %c0_i32_0 = arith.constant 0 : i32
    %c0_i32_1 = arith.constant 0 : i32
    return %c0_i32, %c0_i32_0 : i32, i32
  }
  func.func @transform_8(%arg0: i32) -> (i32, i32, i32) {
    %c0_i32 = arith.constant 0 : i32
    %c0_i32_0 = arith.constant 0 : i32
    %c0_i32_1 = arith.constant 0 : i32
    %c0_i32_2 = arith.constant 0 : i32
    return %c0_i32, %c0_i32_0, %c0_i32_1 : i32, i32, i32
  }
  func.func @transform_9(%arg0: i32) -> (i32, i32) {
    %c0_i32 = arith.constant 0 : i32
    %c0_i32_0 = arith.constant 0 : i32
    %c0_i32_1 = arith.constant 0 : i32
    return %c0_i32, %c0_i32_0 : i32, i32
  }
  func.func @transform_10(%arg0: i32) -> (i32, i32, i32) {
    %c0_i32 = arith.constant 0 : i32
    %c0_i32_0 = arith.constant 0 : i32
    %c0_i32_1 = arith.constant 0 : i32
    return %arg0, %c0_i32, %c0_i32_0 : i32, i32, i32
  }
}

</mosaic_0001>

<llo_original>
// kernel: physics_attention_forward.1
$region0: #{physics_attention_forward.1}
  #allocation0 [shape = 'u32[]', space=smem, size = 0x4, offset = 0x4, fixed_abs, tag = 'smem constant byte address 0x4 - core index']
  #allocation1 [shape = 'u32[144,128]{1,0:T(1,128)}', space=vmem, size = 0x12000, scoped, tag = 'internal scratch']
  #allocation2 [shape = 'bf16[320,64]{1,0:T(16,128)(2,1)}', space=vmem, size = 0x14000, scoped, tag = 'scratch operand']
  #allocation3 [shape = 'f32[1,1]{1,0:T(1,128)S(1)}', space=vmem, size = 0x200, scoped, tag = 'scoped memory for physics_attention_forward.1']
  %s0 = inlined_call_operand.vmem [shape: bf16[2,320,189], index: 0, kind: input, shape index: {}]
  %s1 = inlined_call_operand.vmem [shape: bf16[189,64], index: 1, kind: input, shape index: {}]
  %s2 = inlined_call_operand.vmem [shape: f32[1,64], index: 2, kind: input, shape index: {}]
  %s3 = inlined_call_operand.vmem [shape: bf16[2,8,16], index: 3, kind: input, shape index: {}]
  %s4 = inlined_call_operand.vmem [shape: f32[2,8,1], index: 4, kind: input, shape index: {}]
  %s5 = inlined_call_operand.vmem [shape: f32[16,16], index: 5, kind: input, shape index: {}]
  %s6 = inlined_call_operand.vmem [shape: f32[16,16], index: 6, kind: input, shape index: {}]
  %s7 = inlined_call_operand.vmem [shape: f32[16,16], index: 7, kind: input, shape index: {}]
  %s8 = inlined_call_operand.vmem [shape: f32[2,1,16], index: 8, kind: input, shape index: {}]
  %s9 = inlined_call_operand.<no memory space> [shape: f32[1,1], index: 9, kind: input, shape index: {}]
  %s10 = inlined_call_operand.vmem [shape: f32[2,1,320], index: 10, kind: output, shape index: {}]
  %s11 = sld [smem:[#allocation0]]
  $region73: #{physics_attention_forward.1} parent=0
    _
  %s13 = ssub.s32 1, %s11
  %s14 = scalar_select 0, %s13, %s11
  %v15 = vstv %s9
  %16 = vst [vmem:[#allocation3] sm:$0x1] %v15
  loop: start=0, step=1, limit=4
  $region2: #{physics_attention_forward.1} parent=0 // loop_pre_header
    _
  $region3: #{physics_attention_forward.1} parent=0 // loop_header
    %s18 = sphi 0, %s22
    %p19 = scmp.ge.s32.totalorder %s18, 4
    %s28 = sphi 0, %s30
    %s31 = sphi 0, %s28
    %s32 = sphi 0, %s31
    %s48 = sphi 0, %s32
    %s52 = sphi 0, %s52
    %s54 = sphi 0, %s52
    %s55 = sphi 0, %s54
    %s69 = sphi 0, %s55
    %s73 = sphi 0, %s73
    %s75 = sphi 0, %s73
    %s76 = sphi 0, %s75
    %s90 = sphi 0, %s76
    %s94 = sphi 0, %s94
    %s96 = sphi 0, %s94
    %s97 = sphi 0, %s96
    %s111 = sphi 0, %s97
    %s115 = sphi 0, %s115
    %s117 = sphi 0, %s115
    %s118 = sphi 0, %s117
    %s132 = sphi 0, %s118
    %s136 = sphi 0, %s136
    %s138 = sphi 0, %s136
    %s139 = sphi 0, %s138
    %s153 = sphi 0, %s139
    %s157 = sphi 0, %s157
    %s159 = sphi 0, %s157
    %s160 = sphi 0, %s159
    %s174 = sphi 0, %s160
    %s178 = sphi 0, %s178
    %s180 = sphi 0, %s178
    %s181 = sphi 0, %s180
    %s195 = sphi 0, %s181
    %s199 = sphi 0, %s199
    %s201 = sphi 0, %s199
    %s202 = sphi 0, %s201
    %s216 = sphi 0, %s202
    %s220 = sphi 0, %s220
    %s222 = sphi 0, %s220
    %s223 = sphi 0, %s222
    %s237 = sphi 0, %s223
    %s243 = sphi 0, %s245
    %s246 = sphi 0, %s243
    %s247 = sphi 0, %s246
    %s263 = sphi 0, %s247
  $region4: #{physics_attention_forward.1} parent=0 // loop_header_branch
    %21 = sbr.rel (%p19) target = $region8
  $region5: #{physics_attention_forward.1} parent=0 // loop_body
    %s23 = ssub.s32 %s18, 1
    %s24 = ssub.s32 %s18, 2
    %s25 = sadd.s32 %s18, 1
    %s26 = ssub.s32 %s18, %s25
    %p27 = scmp.eq.s32.totalorder %s26, 0
    %s29 = sadd.s32 %s28, 1
    %s30 = scalar_select %p27, %s28, %s29
    %p33 = pneg %p27
    %p34 = scmp.eq.s32.totalorder %s18, 1
    %p35 = por %p33, %p34
    %p36 = scmp.ne.s32.totalorder %s28, %s31
    %p37 = scmp.eq.s32.totalorder %s18, 0
    %p38 = por %p36, %p37
    %p39 = scmp.ne.s32.totalorder %s28, %s31
    %p40 = scmp.eq.s32.totalorder %s23, 1
    %p41 = por %p39, %p40
    %p42 = scmp.ne.s32.totalorder %s31, %s32
    %p43 = scmp.eq.s32.totalorder %s23, 0
    %p44 = por %p42, %p43
    %p45 = scmp.ne.s32.totalorder %s31, %s32
    %p46 = scmp.eq.s32.totalorder %s24, 1
    %p47 = por %p45, %p46
    %p49 = scmp.ne.s32.totalorder %s32, %s48
    %p50 = scmp.eq.s32.totalorder %s24, 0
    %p51 = por %p49, %p50
    %s53 = sadd.s32 %s52, 1
    %p56 = scmp.eq.s32.totalorder %s18, 1
    %p57 = scmp.ne.s32.totalorder %s52, %s54
    %p58 = scmp.eq.s32.totalorder %s18, 0
    %p59 = por %p57, %p58
    %p60 = scmp.ne.s32.totalorder %s52, %s54
    %p61 = scmp.eq.s32.totalorder %s23, 1
    %p62 = por %p60, %p61
    %p63 = scmp.ne.s32.totalorder %s54, %s55
    %p64 = scmp.eq.s32.totalorder %s23, 0
    %p65 = por %p63, %p64
    %p66 = scmp.ne.s32.totalorder %s54, %s55
    %p67 = scmp.eq.s32.totalorder %s24, 1
    %p68 = por %p66, %p67
    %p70 = scmp.ne.s32.totalorder %s55, %s69
    %p71 = scmp.eq.s32.totalorder %s24, 0
    %p72 = por %p70, %p71
    %s74 = sadd.s32 %s73, 1
    %p77 = scmp.eq.s32.totalorder %s18, 1
    %p78 = scmp.ne.s32.totalorder %s73, %s75
    %p79 = scmp.eq.s32.totalorder %s18, 0
    %p80 = por %p78, %p79
    %p81 = scmp.ne.s32.totalorder %s73, %s75
    %p82 = scmp.eq.s32.totalorder %s23, 1
    %p83 = por %p81, %p82
    %p84 = scmp.ne.s32.totalorder %s75, %s76
    %p85 = scmp.eq.s32.totalorder %s23, 0
    %p86 = por %p84, %p85
    %p87 = scmp.ne.s32.totalorder %s75, %s76
    %p88 = scmp.eq.s32.totalorder %s24, 1
    %p89 = por %p87, %p88
    %p91 = scmp.ne.s32.totalorder %s76, %s90
    %p92 = scmp.eq.s32.totalorder %s24, 0
    %p93 = por %p91, %p92
    %s95 = sadd.s32 %s94, 1
    %p98 = scmp.eq.s32.totalorder %s18, 1
    %p99 = scmp.ne.s32.totalorder %s94, %s96
    %p100 = scmp.eq.s32.totalorder %s18, 0
    %p101 = por %p99, %p100
    %p102 = scmp.ne.s32.totalorder %s94, %s96
    %p103 = scmp.eq.s32.totalorder %s23, 1
    %p104 = por %p102, %p103
    %p105 = scmp.ne.s32.totalorder %s96, %s97
    %p106 = scmp.eq.s32.totalorder %s23, 0
    %p107 = por %p105, %p106
    %p108 = scmp.ne.s32.totalorder %s96, %s97
    %p109 = scmp.eq.s32.totalorder %s24, 1
    %p110 = por %p108, %p109
    %p112 = scmp.ne.s32.totalorder %s97, %s111
    %p113 = scmp.eq.s32.totalorder %s24, 0
    %p114 = por %p112, %p113
    %s116 = sadd.s32 %s115, 1
    %p119 = scmp.eq.s32.totalorder %s18, 1
    %p120 = scmp.ne.s32.totalorder %s115, %s117
    %p121 = scmp.eq.s32.totalorder %s18, 0
    %p122 = por %p120, %p121
    %p123 = scmp.ne.s32.totalorder %s115, %s117
    %p124 = scmp.eq.s32.totalorder %s23, 1
    %p125 = por %p123, %p124
    %p126 = scmp.ne.s32.totalorder %s117, %s118
    %p127 = scmp.eq.s32.totalorder %s23, 0
    %p128 = por %p126, %p127
    %p129 = scmp.ne.s32.totalorder %s117, %s118
    %p130 = scmp.eq.s32.totalorder %s24, 1
    %p131 = por %p129, %p130
    %p133 = scmp.ne.s32.totalorder %s118, %s132
    %p134 = scmp.eq.s32.totalorder %s24, 0
    %p135 = por %p133, %p134
    %s137 = sadd.s32 %s136, 1
    %p140 = scmp.eq.s32.totalorder %s18, 1
    %p141 = scmp.ne.s32.totalorder %s136, %s138
    %p142 = scmp.eq.s32.totalorder %s18, 0
    %p143 = por %p141, %p142
    %p144 = scmp.ne.s32.totalorder %s136, %s138
    %p145 = scmp.eq.s32.totalorder %s23, 1
    %p146 = por %p144, %p145
    %p147 = scmp.ne.s32.totalorder %s138, %s139
    %p148 = scmp.eq.s32.totalorder %s23, 0
    %p149 = por %p147, %p148
    %p150 = scmp.ne.s32.totalorder %s138, %s139
    %p151 = scmp.eq.s32.totalorder %s24, 1
    %p152 = por %p150, %p151
    %p154 = scmp.ne.s32.totalorder %s139, %s153
    %p155 = scmp.eq.s32.totalorder %s24, 0
    %p156 = por %p154, %p155
    %s158 = sadd.s32 %s157, 1
    %p161 = scmp.eq.s32.totalorder %s18, 1
    %p162 = scmp.ne.s32.totalorder %s157, %s159
    %p163 = scmp.eq.s32.totalorder %s18, 0
    %p164 = por %p162, %p163
    %p165 = scmp.ne.s32.totalorder %s157, %s159
    %p166 = scmp.eq.s32.totalorder %s23, 1
    %p167 = por %p165, %p166
    %p168 = scmp.ne.s32.totalorder %s159, %s160
    %p169 = scmp.eq.s32.totalorder %s23, 0
    %p170 = por %p168, %p169
    %p171 = scmp.ne.s32.totalorder %s159, %s160
    %p172 = scmp.eq.s32.totalorder %s24, 1
    %p173 = por %p171, %p172
    %p175 = scmp.ne.s32.totalorder %s160, %s174
    %p176 = scmp.eq.s32.totalorder %s24, 0
    %p177 = por %p175, %p176
    %s179 = sadd.s32 %s178, 1
    %p182 = scmp.eq.s32.totalorder %s18, 1
    %p183 = scmp.ne.s32.totalorder %s178, %s180
    %p184 = scmp.eq.s32.totalorder %s18, 0
    %p185 = por %p183, %p184
    %p186 = scmp.ne.s32.totalorder %s178, %s180
    %p187 = scmp.eq.s32.totalorder %s23, 1
    %p188 = por %p186, %p187
    %p189 = scmp.ne.s32.totalorder %s180, %s181
    %p190 = scmp.eq.s32.totalorder %s23, 0
    %p191 = por %p189, %p190
    %p192 = scmp.ne.s32.totalorder %s180, %s181
    %p193 = scmp.eq.s32.totalorder %s24, 1
    %p194 = por %p192, %p193
    %p196 = scmp.ne.s32.totalorder %s181, %s195
    %p197 = scmp.eq.s32.totalorder %s24, 0
    %p198 = por %p196, %p197
    %s200 = sadd.s32 %s199, 1
    %p203 = scmp.eq.s32.totalorder %s18, 1
    %p204 = scmp.ne.s32.totalorder %s199, %s201
    %p205 = scmp.eq.s32.totalorder %s18, 0
    %p206 = por %p204, %p205
    %p207 = scmp.ne.s32.totalorder %s199, %s201
    %p208 = scmp.eq.s32.totalorder %s23, 1
    %p209 = por %p207, %p208
    %p210 = scmp.ne.s32.totalorder %s201, %s202
    %p211 = scmp.eq.s32.totalorder %s23, 0
    %p212 = por %p210, %p211
    %p213 = scmp.ne.s32.totalorder %s201, %s202
    %p214 = scmp.eq.s32.totalorder %s24, 1
    %p215 = por %p213, %p214
    %p217 = scmp.ne.s32.totalorder %s202, %s216
    %p218 = scmp.eq.s32.totalorder %s24, 0
    %p219 = por %p217, %p218
    %s221 = sadd.s32 %s220, 1
    %p224 = scmp.eq.s32.totalorder %s18, 1
    %p225 = scmp.ne.s32.totalorder %s220, %s222
    %p226 = scmp.eq.s32.totalorder %s18, 0
    %p227 = por %p225, %p226
    %p228 = scmp.ne.s32.totalorder %s220, %s222
    %p229 = scmp.eq.s32.totalorder %s23, 1
    %p230 = por %p228, %p229
    %p231 = scmp.ne.s32.totalorder %s222, %s223
    %p232 = scmp.eq.s32.totalorder %s23, 0
    %p233 = por %p231, %p232
    %p234 = scmp.ne.s32.totalorder %s222, %s223
    %p235 = scmp.eq.s32.totalorder %s24, 1
    %p236 = por %p234, %p235
    %p238 = scmp.ne.s32.totalorder %s223, %s237
    %p239 = scmp.eq.s32.totalorder %s24, 0
    %p240 = por %p238, %p239
    %s241 = ssub.s32 %s18, %s25
    %p242 = scmp.eq.s32.totalorder %s241, 0
    %s244 = sadd.s32 %s243, 1
    %s245 = scalar_select %p242, %s243, %s244
    %p248 = pneg %p242
    %p249 = scmp.eq.s32.totalorder %s18, 1
    %p250 = por %p248, %p249
    %p251 = scmp.ne.s32.totalorder %s243, %s246
    %p252 = scmp.eq.s32.totalorder %s18, 0
    %p253 = por %p251, %p252
    %p254 = scmp.ne.s32.totalorder %s243, %s246
    %p255 = scmp.eq.s32.totalorder %s23, 1
    %p256 = por %p254, %p255
    %p257 = scmp.ne.s32.totalorder %s246, %s247
    %p258 = scmp.eq.s32.totalorder %s23, 0
    %p259 = por %p257, %p258
    %p260 = scmp.ne.s32.totalorder %s246, %s247
    %p261 = scmp.eq.s32.totalorder %s24, 1
    %p262 = por %p260, %p261
    %p264 = scmp.ne.s32.totalorder %s247, %s263
    %p265 = scmp.eq.s32.totalorder %s24, 0
    %p266 = por %p264, %p265
    %p267 = scmp.le.s32.totalorder 1, %s18
    %p268 = scmp.lt.s32.totalorder %s18, 3
    %p269 = pnand %p267, %p268
    %p270 = pneg %p269
    // Predicated region
    $region9: #{physics_attention_forward.1} parent=5 // pred_check
      _
    $region10: #{physics_attention_forward.1} parent=5 // pred_check_branch
      %272 = sbr.rel (%p269) target = $region12
    $region11: #{physics_attention_forward.1} parent=5 // pred_region
      %s273 = ssub.s32 %s18, 1
      // Predicated region
      $region13: #{physics_attention_forward.1} parent=11 // pred_check
        %p274 = pneg %p65
      $region14: #{physics_attention_forward.1} parent=11 // pred_check_branch
        %276 = sbr.rel (%p274) target = $region16
      $region15: #{physics_attention_forward.1} parent=11 // pred_region
        _
      $region16: #{physics_attention_forward.1} parent=11 // pred_fallthru
        _
      // Predicated region
      $region17: #{physics_attention_forward.1} parent=11 // pred_check
        %p277 = pneg %p86
      $region18: #{physics_attention_forward.1} parent=11 // pred_check_branch
        %279 = sbr.rel (%p277) target = $region20
      $region19: #{physics_attention_forward.1} parent=11 // pred_region
        _
      $region20: #{physics_attention_forward.1} parent=11 // pred_fallthru
        _
      // Predicated region
      $region21: #{physics_attention_forward.1} parent=11 // pred_check
        %p280 = pneg %p107
      $region22: #{physics_attention_forward.1} parent=11 // pred_check_branch
        %282 = sbr.rel (%p280) target = $region24
      $region23: #{physics_attention_forward.1} parent=11 // pred_region
        _
      $region24: #{physics_attention_forward.1} parent=11 // pred_fallthru
        _
      // Predicated region
      $region25: #{physics_attention_forward.1} parent=11 // pred_check
        %p283 = pneg %p128
      $region26: #{physics_attention_forward.1} parent=11 // pred_check_branch
        %285 = sbr.rel (%p283) target = $region28
      $region27: #{physics_attention_forward.1} parent=11 // pred_region
        _
      $region28: #{physics_attention_forward.1} parent=11 // pred_fallthru
        _
      // Predicated region
      $region29: #{physics_attention_forward.1} parent=11 // pred_check
        %p286 = pneg %p149
      $region30: #{physics_attention_forward.1} parent=11 // pred_check_branch
        %288 = sbr.rel (%p286) target = $region32
      $region31: #{physics_attention_forward.1} parent=11 // pred_region
        _
      $region32: #{physics_attention_forward.1} parent=11 // pred_fallthru
        _
      // Predicated region
      $region33: #{physics_attention_forward.1} parent=11 // pred_check
        %p289 = pneg %p170
      $region34: #{physics_attention_forward.1} parent=11 // pred_check_branch
        %291 = sbr.rel (%p289) target = $region36
      $region35: #{physics_attention_forward.1} parent=11 // pred_region
        _
      $region36: #{physics_attention_forward.1} parent=11 // pred_fallthru
        _
      // Predicated region
      $region37: #{physics_attention_forward.1} parent=11 // pred_check
        %p292 = pneg %p191
      $region38: #{physics_attention_forward.1} parent=11 // pred_check_branch
        %294 = sbr.rel (%p292) target = $region40
      $region39: #{physics_attention_forward.1} parent=11 // pred_region
        _
      $region40: #{physics_attention_forward.1} parent=11 // pred_fallthru
        _
      // Predicated region
      $region41: #{physics_attention_forward.1} parent=11 // pred_check
        %p295 = pneg %p212
      $region42: #{physics_attention_forward.1} parent=11 // pred_check_branch
        %297 = sbr.rel (%p295) target = $region44
      $region43: #{physics_attention_forward.1} parent=11 // pred_region
        _
      $region44: #{physics_attention_forward.1} parent=11 // pred_fallthru
        _
      // Predicated region
      $region45: #{physics_attention_forward.1} parent=11 // pred_check
        %p298 = pneg %p233
      $region46: #{physics_attention_forward.1} parent=11 // pred_check_branch
        %300 = sbr.rel (%p298) target = $region48
      $region47: #{physics_attention_forward.1} parent=11 // pred_region
        _
      $region48: #{physics_attention_forward.1} parent=11 // pred_fallthru
        _
    $region12: #{physics_attention_forward.1} parent=5 // pred_fallthru
      _
    %p301 = scmp.lt.s32.totalorder %s18, 2
    // Predicated region
    $region49: #{physics_attention_forward.1} parent=5 // pred_check
      %p302 = pneg %p301
    $region50: #{physics_attention_forward.1} parent=5 // pred_check_branch
      %304 = sbr.rel (%p302) target = $region52
    $region51: #{physics_attention_forward.1} parent=5 // pred_region
      // Predicated region
      $region53: #{physics_attention_forward.1} parent=51 // pred_check
        %p305 = pneg %p38
      $region54: #{physics_attention_forward.1} parent=51 // pred_check_branch
        %307 = sbr.rel (%p305) target = $region56
      $region55: #{physics_attention_forward.1} parent=51 // pred_region
        %p308 = scmp.lt.s32.totalorder %s18, 1
        %s309 = scalar_select %p308, %s18, 1
        %s310 = smul.addr %s309, 80
        %s311 = smul.addr %s310, 4
        %s312 = scalar_lea.vmem %s0, %s311
      $region56: #{physics_attention_forward.1} parent=51 // pred_fallthru
        _
    $region52: #{physics_attention_forward.1} parent=5 // pred_fallthru
      _
    %p313 = scmp.le.s32.totalorder 1, %s18
    %p314 = scmp.lt.s32.totalorder %s18, 3
    %p315 = pnand %p313, %p314
    %p316 = pneg %p315
    // Predicated region
    $region57: #{physics_attention_forward.1} parent=5 // pred_check
      _
    $region58: #{physics_attention_forward.1} parent=5 // pred_check_branch
      %318 = sbr.rel (%p315) target = $region60
    $region59: #{physics_attention_forward.1} parent=5 // pred_region
      %s319 = ssub.s32 %s18, 1
      %p320 = scmp.lt.s32.totalorder %s23, 1
      %s321 = scalar_select %p320, %s23, 1
      %s322 = smul.addr %s321, 80
      %s323 = smul.addr %s322, 4
      %s324 = scalar_lea.vmem %s0, %s323
      %p325 = pneg %p44
      %p326 = pneg %p41
      %p327 = pneg %p65
      %p328 = pneg %p62
      %p329 = pneg %p86
      %p330 = pneg %p83
      %p331 = pneg %p107
      %p332 = pneg %p104
      %p333 = pneg %p128
      %p334 = pneg %p125
      %p335 = pneg %p149
      %p336 = pneg %p146
      %p337 = pneg %p170
      %p338 = pneg %p167
      %p339 = pneg %p191
      %p340 = pneg %p188
      %p341 = pneg %p212
      %p342 = pneg %p209
      %p343 = pneg %p233
      %p344 = pneg %p230
      %p345 = pneg %p259
      %p346 = pneg %p256
      %p347 = scmp.lt.s32.totalorder %s23, 1
      %s348 = scalar_select %p347, %s23, 1
      %s349 = smul.addr %s348, 3
      %s350 = scalar_lea.vmem %s10, %s349
      %p351 = scmp.lt.s32.totalorder %s23, 1
      %s352 = scalar_select %p351, %s23, 1
      %s353 = smul.addr %s352, 80
      %s354 = smul.addr %s353, 4
      %s355 = scalar_lea.vmem %s0, %s354
      %p356 = scmp.lt.s32.totalorder %s23, 1
      %s357 = scalar_select %p356, %s23, 1
      %s358 = smul.addr %s357, 3
      %s359 = scalar_lea.vmem %s10, %s358
      %v361 = vld [vmem:[%s355] sm:$0xff]
      %v362 = vld [vmem:[%s355 + $0x8] sm:$0xff]
      %v363 = vld [vmem:[%s355 + $0x10] sm:$0xff]
      %v364 = vld [vmem:[%s355 + $0x18] sm:$0xff]
      %v365 = vld [vmem:[%s355 + $0x20] sm:$0xff]
      %v366 = vld [vmem:[%s355 + $0x28] sm:$0xff]
      %v367 = vld [vmem:[%s355 + $0x30] sm:$0xff]
      %v368 = vld [vmem:[%s355 + $0x38] sm:$0xff]
      %v369 = vld [vmem:[%s355 + $0x40] sm:$0xff]
      %v370 = vld [vmem:[%s355 + $0x48] sm:$0xff]
      %v371 = vld [vmem:[%s355 + $0x50] sm:$0xff]
      %v372 = vld [vmem:[%s355 + $0x58] sm:$0xff]
      %v373 = vld [vmem:[%s355 + $0x60] sm:$0xff]
      %v374 = vld [vmem:[%s355 + $0x68] sm:$0xff]
      %v375 = vld [vmem:[%s355 + $0x70] sm:$0xff]
      %v376 = vld [vmem:[%s355 + $0x78] sm:$0xff]
      %v377 = vld [vmem:[%s355 + $0x80] sm:$0xff]
      %v378 = vld [vmem:[%s355 + $0x88] sm:$0xff]
      %v379 = vld [vmem:[%s355 + $0x90] sm:$0xff]
      %v380 = vld [vmem:[%s355 + $0x98] sm:$0xff]
      %v381 = vld [vmem:[%s355 + $0xa0] sm:$0xff]
      %v382 = vld [vmem:[%s355 + $0xa8] sm:$0xff]
      %v383 = vld [vmem:[%s355 + $0xb0] sm:$0xff]
      %v384 = vld [vmem:[%s355 + $0xb8] sm:$0xff]
      %v385 = vld [vmem:[%s355 + $0xc0] sm:$0xff]
      %v386 = vld [vmem:[%s355 + $0xc8] sm:$0xff]
      %v387 = vld [vmem:[%s355 + $0xd0] sm:$0xff]
      %v388 = vld [vmem:[%s355 + $0xd8] sm:$0xff]
      %v389 = vld [vmem:[%s355 + $0xe0] sm:$0xff]
      %v390 = vld [vmem:[%s355 + $0xe8] sm:$0xff]
      %v391 = vld [vmem:[%s355 + $0xf0] sm:$0xff]
      %v392 = vld [vmem:[%s355 + $0xf8] sm:$0xff]
      %v393 = vld [vmem:[%s355 + $0x100] sm:$0xff]
      %v394 = vld [vmem:[%s355 + $0x108] sm:$0xff]
      %v395 = vld [vmem:[%s355 + $0x110] sm:$0xff]
      %v396 = vld [vmem:[%s355 + $0x118] sm:$0xff]
      %v397 = vld [vmem:[%s355 + $0x120] sm:$0xff]
      %v398 = vld [vmem:[%s355 + $0x128] sm:$0xff]
      %v399 = vld [vmem:[%s355 + $0x130] sm:$0xff]
      %v400 = vld [vmem:[%s355 + $0x138] sm:$0xff]
      %v401 = vld [vmem:[%s1] sm:$0xf]
      %v402 = vld [vmem:[%s1 + $0x4] sm:$0xf]
      %v403 = vld [vmem:[%s1 + $0x8] sm:$0xf]
      %v404 = vld [vmem:[%s1 + $0xc] sm:$0xf]
      %v405 = vld [vmem:[%s1 + $0x10] sm:$0xf]
      %v406 = vld [vmem:[%s1 + $0x14] sm:$0xf]
      %v407 = vld [vmem:[%s1 + $0x18] sm:$0xf]
      %v408 = vld [vmem:[%s1 + $0x1c] sm:$0xf]
      %v409 = vld [vmem:[%s1 + $0x20] sm:$0xf]
      %v410 = vld [vmem:[%s1 + $0x24] sm:$0xf]
      %v411 = vld [vmem:[%s1 + $0x28] sm:$0xf]
      %v412 = vld [vmem:[%s1 + $0x2c] sm:$0xf]
      %v413 = vld [vmem:[%s1 + $0x30] sm:$0xf]
      %v414 = vld [vmem:[%s1 + $0x34] sm:$0xf]
      %v415 = vld [vmem:[%s1 + $0x38] sm:$0xf]
      %v416 = vld [vmem:[%s1 + $0x3c] sm:$0xf]
      %v417 = vld [vmem:[%s1 + $0x40] sm:$0xf]
      %v418 = vld [vmem:[%s1 + $0x44] sm:$0xf]
      %v419 = vld [vmem:[%s1 + $0x48] sm:$0xf]
      %v420 = vld [vmem:[%s1 + $0x4c] sm:$0xf]
      %v421 = vld [vmem:[%s1 + $0x50] sm:$0xf]
      %v422 = vld [vmem:[%s1 + $0x54] sm:$0xf]
      %v423 = vld [vmem:[%s1 + $0x58] sm:$0xf]
      %v424 = vld [vmem:[%s1 + $0x5c] sm:$0x7]
      %v425 = vld [vmem:[%s2] sm:$0x1]
      %v427 = vlaneseq
      %v428 = vshrl.u32 %v427, 7
      %v429 = vsub.s32 0, %v428
      %v430 = vrot.slane %v425, %v429
      %v472 = vunpack.c.l.b16 %v361
      %v473 = vunpack.c.h.b16 %v361
      %v474 = vunpack.c.l.b16 %v362
      %v475 = vunpack.c.h.b16 %v362
      %v476 = vunpack.c.l.b16 %v363
      %v477 = vunpack.c.h.b16 %v363
      %v478 = vunpack.c.l.b16 %v364
      %v479 = vunpack.c.h.b16 %v364
      %v480 = vunpack.c.l.b16 %v365
      %v481 = vunpack.c.h.b16 %v365
      %v482 = vunpack.c.l.b16 %v366
      %v483 = vunpack.c.h.b16 %v366
      %v484 = vunpack.c.l.b16 %v367
      %v485 = vunpack.c.h.b16 %v367
      %v486 = vunpack.c.l.b16 %v368
      %v487 = vunpack.c.h.b16 %v368
      %v488 = vunpack.c.l.b16 %v369
      %v489 = vunpack.c.h.b16 %v369
      %v490 = vunpack.c.l.b16 %v370
      %v491 = vunpack.c.h.b16 %v370
      %v492 = vunpack.c.l.b16 %v371
      %v493 = vunpack.c.h.b16 %v371
      %v494 = vunpack.c.l.b16 %v372
      %v495 = vunpack.c.h.b16 %v372
      %v496 = vunpack.c.l.b16 %v373
      %v497 = vunpack.c.h.b16 %v373
      %v498 = vunpack.c.l.b16 %v374
      %v499 = vunpack.c.h.b16 %v374
      %v500 = vunpack.c.l.b16 %v375
      %v501 = vunpack.c.h.b16 %v375
      %v502 = vunpack.c.l.b16 %v376
      %v503 = vunpack.c.h.b16 %v376
      %v504 = vunpack.c.l.b16 %v377
      %v505 = vunpack.c.h.b16 %v377
      %v506 = vunpack.c.l.b16 %v378
      %v507 = vunpack.c.h.b16 %v378
      %v508 = vunpack.c.l.b16 %v379
      %v509 = vunpack.c.h.b16 %v379
      %v510 = vunpack.c.l.b16 %v380
      %v511 = vunpack.c.h.b16 %v380
      %v512 = vunpack.c.l.b16 %v381
      %v513 = vunpack.c.h.b16 %v381
      %v514 = vunpack.c.l.b16 %v382
      %v515 = vunpack.c.h.b16 %v382
      %v516 = vunpack.c.l.b16 %v383
      %v517 = vunpack.c.h.b16 %v383
      %v518 = vunpack.c.l.b16 %v384
      %v519 = vunpack.c.h.b16 %v384
      %v520 = vunpack.c.l.b16 %v385
      %v521 = vunpack.c.h.b16 %v385
      %v522 = vunpack.c.l.b16 %v386
      %v523 = vunpack.c.h.b16 %v386
      %v524 = vunpack.c.l.b16 %v387
      %v525 = vunpack.c.h.b16 %v387
      %v526 = vunpack.c.l.b16 %v388
      %v527 = vunpack.c.h.b16 %v388
      %v528 = vunpack.c.l.b16 %v389
      %v529 = vunpack.c.h.b16 %v389
      %v530 = vunpack.c.l.b16 %v390
      %v531 = vunpack.c.h.b16 %v390
      %v532 = vunpack.c.l.b16 %v391
      %v533 = vunpack.c.h.b16 %v391
      %v534 = vunpack.c.l.b16 %v392
      %v535 = vunpack.c.h.b16 %v392
      %v536 = vunpack.c.l.b16 %v393
      %v537 = vunpack.c.h.b16 %v393
      %v538 = vunpack.c.l.b16 %v394
      %v539 = vunpack.c.h.b16 %v394
      %v540 = vunpack.c.l.b16 %v395
      %v541 = vunpack.c.h.b16 %v395
      %v542 = vunpack.c.l.b16 %v396
      %v543 = vunpack.c.h.b16 %v396
      %v544 = vunpack.c.l.b16 %v397
      %v545 = vunpack.c.h.b16 %v397
      %v546 = vunpack.c.l.b16 %v398
      %v547 = vunpack.c.h.b16 %v398
      %v548 = vunpack.c.l.b16 %v399
      %v549 = vunpack.c.h.b16 %v399
      %v550 = vunpack.c.l.b16 %v400
      %v551 = vunpack.c.h.b16 %v400
      %v552 = vpack.c.b16 %v474, %v472
      %v553 = vpack.c.b16 %v475, %v473
      %v554 = vpack.c.b16 %v478, %v476
      %v555 = vpack.c.b16 %v479, %v477
      %v556 = vpack.c.b16 %v482, %v480
      %v557 = vpack.c.b16 %v483, %v481
      %v558 = vpack.c.b16 %v486, %v484
      %v559 = vpack.c.b16 %v487, %v485
      %v560 = vpack.c.b16 %v490, %v488
      %v561 = vpack.c.b16 %v491, %v489
      %v562 = vpack.c.b16 %v494, %v492
      %v563 = vpack.c.b16 %v495, %v493
      %v564 = vpack.c.b16 %v498, %v496
      %v565 = vpack.c.b16 %v499, %v497
      %v566 = vpack.c.b16 %v502, %v500
      %v567 = vpack.c.b16 %v503, %v501
      %v568 = vpack.c.b16 %v506, %v504
      %v569 = vpack.c.b16 %v507, %v505
      %v570 = vpack.c.b16 %v510, %v508
      %v571 = vpack.c.b16 %v511, %v509
      %v572 = vpack.c.b16 %v514, %v512
      %v573 = vpack.c.b16 %v515, %v513
      %v574 = vpack.c.b16 %v518, %v516
      %v575 = vpack.c.b16 %v519, %v517
      %v576 = vpack.c.b16 %v522, %v520
      %v577 = vpack.c.b16 %v523, %v521
      %v578 = vpack.c.b16 %v526, %v524
      %v579 = vpack.c.b16 %v527, %v525
      %v580 = vpack.c.b16 %v530, %v528
      %v581 = vpack.c.b16 %v531, %v529
      %v582 = vpack.c.b16 %v534, %v532
      %v583 = vpack.c.b16 %v535, %v533
      %v584 = vpack.c.b16 %v538, %v536
      %v585 = vpack.c.b16 %v539, %v537
      %v586 = vpack.c.b16 %v542, %v540
      %v587 = vpack.c.b16 %v543, %v541
      %v588 = vpack.c.b16 %v546, %v544
      %v589 = vpack.c.b16 %v547, %v545
      %v590 = vpack.c.b16 %v550, %v548
      %v591 = vpack.c.b16 %v551, %v549
      %v636 = vunpack.c.l.b16 %v401
      %v637 = vunpack.c.l.b16 %v402
      %v638 = vunpack.c.l.b16 %v403
      %v639 = vunpack.c.l.b16 %v404
      %v640 = vunpack.c.l.b16 %v405
      %v641 = vunpack.c.l.b16 %v406
      %v642 = vunpack.c.l.b16 %v407
      %v643 = vunpack.c.l.b16 %v408
      %v644 = vunpack.c.l.b16 %v409
      %v645 = vunpack.c.l.b16 %v410
      %v646 = vunpack.c.l.b16 %v411
      %v647 = vunpack.c.l.b16 %v412
      %v648 = vunpack.c.l.b16 %v413
      %v649 = vunpack.c.l.b16 %v414
      %v650 = vunpack.c.l.b16 %v415
      %v651 = vunpack.c.l.b16 %v416
      %v652 = vunpack.c.l.b16 %v417
      %v653 = vunpack.c.l.b16 %v418
      %v654 = vunpack.c.l.b16 %v419
      %v655 = vunpack.c.l.b16 %v420
      %v656 = vunpack.c.l.b16 %v421
      %v657 = vunpack.c.l.b16 %v422
      %v658 = vunpack.c.l.b16 %v423
      %v659 = vunpack.c.l.b16 %v424
      %v660 = vpack.c.b16 %v637, %v636
      %v661 = vpack.c.b16 %v639, %v638
      %v662 = vpack.c.b16 %v641, %v640
      %v663 = vpack.c.b16 %v643, %v642
      %v664 = vpack.c.b16 %v645, %v644
      %v665 = vpack.c.b16 %v647, %v646
      %v666 = vpack.c.b16 %v649, %v648
      %v667 = vpack.c.b16 %v651, %v650
      %v668 = vpack.c.b16 %v653, %v652
      %v669 = vpack.c.b16 %v655, %v654
      %v670 = vpack.c.b16 %v657, %v656
      %v671 = vpack.c.b16 %v659, %v658
      %vm683 = vcmask 498688
      %v685 = vsel %vm683, %v553, 0
      %v688 = vsel %vm683, %v555, 0
      %v691 = vsel %vm683, %v557, 0
      %v694 = vsel %vm683, %v559, 0
      %v697 = vsel %vm683, %v561, 0
      %v700 = vsel %vm683, %v563, 0
      %v703 = vsel %vm683, %v565, 0
      %v706 = vsel %vm683, %v567, 0
      %v709 = vsel %vm683, %v569, 0
      %v712 = vsel %vm683, %v571, 0
      %v715 = vsel %vm683, %v573, 0
      %v718 = vsel %vm683, %v575, 0
      %v721 = vsel %vm683, %v577, 0
      %v724 = vsel %vm683, %v579, 0
      %v727 = vsel %vm683, %v581, 0
      %v730 = vsel %vm683, %v583, 0
      %v733 = vsel %vm683, %v585, 0
      %v736 = vsel %vm683, %v587, 0
      %v739 = vsel %vm683, %v589, 0
      %v742 = vsel %vm683, %v591, 0
      %vm744 = vcmask 1045504
      %vm745 = vcmask 1046528
      %v746 = vsel %vm744, 4294967295, 65535
      %v747 = vsel %vm745, %v746, 0
      %v749 = vand.u32 %v671, %v747
      %751 = vmatprep.subr.bf16.mxu0 0
      %752 = vmatpush1.bf16.msra.mxu0 %v660
      %753 = vmatprep.subr.bf16.mxu0 0
      %754 = vmatpush1.bf16.msra.mxu0 %v661
      %755 = vmatprep.subr.bf16.mxu0 0
      %756 = vmatpush1.bf16.msra.mxu0 %v662
      %757 = vmatprep.subr.bf16.mxu0 0
      %758 = vmatpush1.bf16.msra.mxu0 %v663
      %759 = vmatprep.subr.bf16.mxu0 0
      %760 = vmatpush1.bf16.msra.mxu0 %v664
      %761 = vmatprep.subr.bf16.mxu0 0
      %762 = vmatpush1.bf16.msra.mxu0 %v665
      %763 = vmatprep.subr.bf16.mxu0 0
      %764 = vmatpush1.bf16.msra.mxu0 %v666
      %765 = vmatprep.subr.bf16.mxu0 0
      %766 = vmatpush1.bf16.msra.mxu0 %v667
      %767 = vmatprep.subr.bf16.mxu0 0
      %768 = vmatpush1.bf16.msra.mxu0 %v668
      %769 = vmatprep.subr.bf16.mxu0 0
      %770 = vmatpush1.bf16.msra.mxu0 %v669
      %771 = vmatprep.subr.bf16.mxu0 0
      %772 = vmatpush1.bf16.msra.mxu0 %v670
      %773 = vmatprep.subr.bf16.mxu0 0
      %774 = vmatpush1.bf16.msra.mxu0 %v749
      %775 = vmatprep.subr.bf16.mxu0 0
      %776 = vmatpush1.bf16.msra.mxu0 0
      %777 = vmatprep.subr.bf16.mxu0 0
      %778 = vmatpush1.bf16.msra.mxu0 0
      %779 = vmatprep.subr.bf16.mxu0 0
      %780 = vmatpush1.bf16.msra.mxu0 0
      %781 = vmatprep.subr.bf16.mxu0 0
      %782 = vmatpush1.bf16.msra.mxu0 0
      %783 = vmatprep.mubr.bf16.mxu0 %v685
      %784 = vmatmul.mubr.bf16.gmra.mrb[0].mxu0 %v552
      %v785 = vpop.f32.mrb[0].mxu0
      %v786 = vadd.f32 %v430, %v785
      %v787 = vpop.f32.mrb[0].mxu0
      %v788 = vpop.f32.mrb[0].mxu0
      %v789 = vadd.f32 %v430, %v788
      %v790 = vpop.f32.mrb[0].mxu0
      %791 = vmatprep.mubr.bf16.mxu0 %v688
      %792 = vmatmul.mubr.bf16.gmra.mrb[0].mxu0 %v554
      %v793 = vpop.f32.mrb[0].mxu0
      %v794 = vadd.f32 %v430, %v793
      %v795 = vpop.f32.mrb[0].mxu0
      %v796 = vpop.f32.mrb[0].mxu0
      %v797 = vadd.f32 %v430, %v796
      %v798 = vpop.f32.mrb[0].mxu0
      %799 = vmatprep.mubr.bf16.mxu0 %v691
      %800 = vmatmul.mubr.bf16.gmra.mrb[0].mxu0 %v556
      %v801 = vpop.f32.mrb[0].mxu0
      %v802 = vadd.f32 %v430, %v801
      %v803 = vpop.f32.mrb[0].mxu0
      %v804 = vpop.f32.mrb[0].mxu0
      %v805 = vadd.f32 %v430, %v804
      %v806 = vpop.f32.mrb[0].mxu0
      %807 = vmatprep.mubr.bf16.mxu0 %v694
      %808 = vmatmul.mubr.bf16.gmra.mrb[0].mxu0 %v558
      %v809 = vpop.f32.mrb[0].mxu0
      %v810 = vadd.f32 %v430, %v809
      %v811 = vpop.f32.mrb[0].mxu0
      %v812 = vpop.f32.mrb[0].mxu0
      %v813 = vadd.f32 %v430, %v812
      %v814 = vpop.f32.mrb[0].mxu0
      %815 = vmatprep.mubr.bf16.mxu0 %v697
      %816 = vmatmul.mubr.bf16.gmra.mrb[0].mxu0 %v560
      %v817 = vpop.f32.mrb[0].mxu0
      %v818 = vadd.f32 %v430, %v817
      %v819 = vpop.f32.mrb[0].mxu0
      %v820 = vpop.f32.mrb[0].mxu0
      %v821 = vadd.f32 %v430, %v820
      %v822 = vpop.f32.mrb[0].mxu0
      %823 = vmatprep.mubr.bf16.mxu0 %v700
      %824 = vmatmul.mubr.bf16.gmra.mrb[0].mxu0 %v562
      %v825 = vpop.f32.mrb[0].mxu0
      %v826 = vadd.f32 %v430, %v825
      %v827 = vpop.f32.mrb[0].mxu0
      %v828 = vpop.f32.mrb[0].mxu0
      %v829 = vadd.f32 %v430, %v828
      %v830 = vpop.f32.mrb[0].mxu0
      %831 = vmatprep.mubr.bf16.mxu0 %v703
      %832 = vmatmul.mubr.bf16.gmra.mrb[0].mxu0 %v564
      %v833 = vpop.f32.mrb[0].mxu0
      %v834 = vadd.f32 %v430, %v833
      %v835 = vpop.f32.mrb[0].mxu0
      %v836 = vpop.f32.mrb[0].mxu0
      %v837 = vadd.f32 %v430, %v836
      %v838 = vpop.f32.mrb[0].mxu0
      %839 = vmatprep.mubr.bf16.mxu0 %v706
      %840 = vmatmul.mubr.bf16.gmra.mrb[0].mxu0 %v566
      %v841 = vpop.f32.mrb[0].mxu0
      %v842 = vadd.f32 %v430, %v841
      %v843 = vpop.f32.mrb[0].mxu0
      %v844 = vpop.f32.mrb[0].mxu0
      %v845 = vadd.f32 %v430, %v844
      %v846 = vpop.f32.mrb[0].mxu0
      %847 = vmatprep.mubr.bf16.mxu0 %v709
      %848 = vmatmul.mubr.bf16.gmra.mrb[0].mxu0 %v568
      %v849 = vpop.f32.mrb[0].mxu0
      %v850 = vadd.f32 %v430, %v849
      %v851 = vpop.f32.mrb[0].mxu0
      %v852 = vpop.f32.mrb[0].mxu0
      %v853 = vadd.f32 %v430, %v852
      %v854 = vpop.f32.mrb[0].mxu0
      %855 = vmatprep.mubr.bf16.mxu0 %v712
      %856 = vmatmul.mubr.bf16.gmra.mrb[0].mxu0 %v570
      %v857 = vpop.f32.mrb[0].mxu0
      %v858 = vadd.f32 %v430, %v857
      %v859 = vpop.f32.mrb[0].mxu0
      %v860 = vpop.f32.mrb[0].mxu0
      %v861 = vadd.f32 %v430, %v860
      %v862 = vpop.f32.mrb[0].mxu0
      %863 = vmatprep.mubr.bf16.mxu0 %v715
      %864 = vmatmul.mubr.bf16.gmra.mrb[0].mxu0 %v572
      %v865 = vpop.f32.mrb[0].mxu0
      %v866 = vadd.f32 %v430, %v865
      %v867 = vpop.f32.mrb[0].mxu0
      %v868 = vpop.f32.mrb[0].mxu0
      %v869 = vadd.f32 %v430, %v868
      %v870 = vpop.f32.mrb[0].mxu0
      %871 = vmatprep.mubr.bf16.mxu0 %v718
      %872 = vmatmul.mubr.bf16.gmra.mrb[0].mxu0 %v574
      %v873 = vpop.f32.mrb[0].mxu0
      %v874 = vadd.f32 %v430, %v873
      %v875 = vpop.f32.mrb[0].mxu0
      %v876 = vpop.f32.mrb[0].mxu0
      %v877 = vadd.f32 %v430, %v876
      %v878 = vpop.f32.mrb[0].mxu0
      %879 = vmatprep.mubr.bf16.mxu0 %v721
      %880 = vmatmul.mubr.bf16.gmra.mrb[0].mxu0 %v576
      %v881 = vpop.f32.mrb[0].mxu0
      %v882 = vadd.f32 %v430, %v881
      %v883 = vpop.f32.mrb[0].mxu0
      %v884 = vpop.f32.mrb[0].mxu0
      %v885 = vadd.f32 %v430, %v884
      %v886 = vpop.f32.mrb[0].mxu0
      %887 = vmatprep.mubr.bf16.mxu0 %v724
      %888 = vmatmul.mubr.bf16.gmra.mrb[0].mxu0 %v578
      %v889 = vpop.f32.mrb[0].mxu0
      %v890 = vadd.f32 %v430, %v889
      %v891 = vpop.f32.mrb[0].mxu0
      %v892 = vpop.f32.mrb[0].mxu0
      %v893 = vadd.f32 %v430, %v892
      %v894 = vpop.f32.mrb[0].mxu0
      %895 = vmatprep.mubr.bf16.mxu0 %v727
      %896 = vmatmul.mubr.bf16.gmra.mrb[0].mxu0 %v580
      %v897 = vpop.f32.mrb[0].mxu0
      %v898 = vadd.f32 %v430, %v897
      %v899 = vpop.f32.mrb[0].mxu0
      %v900 = vpop.f32.mrb[0].mxu0
      %v901 = vadd.f32 %v430, %v900
      %v902 = vpop.f32.mrb[0].mxu0
      %903 = vmatprep.mubr.bf16.mxu0 %v730
      %904 = vmatmul.mubr.bf16.gmra.mrb[0].mxu0 %v582
      %v905 = vpop.f32.mrb[0].mxu0
      %v906 = vadd.f32 %v430, %v905
      %v907 = vpop.f32.mrb[0].mxu0
      %v908 = vpop.f32.mrb[0].mxu0
      %v909 = vadd.f32 %v430, %v908
      %v910 = vpop.f32.mrb[0].mxu0
      %911 = vmatprep.mubr.bf16.mxu0 %v733
      %912 = vmatmul.mubr.bf16.gmra.mrb[0].mxu0 %v584
      %v913 = vpop.f32.mrb[0].mxu0
      %v914 = vadd.f32 %v430, %v913
      %v915 = vpop.f32.mrb[0].mxu0
      %v916 = vpop.f32.mrb[0].mxu0
      %v917 = vadd.f32 %v430, %v916
      %v918 = vpop.f32.mrb[0].mxu0
      %919 = vmatprep.mubr.bf16.mxu0 %v736
      %920 = vmatmul.mubr.bf16.gmra.mrb[0].mxu0 %v586
      %v921 = vpop.f32.mrb[0].mxu0
      %v922 = vadd.f32 %v430, %v921
      %v923 = vpop.f32.mrb[0].mxu0
      %v924 = vpop.f32.mrb[0].mxu0
      %v925 = vadd.f32 %v430, %v924
      %v926 = vpop.f32.mrb[0].mxu0
      %927 = vmatprep.mubr.bf16.mxu0 %v739
      %928 = vmatmul.mubr.bf16.gmra.mrb[0].mxu0 %v588
      %v929 = vpop.f32.mrb[0].mxu0
      %v930 = vadd.f32 %v430, %v929
      %v931 = vpop.f32.mrb[0].mxu0
      %v932 = vpop.f32.mrb[0].mxu0
      %v933 = vadd.f32 %v430, %v932
      %v934 = vpop.f32.mrb[0].mxu0
      %935 = vmatprep.mubr.bf16.mxu0 %v742
      %936 = vmatmul.mubr.bf16.gmra.mrb[0].mxu0 %v590
      %v937 = vpop.f32.mrb[0].mxu0
      %v938 = vadd.f32 %v430, %v937
      %v939 = vpop.f32.mrb[0].mxu0
      %v940 = vpop.f32.mrb[0].mxu0
      %v941 = vadd.f32 %v430, %v940
      %v942 = vpop.f32.mrb[0].mxu0
      %943 = vdwg.mxu0
      %v944 = vpack.c.bf16 %v789, %v786
      %v945 = vpack.c.bf16 %v797, %v794
      %v946 = vpack.c.bf16 %v805, %v802
      %v947 = vpack.c.bf16 %v813, %v810
      %v948 = vpack.c.bf16 %v821, %v818
      %v949 = vpack.c.bf16 %v829, %v826
      %v950 = vpack.c.bf16 %v837, %v834
      %v951 = vpack.c.bf16 %v845, %v842
      %v952 = vpack.c.bf16 %v853, %v850
      %v953 = vpack.c.bf16 %v861, %v858
      %v954 = vpack.c.bf16 %v869, %v866
      %v955 = vpack.c.bf16 %v877, %v874
      %v956 = vpack.c.bf16 %v885, %v882
      %v957 = vpack.c.bf16 %v893, %v890
      %v958 = vpack.c.bf16 %v901, %v898
      %v959 = vpack.c.bf16 %v909, %v906
      %v960 = vpack.c.bf16 %v917, %v914
      %v961 = vpack.c.bf16 %v925, %v922
      %v962 = vpack.c.bf16 %v933, %v930
      %v963 = vpack.c.bf16 %v941, %v938
      %vm964 = vcmask 523264
      %965 = vst.msk [vmem:[#allocation2] sm:$0xff] %vm964, %v944
      %966 = vst.msk [vmem:[#allocation2 + $0x8] sm:$0xff] %vm964, %v945
      %967 = vst.msk [vmem:[#allocation2 + $0x10] sm:$0xff] %vm964, %v946
      %968 = vst.msk [vmem:[#allocation2 + $0x18] sm:$0xff] %vm964, %v947
      %969 = vst.msk [vmem:[#allocation2 + $0x20] sm:$0xff] %vm964, %v948
      %970 = vst.msk [vmem:[#allocation2 + $0x28] sm:$0xff] %vm964, %v949
      %971 = vst.msk [vmem:[#allocation2 + $0x30] sm:$0xff] %vm964, %v950
      %972 = vst.msk [vmem:[#allocation2 + $0x38] sm:$0xff] %vm964, %v951
      %973 = vst.msk [vmem:[#allocation2 + $0x40] sm:$0xff] %vm964, %v952
      %974 = vst.msk [vmem:[#allocation2 + $0x48] sm:$0xff] %vm964, %v953
      %975 = vst.msk [vmem:[#allocation2 + $0x50] sm:$0xff] %vm964, %v954
      %976 = vst.msk [vmem:[#allocation2 + $0x58] sm:$0xff] %vm964, %v955
      %977 = vst.msk [vmem:[#allocation2 + $0x60] sm:$0xff] %vm964, %v956
      %978 = vst.msk [vmem:[#allocation2 + $0x68] sm:$0xff] %vm964, %v957
      %979 = vst.msk [vmem:[#allocation2 + $0x70] sm:$0xff] %vm964, %v958
      %980 = vst.msk [vmem:[#allocation2 + $0x78] sm:$0xff] %vm964, %v959
      %981 = vst.msk [vmem:[#allocation2 + $0x80] sm:$0xff] %vm964, %v960
      %982 = vst.msk [vmem:[#allocation2 + $0x88] sm:$0xff] %vm964, %v961
      %983 = vst.msk [vmem:[#allocation2 + $0x90] sm:$0xff] %vm964, %v962
      %984 = vst.msk [vmem:[#allocation2 + $0x98] sm:$0xff] %vm964, %v963
      %v985 = vld [vmem:[#allocation2] sm:$0xff]
      %v986 = vld [vmem:[#allocation2 + $0x8] sm:$0xff]
      %v987 = vld [vmem:[#allocation2 + $0x10] sm:$0xff]
      %v988 = vld [vmem:[#allocation2 + $0x18] sm:$0xff]
      %v989 = vld [vmem:[#allocation2 + $0x20] sm:$0xff]
      %v990 = vld [vmem:[#allocation2 + $0x28] sm:$0xff]
      %v991 = vld [vmem:[#allocation2 + $0x30] sm:$0xff]
      %v992 = vld [vmem:[#allocation2 + $0x38] sm:$0xff]
      %v993 = vld [vmem:[#allocation2 + $0x40] sm:$0xff]
      %v994 = vld [vmem:[#allocation2 + $0x48] sm:$0xff]
      %v995 = vld [vmem:[#allocation2 + $0x50] sm:$0xff]
      %v996 = vld [vmem:[#allocation2 + $0x58] sm:$0xff]
      %v997 = vld [vmem:[#allocation2 + $0x60] sm:$0xff]
      %v998 = vld [vmem:[#allocation2 + $0x68] sm:$0xff]
      %v999 = vld [vmem:[#allocation2 + $0x70] sm:$0xff]
      %v1000 = vld [vmem:[#allocation2 + $0x78] sm:$0xff]
      %v1001 = vld [vmem:[#allocation2 + $0x80] sm:$0xff]
      %v1002 = vld [vmem:[#allocation2 + $0x88] sm:$0xff]
      %v1003 = vld [vmem:[#allocation2 + $0x90] sm:$0xff]
      %v1004 = vld [vmem:[#allocation2 + $0x98] sm:$0xff]
      %v1005 = vld [vmem:[%s3] sm:$0xf]
      %v1006 = vld [vmem:[%s4] sm:$0xff]
      %1008 = vset.pattern.permute.xlu0 0
      %1009 = vperm.xlu0 %1008, %v1006
      %v1010 = vpop.permute.xlu0 %1009
      %1032 = vrot.lane.b32.xlu0 %v985, 96
      %v1033 = vpop.permute.xlu0 %1032
      %1034 = vrot.lane.b32.xlu0 %v986, 96
      %v1035 = vpop.permute.xlu0 %1034
      %1036 = vrot.lane.b32.xlu0 %v987, 96
      %v1037 = vpop.permute.xlu0 %1036
      %1038 = vrot.lane.b32.xlu0 %v988, 96
      %v1039 = vpop.permute.xlu0 %1038
      %1040 = vrot.lane.b32.xlu0 %v989, 96
      %v1041 = vpop.permute.xlu0 %1040
      %1042 = vrot.lane.b32.xlu0 %v990, 96
      %v1043 = vpop.permute.xlu0 %1042
      %1044 = vrot.lane.b32.xlu0 %v991, 96
      %v1045 = vpop.permute.xlu0 %1044
      %1046 = vrot.lane.b32.xlu0 %v992, 96
      %v1047 = vpop.permute.xlu0 %1046
      %1048 = vrot.lane.b32.xlu0 %v993, 96
      %v1049 = vpop.permute.xlu0 %1048
      %1050 = vrot.lane.b32.xlu0 %v994, 96
      %v1051 = vpop.permute.xlu0 %1050
      %1052 = vrot.lane.b32.xlu0 %v995, 96
      %v1053 = vpop.permute.xlu0 %1052
      %1054 = vrot.lane.b32.xlu0 %v996, 96
      %v1055 = vpop.permute.xlu0 %1054
      %1056 = vrot.lane.b32.xlu0 %v997, 96
      %v1057 = vpop.permute.xlu0 %1056
      %1058 = vrot.lane.b32.xlu0 %v998, 96
      %v1059 = vpop.permute.xlu0 %1058
      %1060 = vrot.lane.b32.xlu0 %v999, 96
      %v1061 = vpop.permute.xlu0 %1060
      %1062 = vrot.lane.b32.xlu0 %v1000, 96
      %v1063 = vpop.permute.xlu0 %1062
      %1064 = vrot.lane.b32.xlu0 %v1001, 96
      %v1065 = vpop.permute.xlu0 %1064
      %1066 = vrot.lane.b32.xlu0 %v1002, 96
      %v1067 = vpop.permute.xlu0 %1066
      %1068 = vrot.lane.b32.xlu0 %v1003, 96
      %v1069 = vpop.permute.xlu0 %1068
      %1070 = vrot.lane.b32.xlu0 %v1004, 96
      %v1071 = vpop.permute.xlu0 %1070
      %vm1072 = vcmask 130048
      %v1074 = vsel %vm1072, %v1005, 0
      %v1077 = vsel %vm1072, %v1033, 0
      %v1080 = vsel %vm1072, %v1035, 0
      %v1083 = vsel %vm1072, %v1037, 0
      %v1086 = vsel %vm1072, %v1039, 0
      %v1089 = vsel %vm1072, %v1041, 0
      %v1092 = vsel %vm1072, %v1043, 0
      %v1095 = vsel %vm1072, %v1045, 0
      %v1098 = vsel %vm1072, %v1047, 0
      %v1101 = vsel %vm1072, %v1049, 0
      %v1104 = vsel %vm1072, %v1051, 0
      %v1107 = vsel %vm1072, %v1053, 0
      %v1110 = vsel %vm1072, %v1055, 0
      %v1113 = vsel %vm1072, %v1057, 0
      %v1116 = vsel %vm1072, %v1059, 0
      %v1119 = vsel %vm1072, %v1061, 0
      %v1122 = vsel %vm1072, %v1063, 0
      %v1125 = vsel %vm1072, %v1065, 0
      %v1128 = vsel %vm1072, %v1067, 0
      %v1131 = vsel %vm1072, %v1069, 0
      %v1134 = vsel %vm1072, %v1071, 0
      %1136 = vmatprep.subr.bf16.mxu0 0
      %1137 = vmatpush1.bf16.xpose.msra.mxu0 %v1077
      %1138 = vmatprep.subr.bf16.mxu0 0
      %1139 = vmatpush1.bf16.xpose.msra.mxu0 %v1080
      %1140 = vmatprep.subr.bf16.mxu0 0
      %1141 = vmatpush1.bf16.xpose.msra.mxu0 %v1083
      %1142 = vmatprep.subr.bf16.mxu0 0
      %1143 = vmatpush1.bf16.xpose.msra.mxu0 %v1086
      %1144 = vmatprep.subr.bf16.mxu0 0
      %1145 = vmatpush1.bf16.xpose.msra.mxu0 %v1089
      %1146 = vmatprep.subr.bf16.mxu0 0
      %1147 = vmatpush1.bf16.xpose.msra.mxu0 %v1092
      %1148 = vmatprep.subr.bf16.mxu0 0
      %1149 = vmatpush1.bf16.xpose.msra.mxu0 %v1095
      %1150 = vmatprep.subr.bf16.mxu0 0
      %1151 = vmatpush1.bf16.xpose.msra.mxu0 %v1098
      %1152 = vmatprep.subr.bf16.mxu0 0
      %1153 = vmatpush1.bf16.xpose.msra.mxu0 %v1101
      %1154 = vmatprep.subr.bf16.mxu0 0
      %1155 = vmatpush1.bf16.xpose.msra.mxu0 %v1104
      %1156 = vmatprep.subr.bf16.mxu0 0
      %1157 = vmatpush1.bf16.xpose.msra.mxu0 %v1107
      %1158 = vmatprep.subr.bf16.mxu0 0
      %1159 = vmatpush1.bf16.xpose.msra.mxu0 %v1110
      %1160 = vmatprep.subr.bf16.mxu0 0
      %1161 = vmatpush1.bf16.xpose.msra.mxu0 %v1113
      %1162 = vmatprep.subr.bf16.mxu0 0
      %1163 = vmatpush1.bf16.xpose.msra.mxu0 %v1116
      %1164 = vmatprep.subr.bf16.mxu0 0
      %1165 = vmatpush1.bf16.xpose.msra.mxu0 %v1119
      %1166 = vmatprep.subr.bf16.mxu0 0
      %1167 = vmatpush1.bf16.xpose.msra.mxu0 %v1122
      %1168 = vmatprep.mubr.bf16.mxu0 0
      %1169 = vmatmul.mubr.bf16.gmra.mrb[0].mxu0 %v1074
      %v1170 = vpop.f32.mrb[0].mxu0
      %v1171 = vadd.f32 %v1010, %v1170
      %v1172 = vpop.f32.mrb[0].mxu0
      %v1173 = vadd.f32 %v1010, %v1172
      %v1174 = vpop.f32.mrb[0].mxu0
      %v1175 = vpop.f32.mrb[0].mxu0
      %1176 = vdwg.mxu0
      %1177 = vmatprep.subr.bf16.mxu0 0
      %1178 = vmatpush1.bf16.xpose.msra.mxu0 %v1125
      %1179 = vmatprep.subr.bf16.mxu0 0
      %1180 = vmatpush1.bf16.xpose.msra.mxu0 %v1128
      %1181 = vmatprep.subr.bf16.mxu0 0
      %1182 = vmatpush1.bf16.xpose.msra.mxu0 %v1131
      %1183 = vmatprep.subr.bf16.mxu0 0
      %1184 = vmatpush1.bf16.xpose.msra.mxu0 %v1134
      %1185 = vmatprep.subr.bf16.mxu0 0
      %1186 = vmatpush1.bf16.xpose.msra.mxu0 0
      %1187 = vmatprep.subr.bf16.mxu0 0
      %1188 = vmatpush1.bf16.xpose.msra.mxu0 0
      %1189 = vmatprep.subr.bf16.mxu0 0
      %1190 = vmatpush1.bf16.xpose.msra.mxu0 0
      %1191 = vmatprep.subr.bf16.mxu0 0
      %1192 = vmatpush1.bf16.xpose.msra.mxu0 0
      %1193 = vmatprep.subr.bf16.mxu0 0
      %1194 = vmatpush1.bf16.xpose.msra.mxu0 0
      %1195 = vmatprep.subr.bf16.mxu0 0
      %1196 = vmatpush1.bf16.xpose.msra.mxu0 0
      %1197 = vmatprep.subr.bf16.mxu0 0
      %1198 = vmatpush1.bf16.xpose.msra.mxu0 0
      %1199 = vmatprep.subr.bf16.mxu0 0
      %1200 = vmatpush1.bf16.xpose.msra.mxu0 0
      %1201 = vmatprep.subr.bf16.mxu0 0
      %1202 = vmatpush1.bf16.xpose.msra.mxu0 0
      %1203 = vmatprep.subr.bf16.mxu0 0
      %1204 = vmatpush1.bf16.xpose.msra.mxu0 0
      %1205 = vmatprep.subr.bf16.mxu0 0
      %1206 = vmatpush1.bf16.xpose.msra.mxu0 0
      %1207 = vmatprep.subr.bf16.mxu0 0
      %1208 = vmatpush1.bf16.xpose.msra.mxu0 0
      %1209 = vmatprep.mubr.bf16.mxu0 0
      %1210 = vmatmul.mubr.bf16.gmra.mrb[0].mxu0 %v1074
      %v1211 = vpop.f32.mrb[0].mxu0
      %v1212 = vadd.f32 %v1010, %v1211
      %v1213 = vpop.f32.mrb[0].mxu0
      %v1214 = vpop.f32.mrb[0].mxu0
      %v1215 = vpop.f32.mrb[0].mxu0
      %1216 = vdwg.mxu0
      %v1217 = vrot.slane %v1171, 4
      %v1218 = vmax.f32 %v1171, %v1217
      %v1219 = vrot.slane %v1218, 2
      %v1220 = vmax.f32 %v1218, %v1219
      %v1221 = vrot.slane %v1220, 1
      %v1222 = vmax.f32 %v1220, %v1221
      %v1223 = vrot.slane %v1173, 4
      %v1224 = vmax.f32 %v1173, %v1223
      %v1225 = vrot.slane %v1224, 2
      %v1226 = vmax.f32 %v1224, %v1225
      %v1227 = vrot.slane %v1226, 1
      %v1228 = vmax.f32 %v1226, %v1227
      %v1229 = vsel %vm964, %v1212, -inf
      %v1230 = vrot.slane %v1229, 4
      %v1231 = vmax.f32 %v1229, %v1230
      %v1232 = vrot.slane %v1231, 2
      %v1233 = vmax.f32 %v1231, %v1232
      %v1234 = vrot.slane %v1233, 1
      %v1235 = vmax.f32 %v1233, %v1234
      %v1236 = vsub.f32 %v1171, %v1222
      %v1237 = vsub.f32 %v1173, %v1228
      %v1238 = vsub.f32 %v1212, %v1235
      %v1239 = vmul.f32 %v1236, 1.442695
      %v1240 = vpow.pop %v1239
      %v1241 = vmul.f32 %v1237, 1.442695
      %v1242 = vpow.pop %v1241
      %v1243 = vmul.f32 %v1238, 1.442695
      %v1244 = vpow.pop %v1243
      %v1245 = vrot.slane %v1240, 4
      %v1246 = vadd.f32 %v1240, %v1245
      %v1247 = vrot.slane %v1246, 2
      %v1248 = vadd.f32 %v1246, %v1247
      %v1249 = vrot.slane %v1248, 1
      %v1250 = vadd.f32 %v1248, %v1249
      %v1251 = vrot.slane %v1242, 4
      %v1252 = vadd.f32 %v1242, %v1251
      %v1253 = vrot.slane %v1252, 2
      %v1254 = vadd.f32 %v1252, %v1253
      %v1255 = vrot.slane %v1254, 1
      %v1256 = vadd.f32 %v1254, %v1255
      %v1257 = vsel %vm964, %v1244, 0.0
      %v1258 = vrot.slane %v1257, 4
      %v1259 = vadd.f32 %v1257, %v1258
      %v1260 = vrot.slane %v1259, 2
      %v1261 = vadd.f32 %v1259, %v1260
      %v1262 = vrot.slane %v1261, 1
      %v1263 = vadd.f32 %v1261, %v1262
      %v1264 = vrcp.pop %v1250
      %v1265 = vrcp.pop %v1256
      %v1266 = vrcp.pop %v1263
      %v1267 = vmul.f32 %v1240, %v1264
      %v1268 = vmul.f32 %v1242, %v1265
      %v1269 = vmul.f32 %v1244, %v1266
      %v1270 = vpack.c.bf16 %v1267, %v1267
      %v1271 = vpack.c.bf16 %v1268, %v1268
      %v1272 = vpack.c.bf16 %v1269, %v1269
      %v1274 = vsel %vm964, %v1272, 0
      %1276 = vmatprep.subr.bf16.mxu0 0
      %1277 = vmatpush1.bf16.msra.mxu0 %v985
      %1278 = vmatprep.subr.bf16.mxu0 0
      %1279 = vmatpush1.bf16.msra.mxu0 %v986
      %1280 = vmatprep.subr.bf16.mxu0 0
      %1281 = vmatpush1.bf16.msra.mxu0 %v987
      %1282 = vmatprep.subr.bf16.mxu0 0
      %1283 = vmatpush1.bf16.msra.mxu0 %v988
      %1284 = vmatprep.subr.bf16.mxu0 0
      %1285 = vmatpush1.bf16.msra.mxu0 %v989
      %1286 = vmatprep.subr.bf16.mxu0 0
      %1287 = vmatpush1.bf16.msra.mxu0 %v990
      %1288 = vmatprep.subr.bf16.mxu0 0
      %1289 = vmatpush1.bf16.msra.mxu0 %v991
      %1290 = vmatprep.subr.bf16.mxu0 0
      %1291 = vmatpush1.bf16.msra.mxu0 %v992
      %1292 = vmatprep.subr.bf16.mxu0 0
      %1293 = vmatpush1.bf16.msra.mxu0 %v993
      %1294 = vmatprep.subr.bf16.mxu0 0
      %1295 = vmatpush1.bf16.msra.mxu0 %v994
      %1296 = vmatprep.subr.bf16.mxu0 0
      %1297 = vmatpush1.bf16.msra.mxu0 %v995
      %1298 = vmatprep.subr.bf16.mxu0 0
      %1299 = vmatpush1.bf16.msra.mxu0 %v996
      %1300 = vmatprep.subr.bf16.mxu0 0
      %1301 = vmatpush1.bf16.msra.mxu0 %v997
      %1302 = vmatprep.subr.bf16.mxu0 0
      %1303 = vmatpush1.bf16.msra.mxu0 %v998
      %1304 = vmatprep.subr.bf16.mxu0 0
      %1305 = vmatpush1.bf16.msra.mxu0 %v999
      %1306 = vmatprep.subr.bf16.mxu0 0
      %1307 = vmatpush1.bf16.msra.mxu0 %v1000
      %1308 = vmatprep.mubr.bf16.mxu0 %v1271
      %1309 = vmatmul.mubr.bf16.gmra.mrb[0].mxu0 %v1270
      %v1310 = vpop.f32.mrb[0].mxu0
      %v1311 = vadd.f32 0.0, %v1310
      %v1312 = vpop.f32.mrb[0].mxu0
      %v1313 = vpop.f32.mrb[0].mxu0
      %v1314 = vpop.f32.mrb[0].mxu0
      %1315 = vdwg.mxu0
      %1316 = vmatprep.subr.bf16.mxu0 0
      %1317 = vmatpush1.bf16.msra.mxu0 %v1001
      %1318 = vmatprep.subr.bf16.mxu0 0
      %1319 = vmatpush1.bf16.msra.mxu0 %v1002
      %1320 = vmatprep.subr.bf16.mxu0 0
      %1321 = vmatpush1.bf16.msra.mxu0 %v1003
      %1322 = vmatprep.subr.bf16.mxu0 0
      %1323 = vmatpush1.bf16.msra.mxu0 %v1004
      %1324 = vmatprep.subr.bf16.mxu0 0
      %1325 = vmatpush1.bf16.msra.mxu0 0
      %1326 = vmatprep.subr.bf16.mxu0 0
      %1327 = vmatpush1.bf16.msra.mxu0 0
      %1328 = vmatprep.subr.bf16.mxu0 0
      %1329 = vmatpush1.bf16.msra.mxu0 0
      %1330 = vmatprep.subr.bf16.mxu0 0
      %1331 = vmatpush1.bf16.msra.mxu0 0
      %1332 = vmatprep.subr.bf16.mxu0 0
      %1333 = vmatpush1.bf16.msra.mxu0 0
      %1334 = vmatprep.subr.bf16.mxu0 0
      %1335 = vmatpush1.bf16.msra.mxu0 0
      %1336 = vmatprep.subr.bf16.mxu0 0
      %1337 = vmatpush1.bf16.msra.mxu0 0
      %1338 = vmatprep.subr.bf16.mxu0 0
      %1339 = vmatpush1.bf16.msra.mxu0 0
      %1340 = vmatprep.subr.bf16.mxu0 0
      %1341 = vmatpush1.bf16.msra.mxu0 0
      %1342 = vmatprep.subr.bf16.mxu0 0
      %1343 = vmatpush1.bf16.msra.mxu0 0
      %1344 = vmatprep.subr.bf16.mxu0 0
      %1345 = vmatpush1.bf16.msra.mxu0 0
      %1346 = vmatprep.subr.bf16.mxu0 0
      %1347 = vmatpush1.bf16.msra.mxu0 0
      %1348 = vmatprep.mubr.bf16.mxu0 0
      %1349 = vmatmul.mubr.bf16.gmra.mrb[0].mxu0 %v1274
      %v1350 = vpop.f32.mrb[0].mxu0
      %v1351 = vadd.f32 %v1311, %v1350
      %v1352 = vpop.f32.mrb[0].mxu0
      %v1353 = vpop.f32.mrb[0].mxu0
      %v1354 = vpop.f32.mrb[0].mxu0
      %1355 = vdwg.mxu0
      %v1356 = vadd.f32 %v1267, %v1268
      %v1357 = vsel %vm964, %v1269, 0.0
      %v1358 = vadd.f32 %v1356, %v1357
      %1359 = vadd.xlane.f32.xlu0 %v1358
      %v1360 = vpop.xlane.xlu0 %1359
      %v1361 = vadd.f32 %v1360, 1e-05
      %v1362 = vrcp.pop %v1361
      %v1363 = vmul.f32 %v1351, %v1362
      %v1364 = vld [vmem:[%s5] sm:$0xff]
      %v1365 = vld [vmem:[%s5 + $0x8] sm:$0xff]
      %v1367 = vsel %vm1072, %v1363, 0
      %1369 = vmatprep.subr.mxu0 0.0
      %1370 = vmatpush1.msra.mxu0 %v1364
      %1371 = vmatprep.subr.mxu0 0.0
      %1372 = vmatpush1.msra.mxu0 %v1365
      %1373 = vmatprep.subr.mxu0 0.0
      %1374 = vmatpush1.msra.mxu0 0.0
      %1375 = vmatprep.subr.mxu0 0.0
      %1376 = vmatpush1.msra.mxu0 0.0
      %1377 = vmatprep.subr.mxu0 0.0
      %1378 = vmatpush1.msra.mxu0 0.0
      %1379 = vmatprep.subr.mxu0 0.0
      %1380 = vmatpush1.msra.mxu0 0.0
      %1381 = vmatprep.subr.mxu0 0.0
      %1382 = vmatpush1.msra.mxu0 0.0
      %1383 = vmatprep.subr.mxu0 0.0
      %1384 = vmatpush1.msra.mxu0 0.0
      %1385 = vmatprep.subr.mxu0 0.0
      %1386 = vmatpush1.msra.mxu0 0.0
      %1387 = vmatprep.subr.mxu0 0.0
      %1388 = vmatpush1.msra.mxu0 0.0
      %1389 = vmatprep.subr.mxu0 0.0
      %1390 = vmatpush1.msra.mxu0 0.0
      %1391 = vmatprep.subr.mxu0 0.0
      %1392 = vmatpush1.msra.mxu0 0.0
      %1393 = vmatprep.subr.mxu0 0.0
      %1394 = vmatpush1.msra.mxu0 0.0
      %1395 = vmatprep.subr.mxu0 0.0
      %1396 = vmatpush1.msra.mxu0 0.0
      %1397 = vmatprep.subr.mxu0 0.0
      %1398 = vmatpush1.msra.mxu0 0.0
      %1399 = vmatprep.subr.mxu0 0.0
      %1400 = vmatpush1.msra.mxu0 0.0
      %1401 = vmatprep.subr.mxu0 0.0
      %1402 = vmatpush1.msra.mxu0 0.0
      %1403 = vmatprep.subr.mxu0 0.0
      %1404 = vmatpush1.msra.mxu0 0.0
      %1405 = vmatprep.subr.mxu0 0.0
      %1406 = vmatpush1.msra.mxu0 0.0
      %1407 = vmatprep.subr.mxu0 0.0
      %1408 = vmatpush1.msra.mxu0 0.0
      %1409 = vmatprep.subr.mxu0 0.0
      %1410 = vmatpush1.msra.mxu0 0.0
      %1411 = vmatprep.subr.mxu0 0.0
      %1412 = vmatpush1.msra.mxu0 0.0
      %1413 = vmatprep.subr.mxu0 0.0
      %1414 = vmatpush1.msra.mxu0 0.0
      %1415 = vmatprep.subr.mxu0 0.0
      %1416 = vmatpush1.msra.mxu0 0.0
      %1417 = vmatprep.subr.mxu0 0.0
      %1418 = vmatpush1.msra.mxu0 0.0
      %1419 = vmatprep.subr.mxu0 0.0
      %1420 = vmatpush1.msra.mxu0 0.0
      %1421 = vmatprep.subr.mxu0 0.0
      %1422 = vmatpush1.msra.mxu0 0.0
      %1423 = vmatprep.subr.mxu0 0.0
      %1424 = vmatpush1.msra.mxu0 0.0
      %1425 = vmatprep.subr.mxu0 0.0
      %1426 = vmatpush1.msra.mxu0 0.0
      %1427 = vmatprep.subr.mxu0 0.0
      %1428 = vmatpush1.msra.mxu0 0.0
      %1429 = vmatprep.subr.mxu0 0.0
      %1430 = vmatpush1.msra.mxu0 0.0
      %1431 = vmatprep.subr.mxu0 0.0
      %1432 = vmatpush1.msra.mxu0 0.0
      %1433 = vmatprep.mubr.f32.mxu0 0.0
      %1434 = vmatmul.mubr.f32.gmra.mrb[0].mxu0 %v1367
      %v1435 = vpop.f32.mrb[0].mxu0
      %v1436 = vadd.f32 0.0, %v1435
      %v1437 = vpop.f32.mrb[0].mxu0
      %1438 = vdwg.mxu0
      %v1439 = vld [vmem:[%s6] sm:$0xff]
      %v1440 = vld [vmem:[%s6 + $0x8] sm:$0xff]
      %1441 = vmatprep.subr.mxu0 0.0
      %1442 = vmatpush1.msra.mxu0 %v1439
      %1443 = vmatprep.subr.mxu0 0.0
      %1444 = vmatpush1.msra.mxu0 %v1440
      %1445 = vmatprep.subr.mxu0 0.0
      %1446 = vmatpush1.msra.mxu0 0.0
      %1447 = vmatprep.subr.mxu0 0.0
      %1448 = vmatpush1.msra.mxu0 0.0
      %1449 = vmatprep.subr.mxu0 0.0
      %1450 = vmatpush1.msra.mxu0 0.0
      %1451 = vmatprep.subr.mxu0 0.0
      %1452 = vmatpush1.msra.mxu0 0.0
      %1453 = vmatprep.subr.mxu0 0.0
      %1454 = vmatpush1.msra.mxu0 0.0
      %1455 = vmatprep.subr.mxu0 0.0
      %1456 = vmatpush1.msra.mxu0 0.0
      %1457 = vmatprep.subr.mxu0 0.0
      %1458 = vmatpush1.msra.mxu0 0.0
      %1459 = vmatprep.subr.mxu0 0.0
      %1460 = vmatpush1.msra.mxu0 0.0
      %1461 = vmatprep.subr.mxu0 0.0
      %1462 = vmatpush1.msra.mxu0 0.0
      %1463 = vmatprep.subr.mxu0 0.0
      %1464 = vmatpush1.msra.mxu0 0.0
      %1465 = vmatprep.subr.mxu0 0.0
      %1466 = vmatpush1.msra.mxu0 0.0
      %1467 = vmatprep.subr.mxu0 0.0
      %1468 = vmatpush1.msra.mxu0 0.0
      %1469 = vmatprep.subr.mxu0 0.0
      %1470 = vmatpush1.msra.mxu0 0.0
      %1471 = vmatprep.subr.mxu0 0.0
      %1472 = vmatpush1.msra.mxu0 0.0
      %1473 = vmatprep.subr.mxu0 0.0
      %1474 = vmatpush1.msra.mxu0 0.0
      %1475 = vmatprep.subr.mxu0 0.0
      %1476 = vmatpush1.msra.mxu0 0.0
      %1477 = vmatprep.subr.mxu0 0.0
      %1478 = vmatpush1.msra.mxu0 0.0
      %1479 = vmatprep.subr.mxu0 0.0
      %1480 = vmatpush1.msra.mxu0 0.0
      %1481 = vmatprep.subr.mxu0 0.0
      %1482 = vmatpush1.msra.mxu0 0.0
      %1483 = vmatprep.subr.mxu0 0.0
      %1484 = vmatpush1.msra.mxu0 0.0
      %1485 = vmatprep.subr.mxu0 0.0
      %1486 = vmatpush1.msra.mxu0 0.0
      %1487 = vmatprep.subr.mxu0 0.0
      %1488 = vmatpush1.msra.mxu0 0.0
      %1489 = vmatprep.subr.mxu0 0.0
      %1490 = vmatpush1.msra.mxu0 0.0
      %1491 = vmatprep.subr.mxu0 0.0
      %1492 = vmatpush1.msra.mxu0 0.0
      %1493 = vmatprep.subr.mxu0 0.0
      %1494 = vmatpush1.msra.mxu0 0.0
      %1495 = vmatprep.subr.mxu0 0.0
      %1496 = vmatpush1.msra.mxu0 0.0
      %1497 = vmatprep.subr.mxu0 0.0
      %1498 = vmatpush1.msra.mxu0 0.0
      %1499 = vmatprep.subr.mxu0 0.0
      %1500 = vmatpush1.msra.mxu0 0.0
      %1501 = vmatprep.subr.mxu0 0.0
      %1502 = vmatpush1.msra.mxu0 0.0
      %1503 = vmatprep.subr.mxu0 0.0
      %1504 = vmatpush1.msra.mxu0 0.0
      %1505 = vmatprep.mubr.f32.mxu0 0.0
      %1506 = vmatmul.mubr.f32.gmra.mrb[0].mxu0 %v1367
      %v1507 = vpop.f32.mrb[0].mxu0
      %v1508 = vadd.f32 0.0, %v1507
      %v1509 = vpop.f32.mrb[0].mxu0
      %1510 = vdwg.mxu0
      %v1511 = vld [vmem:[%s7] sm:$0xff]
      %v1512 = vld [vmem:[%s7 + $0x8] sm:$0xff]
      %1513 = vmatprep.subr.mxu0 0.0
      %1514 = vmatpush1.msra.mxu0 %v1511
      %1515 = vmatprep.subr.mxu0 0.0
      %1516 = vmatpush1.msra.mxu0 %v1512
      %1517 = vmatprep.subr.mxu0 0.0
      %1518 = vmatpush1.msra.mxu0 0.0
      %1519 = vmatprep.subr.mxu0 0.0
      %1520 = vmatpush1.msra.mxu0 0.0
      %1521 = vmatprep.subr.mxu0 0.0
      %1522 = vmatpush1.msra.mxu0 0.0
      %1523 = vmatprep.subr.mxu0 0.0
      %1524 = vmatpush1.msra.mxu0 0.0
      %1525 = vmatprep.subr.mxu0 0.0
      %1526 = vmatpush1.msra.mxu0 0.0
      %1527 = vmatprep.subr.mxu0 0.0
      %1528 = vmatpush1.msra.mxu0 0.0
      %1529 = vmatprep.subr.mxu0 0.0
      %1530 = vmatpush1.msra.mxu0 0.0
      %1531 = vmatprep.subr.mxu0 0.0
      %1532 = vmatpush1.msra.mxu0 0.0
      %1533 = vmatprep.subr.mxu0 0.0
      %1534 = vmatpush1.msra.mxu0 0.0
      %1535 = vmatprep.subr.mxu0 0.0
      %1536 = vmatpush1.msra.mxu0 0.0
      %1537 = vmatprep.subr.mxu0 0.0
      %1538 = vmatpush1.msra.mxu0 0.0
      %1539 = vmatprep.subr.mxu0 0.0
      %1540 = vmatpush1.msra.mxu0 0.0
      %1541 = vmatprep.subr.mxu0 0.0
      %1542 = vmatpush1.msra.mxu0 0.0
      %1543 = vmatprep.subr.mxu0 0.0
      %1544 = vmatpush1.msra.mxu0 0.0
      %1545 = vmatprep.subr.mxu0 0.0
      %1546 = vmatpush1.msra.mxu0 0.0
      %1547 = vmatprep.subr.mxu0 0.0
      %1548 = vmatpush1.msra.mxu0 0.0
      %1549 = vmatprep.subr.mxu0 0.0
      %1550 = vmatpush1.msra.mxu0 0.0
      %1551 = vmatprep.subr.mxu0 0.0
      %1552 = vmatpush1.msra.mxu0 0.0
      %1553 = vmatprep.subr.mxu0 0.0
      %1554 = vmatpush1.msra.mxu0 0.0
      %1555 = vmatprep.subr.mxu0 0.0
      %1556 = vmatpush1.msra.mxu0 0.0
      %1557 = vmatprep.subr.mxu0 0.0
      %1558 = vmatpush1.msra.mxu0 0.0
      %1559 = vmatprep.subr.mxu0 0.0
      %1560 = vmatpush1.msra.mxu0 0.0
      %1561 = vmatprep.subr.mxu0 0.0
      %1562 = vmatpush1.msra.mxu0 0.0
      %1563 = vmatprep.subr.mxu0 0.0
      %1564 = vmatpush1.msra.mxu0 0.0
      %1565 = vmatprep.subr.mxu0 0.0
      %1566 = vmatpush1.msra.mxu0 0.0
      %1567 = vmatprep.subr.mxu0 0.0
      %1568 = vmatpush1.msra.mxu0 0.0
      %1569 = vmatprep.subr.mxu0 0.0
      %1570 = vmatpush1.msra.mxu0 0.0
      %1571 = vmatprep.subr.mxu0 0.0
      %1572 = vmatpush1.msra.mxu0 0.0
      %1573 = vmatprep.subr.mxu0 0.0
      %1574 = vmatpush1.msra.mxu0 0.0
      %1575 = vmatprep.subr.mxu0 0.0
      %1576 = vmatpush1.msra.mxu0 0.0
      %1577 = vmatprep.mubr.f32.mxu0 0.0
      %1578 = vmatmul.mubr.f32.gmra.mrb[0].mxu0 %v1367
      %v1579 = vpop.f32.mrb[0].mxu0
      %v1580 = vadd.f32 0.0, %v1579
      %v1581 = vpop.f32.mrb[0].mxu0
      %1582 = vdwg.mxu0
      %v1584 = vsel %vm1072, %v1436, 0
      %v1587 = vsel %vm1072, %v1508, 0
      %1589 = vmatprep.subr.mxu0 0.0
      %1590 = vmatpush1.xpose.msra.mxu0 %v1587
      %1591 = vmatprep.subr.mxu0 0.0
      %1592 = vmatpush1.xpose.msra.mxu0 0.0
      %1593 = vmatprep.subr.mxu0 0.0
      %1594 = vmatpush1.xpose.msra.mxu0 0.0
      %1595 = vmatprep.subr.mxu0 0.0
      %1596 = vmatpush1.xpose.msra.mxu0 0.0
      %1597 = vmatprep.subr.mxu0 0.0
      %1598 = vmatpush1.xpose.msra.mxu0 0.0
      %1599 = vmatprep.subr.mxu0 0.0
      %1600 = vmatpush1.xpose.msra.mxu0 0.0
      %1601 = vmatprep.subr.mxu0 0.0
      %1602 = vmatpush1.xpose.msra.mxu0 0.0
      %1603 = vmatprep.subr.mxu0 0.0
      %1604 = vmatpush1.xpose.msra.mxu0 0.0
      %1605 = vmatprep.subr.mxu0 0.0
      %1606 = vmatpush1.xpose.msra.mxu0 0.0
      %1607 = vmatprep.subr.mxu0 0.0
      %1608 = vmatpush1.xpose.msra.mxu0 0.0
      %1609 = vmatprep.subr.mxu0 0.0
      %1610 = vmatpush1.xpose.msra.mxu0 0.0
      %1611 = vmatprep.subr.mxu0 0.0
      %1612 = vmatpush1.xpose.msra.mxu0 0.0
      %1613 = vmatprep.subr.mxu0 0.0
      %1614 = vmatpush1.xpose.msra.mxu0 0.0
      %1615 = vmatprep.subr.mxu0 0.0
      %1616 = vmatpush1.xpose.msra.mxu0 0.0
      %1617 = vmatprep.subr.mxu0 0.0
      %1618 = vmatpush1.xpose.msra.mxu0 0.0
      %1619 = vmatprep.subr.mxu0 0.0
      %1620 = vmatpush1.xpose.msra.mxu0 0.0
      %1621 = vmatprep.subr.mxu0 0.0
      %1622 = vmatpush1.xpose.msra.mxu0 0.0
      %1623 = vmatprep.subr.mxu0 0.0
      %1624 = vmatpush1.xpose.msra.mxu0 0.0
      %1625 = vmatprep.subr.mxu0 0.0
      %1626 = vmatpush1.xpose.msra.mxu0 0.0
      %1627 = vmatprep.subr.mxu0 0.0
      %1628 = vmatpush1.xpose.msra.mxu0 0.0
      %1629 = vmatprep.subr.mxu0 0.0
      %1630 = vmatpush1.xpose.msra.mxu0 0.0
      %1631 = vmatprep.subr.mxu0 0.0
      %1632 = vmatpush1.xpose.msra.mxu0 0.0
      %1633 = vmatprep.subr.mxu0 0.0
      %1634 = vmatpush1.xpose.msra.mxu0 0.0
      %1635 = vmatprep.subr.mxu0 0.0
      %1636 = vmatpush1.xpose.msra.mxu0 0.0
      %1637 = vmatprep.subr.mxu0 0.0
      %1638 = vmatpush1.xpose.msra.mxu0 0.0
      %1639 = vmatprep.subr.mxu0 0.0
      %1640 = vmatpush1.xpose.msra.mxu0 0.0
      %1641 = vmatprep.subr.mxu0 0.0
      %1642 = vmatpush1.xpose.msra.mxu0 0.0
      %1643 = vmatprep.subr.mxu0 0.0
      %1644 = vmatpush1.xpose.msra.mxu0 0.0
      %1645 = vmatprep.subr.mxu0 0.0
      %1646 = vmatpush1.xpose.msra.mxu0 0.0
      %1647 = vmatprep.subr.mxu0 0.0
      %1648 = vmatpush1.xpose.msra.mxu0 0.0
      %1649 = vmatprep.subr.mxu0 0.0
      %1650 = vmatpush1.xpose.msra.mxu0 0.0
      %1651 = vmatprep.subr.mxu0 0.0
      %1652 = vmatpush1.xpose.msra.mxu0 0.0
      %1653 = vmatprep.mubr.f32.mxu0 0.0
      %1654 = vmatmul.mubr.f32.gmra.mrb[0].mxu0 %v1584
      %v1655 = vpop.f32.mrb[0].mxu0
      %v1656 = vadd.f32 0.0, %v1655
      %v1657 = vpop.f32.mrb[0].mxu0
      %1658 = vdwg.mxu0
      %v1659 = vmul.f32 %v1656, 0.25
      %vm1660 = vcmask 64512
      %v1661 = vsel %vm1660, %v1659, -inf
      %1662 = vmax.xlane.f32.xlu0 %v1661
      %v1663 = vpop.xlane.xlu0 %1662
      %v1664 = vsub.f32 %v1659, %v1663
      %v1665 = vmul.f32 %v1664, 1.442695
      %v1666 = vpow.pop %v1665
      %v1667 = vsel %vm1660, %v1666, 0.0
      %1668 = vadd.xlane.f32.xlu0 %v1667
      %v1669 = vpop.xlane.xlu0 %1668
      %v1670 = vrcp.pop %v1669
      %v1671 = vmul.f32 %v1666, %v1670
      %v1673 = vsel %vm1660, %v1671, 0
      %1675 = vmatprep.subr.mxu0 0.0
      %1676 = vmatpush1.msra.mxu0 %v1580
      %1677 = vmatprep.subr.mxu0 0.0
      %1678 = vmatpush1.msra.mxu0 0.0
      %1679 = vmatprep.subr.mxu0 0.0
      %1680 = vmatpush1.msra.mxu0 0.0
      %1681 = vmatprep.subr.mxu0 0.0
      %1682 = vmatpush1.msra.mxu0 0.0
      %1683 = vmatprep.subr.mxu0 0.0
      %1684 = vmatpush1.msra.mxu0 0.0
      %1685 = vmatprep.subr.mxu0 0.0
      %1686 = vmatpush1.msra.mxu0 0.0
      %1687 = vmatprep.subr.mxu0 0.0
      %1688 = vmatpush1.msra.mxu0 0.0
      %1689 = vmatprep.subr.mxu0 0.0
      %1690 = vmatpush1.msra.mxu0 0.0
      %1691 = vmatprep.subr.mxu0 0.0
      %1692 = vmatpush1.msra.mxu0 0.0
      %1693 = vmatprep.subr.mxu0 0.0
      %1694 = vmatpush1.msra.mxu0 0.0
      %1695 = vmatprep.subr.mxu0 0.0
      %1696 = vmatpush1.msra.mxu0 0.0
      %1697 = vmatprep.subr.mxu0 0.0
      %1698 = vmatpush1.msra.mxu0 0.0
      %1699 = vmatprep.subr.mxu0 0.0
      %1700 = vmatpush1.msra.mxu0 0.0
      %1701 = vmatprep.subr.mxu0 0.0
      %1702 = vmatpush1.msra.mxu0 0.0
      %1703 = vmatprep.subr.mxu0 0.0
      %1704 = vmatpush1.msra.mxu0 0.0
      %1705 = vmatprep.subr.mxu0 0.0
      %1706 = vmatpush1.msra.mxu0 0.0
      %1707 = vmatprep.subr.mxu0 0.0
      %1708 = vmatpush1.msra.mxu0 0.0
      %1709 = vmatprep.subr.mxu0 0.0
      %1710 = vmatpush1.msra.mxu0 0.0
      %1711 = vmatprep.subr.mxu0 0.0
      %1712 = vmatpush1.msra.mxu0 0.0
      %1713 = vmatprep.subr.mxu0 0.0
      %1714 = vmatpush1.msra.mxu0 0.0
      %1715 = vmatprep.subr.mxu0 0.0
      %1716 = vmatpush1.msra.mxu0 0.0
      %1717 = vmatprep.subr.mxu0 0.0
      %1718 = vmatpush1.msra.mxu0 0.0
      %1719 = vmatprep.subr.mxu0 0.0
      %1720 = vmatpush1.msra.mxu0 0.0
      %1721 = vmatprep.subr.mxu0 0.0
      %1722 = vmatpush1.msra.mxu0 0.0
      %1723 = vmatprep.subr.mxu0 0.0
      %1724 = vmatpush1.msra.mxu0 0.0
      %1725 = vmatprep.subr.mxu0 0.0
      %1726 = vmatpush1.msra.mxu0 0.0
      %1727 = vmatprep.subr.mxu0 0.0
      %1728 = vmatpush1.msra.mxu0 0.0
      %1729 = vmatprep.subr.mxu0 0.0
      %1730 = vmatpush1.msra.mxu0 0.0
      %1731 = vmatprep.subr.mxu0 0.0
      %1732 = vmatpush1.msra.mxu0 0.0
      %1733 = vmatprep.subr.mxu0 0.0
      %1734 = vmatpush1.msra.mxu0 0.0
      %1735 = vmatprep.subr.mxu0 0.0
      %1736 = vmatpush1.msra.mxu0 0.0
      %1737 = vmatprep.subr.mxu0 0.0
      %1738 = vmatpush1.msra.mxu0 0.0
      %1739 = vmatprep.mubr.f32.mxu0 0.0
      %1740 = vmatmul.mubr.f32.gmra.mrb[0].mxu0 %v1673
      %v1741 = vpop.f32.mrb[0].mxu0
      %v1742 = vadd.f32 0.0, %v1741
      %v1743 = vpop.f32.mrb[0].mxu0
      %1744 = vdwg.mxu0
      %v1745 = vld [vmem:[%s8] sm:$0x1]
      %v1747 = vsel %vm1072, %v1745, 0
      %v1750 = vsel %vm1072, %v1742, 0
      %1752 = vmatprep.subr.mxu0 0.0
      %1753 = vmatpush1.xpose.msra.mxu0 %v1750
      %1754 = vmatprep.subr.mxu0 0.0
      %1755 = vmatpush1.xpose.msra.mxu0 0.0
      %1756 = vmatprep.subr.mxu0 0.0
      %1757 = vmatpush1.xpose.msra.mxu0 0.0
      %1758 = vmatprep.subr.mxu0 0.0
      %1759 = vmatpush1.xpose.msra.mxu0 0.0
      %1760 = vmatprep.subr.mxu0 0.0
      %1761 = vmatpush1.xpose.msra.mxu0 0.0
      %1762 = vmatprep.subr.mxu0 0.0
      %1763 = vmatpush1.xpose.msra.mxu0 0.0
      %1764 = vmatprep.subr.mxu0 0.0
      %1765 = vmatpush1.xpose.msra.mxu0 0.0
      %1766 = vmatprep.subr.mxu0 0.0
      %1767 = vmatpush1.xpose.msra.mxu0 0.0
      %1768 = vmatprep.subr.mxu0 0.0
      %1769 = vmatpush1.xpose.msra.mxu0 0.0
      %1770 = vmatprep.subr.mxu0 0.0
      %1771 = vmatpush1.xpose.msra.mxu0 0.0
      %1772 = vmatprep.subr.mxu0 0.0
      %1773 = vmatpush1.xpose.msra.mxu0 0.0
      %1774 = vmatprep.subr.mxu0 0.0
      %1775 = vmatpush1.xpose.msra.mxu0 0.0
      %1776 = vmatprep.subr.mxu0 0.0
      %1777 = vmatpush1.xpose.msra.mxu0 0.0
      %1778 = vmatprep.subr.mxu0 0.0
      %1779 = vmatpush1.xpose.msra.mxu0 0.0
      %1780 = vmatprep.subr.mxu0 0.0
      %1781 = vmatpush1.xpose.msra.mxu0 0.0
      %1782 = vmatprep.subr.mxu0 0.0
      %1783 = vmatpush1.xpose.msra.mxu0 0.0
      %1784 = vmatprep.subr.mxu0 0.0
      %1785 = vmatpush1.xpose.msra.mxu0 0.0
      %1786 = vmatprep.subr.mxu0 0.0
      %1787 = vmatpush1.xpose.msra.mxu0 0.0
      %1788 = vmatprep.subr.mxu0 0.0
      %1789 = vmatpush1.xpose.msra.mxu0 0.0
      %1790 = vmatprep.subr.mxu0 0.0
      %1791 = vmatpush1.xpose.msra.mxu0 0.0
      %1792 = vmatprep.subr.mxu0 0.0
      %1793 = vmatpush1.xpose.msra.mxu0 0.0
      %1794 = vmatprep.subr.mxu0 0.0
      %1795 = vmatpush1.xpose.msra.mxu0 0.0
      %1796 = vmatprep.subr.mxu0 0.0
      %1797 = vmatpush1.xpose.msra.mxu0 0.0
      %1798 = vmatprep.subr.mxu0 0.0
      %1799 = vmatpush1.xpose.msra.mxu0 0.0
      %1800 = vmatprep.subr.mxu0 0.0
      %1801 = vmatpush1.xpose.msra.mxu0 0.0
      %1802 = vmatprep.subr.mxu0 0.0
      %1803 = vmatpush1.xpose.msra.mxu0 0.0
      %1804 = vmatprep.subr.mxu0 0.0
      %1805 = vmatpush1.xpose.msra.mxu0 0.0
      %1806 = vmatprep.subr.mxu0 0.0
      %1807 = vmatpush1.xpose.msra.mxu0 0.0
      %1808 = vmatprep.subr.mxu0 0.0
      %1809 = vmatpush1.xpose.msra.mxu0 0.0
      %1810 = vmatprep.subr.mxu0 0.0
      %1811 = vmatpush1.xpose.msra.mxu0 0.0
      %1812 = vmatprep.subr.mxu0 0.0
      %1813 = vmatpush1.xpose.msra.mxu0 0.0
      %1814 = vmatprep.subr.mxu0 0.0
      %1815 = vmatpush1.xpose.msra.mxu0 0.0
      %1816 = vmatprep.mubr.f32.mxu0 0.0
      %1817 = vmatmul.mubr.f32.gmra.mrb[0].mxu0 %v1747
      %v1818 = vpop.f32.mrb[0].mxu0
      %v1819 = vadd.f32 0.0, %v1818
      %v1820 = vpop.f32.mrb[0].mxu0
      %1821 = vdwg.mxu0
      %s1822 = scalar_lea.vmem %s3, 4
      %v1823 = vld [vmem:[%s1822] sm:$0xf]
      %s1824 = scalar_lea.vmem %s4, 8
      %v1825 = vld [vmem:[%s1824] sm:$0xff]
      %1827 = vset.pattern.permute.xlu0 0
      %1828 = vperm.xlu0 %1827, %v1825
      %v1829 = vpop.permute.xlu0 %1828
      %1831 = vrot.lane.b32.xlu0 %v985, 80
      %v1832 = vpop.permute.xlu0 %1831
      %1833 = vrot.lane.b32.xlu0 %v986, 80
      %v1834 = vpop.permute.xlu0 %1833
      %1835 = vrot.lane.b32.xlu0 %v987, 80
      %v1836 = vpop.permute.xlu0 %1835
      %1837 = vrot.lane.b32.xlu0 %v988, 80
      %v1838 = vpop.permute.xlu0 %1837
      %1839 = vrot.lane.b32.xlu0 %v989, 80
      %v1840 = vpop.permute.xlu0 %1839
      %1841 = vrot.lane.b32.xlu0 %v990, 80
      %v1842 = vpop.permute.xlu0 %1841
      %1843 = vrot.lane.b32.xlu0 %v991, 80
      %v1844 = vpop.permute.xlu0 %1843
      %1845 = vrot.lane.b32.xlu0 %v992, 80
      %v1846 = vpop.permute.xlu0 %1845
      %1847 = vrot.lane.b32.xlu0 %v993, 80
      %v1848 = vpop.permute.xlu0 %1847
      %1849 = vrot.lane.b32.xlu0 %v994, 80
      %v1850 = vpop.permute.xlu0 %1849
      %1851 = vrot.lane.b32.xlu0 %v995, 80
      %v1852 = vpop.permute.xlu0 %1851
      %1853 = vrot.lane.b32.xlu0 %v996, 80
      %v1854 = vpop.permute.xlu0 %1853
      %1855 = vrot.lane.b32.xlu0 %v997, 80
      %v1856 = vpop.permute.xlu0 %1855
      %1857 = vrot.lane.b32.xlu0 %v998, 80
      %v1858 = vpop.permute.xlu0 %1857
      %1859 = vrot.lane.b32.xlu0 %v999, 80
      %v1860 = vpop.permute.xlu0 %1859
      %1861 = vrot.lane.b32.xlu0 %v1000, 80
      %v1862 = vpop.permute.xlu0 %1861
      %1863 = vrot.lane.b32.xlu0 %v1001, 80
      %v1864 = vpop.permute.xlu0 %1863
      %1865 = vrot.lane.b32.xlu0 %v1002, 80
      %v1866 = vpop.permute.xlu0 %1865
      %1867 = vrot.lane.b32.xlu0 %v1003, 80
      %v1868 = vpop.permute.xlu0 %1867
      %1869 = vrot.lane.b32.xlu0 %v1004, 80
      %v1870 = vpop.permute.xlu0 %1869
      %v1872 = vsel %vm1072, %v1823, 0
      %v1875 = vsel %vm1072, %v1832, 0
      %v1878 = vsel %vm1072, %v1834, 0
      %v1881 = vsel %vm1072, %v1836, 0
      %v1884 = vsel %vm1072, %v1838, 0
      %v1887 = vsel %vm1072, %v1840, 0
      %v1890 = vsel %vm1072, %v1842, 0
      %v1893 = vsel %vm1072, %v1844, 0
      %v1896 = vsel %vm1072, %v1846, 0
      %v1899 = vsel %vm1072, %v1848, 0
      %v1902 = vsel %vm1072, %v1850, 0
      %v1905 = vsel %vm1072, %v1852, 0
      %v1908 = vsel %vm1072, %v1854, 0
      %v1911 = vsel %vm1072, %v1856, 0
      %v1914 = vsel %vm1072, %v1858, 0
      %v1917 = vsel %vm1072, %v1860, 0
      %v1920 = vsel %vm1072, %v1862, 0
      %v1923 = vsel %vm1072, %v1864, 0
      %v1926 = vsel %vm1072, %v1866, 0
      %v1929 = vsel %vm1072, %v1868, 0
      %v1932 = vsel %vm1072, %v1870, 0
      %1934 = vmatprep.subr.bf16.mxu0 0
      %1935 = vmatpush1.bf16.xpose.msra.mxu0 %v1875
      %1936 = vmatprep.subr.bf16.mxu0 0
      %1937 = vmatpush1.bf16.xpose.msra.mxu0 %v1878
      %1938 = vmatprep.subr.bf16.mxu0 0
      %1939 = vmatpush1.bf16.xpose.msra.mxu0 %v1881
      %1940 = vmatprep.subr.bf16.mxu0 0
      %1941 = vmatpush1.bf16.xpose.msra.mxu0 %v1884
      %1942 = vmatprep.subr.bf16.mxu0 0
      %1943 = vmatpush1.bf16.xpose.msra.mxu0 %v1887
      %1944 = vmatprep.subr.bf16.mxu0 0
      %1945 = vmatpush1.bf16.xpose.msra.mxu0 %v1890
      %1946 = vmatprep.subr.bf16.mxu0 0
      %1947 = vmatpush1.bf16.xpose.msra.mxu0 %v1893
      %1948 = vmatprep.subr.bf16.mxu0 0
      %1949 = vmatpush1.bf16.xpose.msra.mxu0 %v1896
      %1950 = vmatprep.subr.bf16.mxu0 0
      %1951 = vmatpush1.bf16.xpose.msra.mxu0 %v1899
      %1952 = vmatprep.subr.bf16.mxu0 0
      %1953 = vmatpush1.bf16.xpose.msra.mxu0 %v1902
      %1954 = vmatprep.subr.bf16.mxu0 0
      %1955 = vmatpush1.bf16.xpose.msra.mxu0 %v1905
      %1956 = vmatprep.subr.bf16.mxu0 0
      %1957 = vmatpush1.bf16.xpose.msra.mxu0 %v1908
      %1958 = vmatprep.subr.bf16.mxu0 0
      %1959 = vmatpush1.bf16.xpose.msra.mxu0 %v1911
      %1960 = vmatprep.subr.bf16.mxu0 0
      %1961 = vmatpush1.bf16.xpose.msra.mxu0 %v1914
      %1962 = vmatprep.subr.bf16.mxu0 0
      %1963 = vmatpush1.bf16.xpose.msra.mxu0 %v1917
      %1964 = vmatprep.subr.bf16.mxu0 0
      %1965 = vmatpush1.bf16.xpose.msra.mxu0 %v1920
      %1966 = vmatprep.mubr.bf16.mxu0 0
      %1967 = vmatmul.mubr.bf16.gmra.mrb[0].mxu0 %v1872
      %v1968 = vpop.f32.mrb[0].mxu0
      %v1969 = vadd.f32 %v1829, %v1968
      %v1970 = vpop.f32.mrb[0].mxu0
      %v1971 = vadd.f32 %v1829, %v1970
      %v1972 = vpop.f32.mrb[0].mxu0
      %v1973 = vpop.f32.mrb[0].mxu0
      %1974 = vdwg.mxu0
      %1975 = vmatprep.subr.bf16.mxu0 0
      %1976 = vmatpush1.bf16.xpose.msra.mxu0 %v1923
      %1977 = vmatprep.subr.bf16.mxu0 0
      %1978 = vmatpush1.bf16.xpose.msra.mxu0 %v1926
      %1979 = vmatprep.subr.bf16.mxu0 0
      %1980 = vmatpush1.bf16.xpose.msra.mxu0 %v1929
      %1981 = vmatprep.subr.bf16.mxu0 0
      %1982 = vmatpush1.bf16.xpose.msra.mxu0 %v1932
      %1983 = vmatprep.subr.bf16.mxu0 0
      %1984 = vmatpush1.bf16.xpose.msra.mxu0 0
      %1985 = vmatprep.subr.bf16.mxu0 0
      %1986 = vmatpush1.bf16.xpose.msra.mxu0 0
      %1987 = vmatprep.subr.bf16.mxu0 0
      %1988 = vmatpush1.bf16.xpose.msra.mxu0 0
      %1989 = vmatprep.subr.bf16.mxu0 0
      %1990 = vmatpush1.bf16.xpose.msra.mxu0 0
      %1991 = vmatprep.subr.bf16.mxu0 0
      %1992 = vmatpush1.bf16.xpose.msra.mxu0 0
      %1993 = vmatprep.subr.bf16.mxu0 0
      %1994 = vmatpush1.bf16.xpose.msra.mxu0 0
      %1995 = vmatprep.subr.bf16.mxu0 0
      %1996 = vmatpush1.bf16.xpose.msra.mxu0 0
      %1997 = vmatprep.subr.bf16.mxu0 0
      %1998 = vmatpush1.bf16.xpose.msra.mxu0 0
      %1999 = vmatprep.subr.bf16.mxu0 0
      %2000 = vmatpush1.bf16.xpose.msra.mxu0 0
      %2001 = vmatprep.subr.bf16.mxu0 0
      %2002 = vmatpush1.bf16.xpose.msra.mxu0 0
      %2003 = vmatprep.subr.bf16.mxu0 0
      %2004 = vmatpush1.bf16.xpose.msra.mxu0 0
      %2005 = vmatprep.subr.bf16.mxu0 0
      %2006 = vmatpush1.bf16.xpose.msra.mxu0 0
      %2007 = vmatprep.mubr.bf16.mxu0 0
      %2008 = vmatmul.mubr.bf16.gmra.mrb[0].mxu0 %v1872
      %v2009 = vpop.f32.mrb[0].mxu0
      %v2010 = vadd.f32 %v1829, %v2009
      %v2011 = vpop.f32.mrb[0].mxu0
      %v2012 = vpop.f32.mrb[0].mxu0
      %v2013 = vpop.f32.mrb[0].mxu0
      %2014 = vdwg.mxu0
      %v2015 = vrot.slane %v1969, 4
      %v2016 = vmax.f32 %v1969, %v2015
      %v2017 = vrot.slane %v2016, 2
      %v2018 = vmax.f32 %v2016, %v2017
      %v2019 = vrot.slane %v2018, 1
      %v2020 = vmax.f32 %v2018, %v2019
      %v2021 = vrot.slane %v1971, 4
      %v2022 = vmax.f32 %v1971, %v2021
      %v2023 = vrot.slane %v2022, 2
      %v2024 = vmax.f32 %v2022, %v2023
      %v2025 = vrot.slane %v2024, 1
      %v2026 = vmax.f32 %v2024, %v2025
      %v2027 = vsel %vm964, %v2010, -inf
      %v2028 = vrot.slane %v2027, 4
      %v2029 = vmax.f32 %v2027, %v2028
      %v2030 = vrot.slane %v2029, 2
      %v2031 = vmax.f32 %v2029, %v2030
      %v2032 = vrot.slane %v2031, 1
      %v2033 = vmax.f32 %v2031, %v2032
      %v2034 = vsub.f32 %v1969, %v2020
      %v2035 = vsub.f32 %v1971, %v2026
      %v2036 = vsub.f32 %v2010, %v2033
      %v2037 = vmul.f32 %v2034, 1.442695
      %v2038 = vpow.pop %v2037
      %v2039 = vmul.f32 %v2035, 1.442695
      %v2040 = vpow.pop %v2039
      %v2041 = vmul.f32 %v2036, 1.442695
      %v2042 = vpow.pop %v2041
      %v2043 = vrot.slane %v2038, 4
      %v2044 = vadd.f32 %v2038, %v2043
      %v2045 = vrot.slane %v2044, 2
      %v2046 = vadd.f32 %v2044, %v2045
      %v2047 = vrot.slane %v2046, 1
      %v2048 = vadd.f32 %v2046, %v2047
      %v2049 = vrot.slane %v2040, 4
      %v2050 = vadd.f32 %v2040, %v2049
      %v2051 = vrot.slane %v2050, 2
      %v2052 = vadd.f32 %v2050, %v2051
      %v2053 = vrot.slane %v2052, 1
      %v2054 = vadd.f32 %v2052, %v2053
      %v2055 = vsel %vm964, %v2042, 0.0
      %v2056 = vrot.slane %v2055, 4
      %v2057 = vadd.f32 %v2055, %v2056
      %v2058 = vrot.slane %v2057, 2
      %v2059 = vadd.f32 %v2057, %v2058
      %v2060 = vrot.slane %v2059, 1
      %v2061 = vadd.f32 %v2059, %v2060
      %v2062 = vrcp.pop %v2048
      %v2063 = vrcp.pop %v2054
      %v2064 = vrcp.pop %v2061
      %v2065 = vmul.f32 %v2038, %v2062
      %v2066 = vmul.f32 %v2040, %v2063
      %v2067 = vmul.f32 %v2042, %v2064
      %v2068 = vpack.c.bf16 %v2065, %v2065
      %v2069 = vpack.c.bf16 %v2066, %v2066
      %v2070 = vpack.c.bf16 %v2067, %v2067
      %2071 = vrot.lane.b32.xlu0 %v985, 112
      %v2072 = vpop.permute.xlu0 %2071
      %2073 = vrot.lane.b32.xlu0 %v986, 112
      %v2074 = vpop.permute.xlu0 %2073
      %2075 = vrot.lane.b32.xlu0 %v987, 112
      %v2076 = vpop.permute.xlu0 %2075
      %2077 = vrot.lane.b32.xlu0 %v988, 112
      %v2078 = vpop.permute.xlu0 %2077
      %2079 = vrot.lane.b32.xlu0 %v989, 112
      %v2080 = vpop.permute.xlu0 %2079
      %2081 = vrot.lane.b32.xlu0 %v990, 112
      %v2082 = vpop.permute.xlu0 %2081
      %2083 = vrot.lane.b32.xlu0 %v991, 112
      %v2084 = vpop.permute.xlu0 %2083
      %2085 = vrot.lane.b32.xlu0 %v992, 112
      %v2086 = vpop.permute.xlu0 %2085
      %2087 = vrot.lane.b32.xlu0 %v993, 112
      %v2088 = vpop.permute.xlu0 %2087
      %2089 = vrot.lane.b32.xlu0 %v994, 112
      %v2090 = vpop.permute.xlu0 %2089
      %2091 = vrot.lane.b32.xlu0 %v995, 112
      %v2092 = vpop.permute.xlu0 %2091
      %2093 = vrot.lane.b32.xlu0 %v996, 112
      %v2094 = vpop.permute.xlu0 %2093
      %2095 = vrot.lane.b32.xlu0 %v997, 112
      %v2096 = vpop.permute.xlu0 %2095
      %2097 = vrot.lane.b32.xlu0 %v998, 112
      %v2098 = vpop.permute.xlu0 %2097
      %2099 = vrot.lane.b32.xlu0 %v999, 112
      %v2100 = vpop.permute.xlu0 %2099
      %2101 = vrot.lane.b32.xlu0 %v1000, 112
      %v2102 = vpop.permute.xlu0 %2101
      %2103 = vrot.lane.b32.xlu0 %v1001, 112
      %v2104 = vpop.permute.xlu0 %2103
      %2105 = vrot.lane.b32.xlu0 %v1002, 112
      %v2106 = vpop.permute.xlu0 %2105
      %2107 = vrot.lane.b32.xlu0 %v1003, 112
      %v2108 = vpop.permute.xlu0 %2107
      %2109 = vrot.lane.b32.xlu0 %v1004, 112
      %v2110 = vpop.permute.xlu0 %2109
      %v2132 = vsel %vm964, %v2070, 0
      %2134 = vmatprep.subr.bf16.mxu0 0
      %2135 = vmatpush1.bf16.msra.mxu0 %v2072
      %2136 = vmatprep.subr.bf16.mxu0 0
      %2137 = vmatpush1.bf16.msra.mxu0 %v2074
      %2138 = vmatprep.subr.bf16.mxu0 0
      %2139 = vmatpush1.bf16.msra.mxu0 %v2076
      %2140 = vmatprep.subr.bf16.mxu0 0
      %2141 = vmatpush1.bf16.msra.mxu0 %v2078
      %2142 = vmatprep.subr.bf16.mxu0 0
      %2143 = vmatpush1.bf16.msra.mxu0 %v2080
      %2144 = vmatprep.subr.bf16.mxu0 0
      %2145 = vmatpush1.bf16.msra.mxu0 %v2082
      %2146 = vmatprep.subr.bf16.mxu0 0
      %2147 = vmatpush1.bf16.msra.mxu0 %v2084
      %2148 = vmatprep.subr.bf16.mxu0 0
      %2149 = vmatpush1.bf16.msra.mxu0 %v2086
      %2150 = vmatprep.subr.bf16.mxu0 0
      %2151 = vmatpush1.bf16.msra.mxu0 %v2088
      %2152 = vmatprep.subr.bf16.mxu0 0
      %2153 = vmatpush1.bf16.msra.mxu0 %v2090
      %2154 = vmatprep.subr.bf16.mxu0 0
      %2155 = vmatpush1.bf16.msra.mxu0 %v2092
      %2156 = vmatprep.subr.bf16.mxu0 0
      %2157 = vmatpush1.bf16.msra.mxu0 %v2094
      %2158 = vmatprep.subr.bf16.mxu0 0
      %2159 = vmatpush1.bf16.msra.mxu0 %v2096
      %2160 = vmatprep.subr.bf16.mxu0 0
      %2161 = vmatpush1.bf16.msra.mxu0 %v2098
      %2162 = vmatprep.subr.bf16.mxu0 0
      %2163 = vmatpush1.bf16.msra.mxu0 %v2100
      %2164 = vmatprep.subr.bf16.mxu0 0
      %2165 = vmatpush1.bf16.msra.mxu0 %v2102
      %2166 = vmatprep.mubr.bf16.mxu0 %v2069
      %2167 = vmatmul.mubr.bf16.gmra.mrb[0].mxu0 %v2068
      %v2168 = vpop.f32.mrb[0].mxu0
      %v2169 = vadd.f32 0.0, %v2168
      %v2170 = vpop.f32.mrb[0].mxu0
      %v2171 = vpop.f32.mrb[0].mxu0
      %v2172 = vpop.f32.mrb[0].mxu0
      %2173 = vdwg.mxu0
      %2174 = vmatprep.subr.bf16.mxu0 0
      %2175 = vmatpush1.bf16.msra.mxu0 %v2104
      %2176 = vmatprep.subr.bf16.mxu0 0
      %2177 = vmatpush1.bf16.msra.mxu0 %v2106
      %2178 = vmatprep.subr.bf16.mxu0 0
      %2179 = vmatpush1.bf16.msra.mxu0 %v2108
      %2180 = vmatprep.subr.bf16.mxu0 0
      %2181 = vmatpush1.bf16.msra.mxu0 %v2110
      %2182 = vmatprep.subr.bf16.mxu0 0
      %2183 = vmatpush1.bf16.msra.mxu0 0
      %2184 = vmatprep.subr.bf16.mxu0 0
      %2185 = vmatpush1.bf16.msra.mxu0 0
      %2186 = vmatprep.subr.bf16.mxu0 0
      %2187 = vmatpush1.bf16.msra.mxu0 0
      %2188 = vmatprep.subr.bf16.mxu0 0
      %2189 = vmatpush1.bf16.msra.mxu0 0
      %2190 = vmatprep.subr.bf16.mxu0 0
      %2191 = vmatpush1.bf16.msra.mxu0 0
      %2192 = vmatprep.subr.bf16.mxu0 0
      %2193 = vmatpush1.bf16.msra.mxu0 0
      %2194 = vmatprep.subr.bf16.mxu0 0
      %2195 = vmatpush1.bf16.msra.mxu0 0
      %2196 = vmatprep.subr.bf16.mxu0 0
      %2197 = vmatpush1.bf16.msra.mxu0 0
      %2198 = vmatprep.subr.bf16.mxu0 0
      %2199 = vmatpush1.bf16.msra.mxu0 0
      %2200 = vmatprep.subr.bf16.mxu0 0
      %2201 = vmatpush1.bf16.msra.mxu0 0
      %2202 = vmatprep.subr.bf16.mxu0 0
      %2203 = vmatpush1.bf16.msra.mxu0 0
      %2204 = vmatprep.subr.bf16.mxu0 0
      %2205 = vmatpush1.bf16.msra.mxu0 0
      %2206 = vmatprep.mubr.bf16.mxu0 0
      %2207 = vmatmul.mubr.bf16.gmra.mrb[0].mxu0 %v2132
      %v2208 = vpop.f32.mrb[0].mxu0
      %v2209 = vadd.f32 %v2169, %v2208
      %v2210 = vpop.f32.mrb[0].mxu0
      %v2211 = vpop.f32.mrb[0].mxu0
      %v2212 = vpop.f32.mrb[0].mxu0
      %2213 = vdwg.mxu0
      %v2214 = vadd.f32 %v2065, %v2066
      %v2215 = vsel %vm964, %v2067, 0.0
      %v2216 = vadd.f32 %v2214, %v2215
      %2217 = vadd.xlane.f32.xlu0 %v2216
      %v2218 = vpop.xlane.xlu0 %2217
      %v2219 = vadd.f32 %v2218, 1e-05
      %v2220 = vrcp.pop %v2219
      %v2221 = vmul.f32 %v2209, %v2220
      %v2223 = vsel %vm1072, %v2221, 0
      %2225 = vmatprep.subr.mxu0 0.0
      %2226 = vmatpush1.msra.mxu0 %v1364
      %2227 = vmatprep.subr.mxu0 0.0
      %2228 = vmatpush1.msra.mxu0 %v1365
      %2229 = vmatprep.subr.mxu0 0.0
      %2230 = vmatpush1.msra.mxu0 0.0
      %2231 = vmatprep.subr.mxu0 0.0
      %2232 = vmatpush1.msra.mxu0 0.0
      %2233 = vmatprep.subr.mxu0 0.0
      %2234 = vmatpush1.msra.mxu0 0.0
      %2235 = vmatprep.subr.mxu0 0.0
      %2236 = vmatpush1.msra.mxu0 0.0
      %2237 = vmatprep.subr.mxu0 0.0
      %2238 = vmatpush1.msra.mxu0 0.0
      %2239 = vmatprep.subr.mxu0 0.0
      %2240 = vmatpush1.msra.mxu0 0.0
      %2241 = vmatprep.subr.mxu0 0.0
      %2242 = vmatpush1.msra.mxu0 0.0
      %2243 = vmatprep.subr.mxu0 0.0
      %2244 = vmatpush1.msra.mxu0 0.0
      %2245 = vmatprep.subr.mxu0 0.0
      %2246 = vmatpush1.msra.mxu0 0.0
      %2247 = vmatprep.subr.mxu0 0.0
      %2248 = vmatpush1.msra.mxu0 0.0
      %2249 = vmatprep.subr.mxu0 0.0
      %2250 = vmatpush1.msra.mxu0 0.0
      %2251 = vmatprep.subr.mxu0 0.0
      %2252 = vmatpush1.msra.mxu0 0.0
      %2253 = vmatprep.subr.mxu0 0.0
      %2254 = vmatpush1.msra.mxu0 0.0
      %2255 = vmatprep.subr.mxu0 0.0
      %2256 = vmatpush1.msra.mxu0 0.0
      %2257 = vmatprep.subr.mxu0 0.0
      %2258 = vmatpush1.msra.mxu0 0.0
      %2259 = vmatprep.subr.mxu0 0.0
      %2260 = vmatpush1.msra.mxu0 0.0
      %2261 = vmatprep.subr.mxu0 0.0
      %2262 = vmatpush1.msra.mxu0 0.0
      %2263 = vmatprep.subr.mxu0 0.0
      %2264 = vmatpush1.msra.mxu0 0.0
      %2265 = vmatprep.subr.mxu0 0.0
      %2266 = vmatpush1.msra.mxu0 0.0
      %2267 = vmatprep.subr.mxu0 0.0
      %2268 = vmatpush1.msra.mxu0 0.0
      %2269 = vmatprep.subr.mxu0 0.0
      %2270 = vmatpush1.msra.mxu0 0.0
      %2271 = vmatprep.subr.mxu0 0.0
      %2272 = vmatpush1.msra.mxu0 0.0
      %2273 = vmatprep.subr.mxu0 0.0
      %2274 = vmatpush1.msra.mxu0 0.0
      %2275 = vmatprep.subr.mxu0 0.0
      %2276 = vmatpush1.msra.mxu0 0.0
      %2277 = vmatprep.subr.mxu0 0.0
      %2278 = vmatpush1.msra.mxu0 0.0
      %2279 = vmatprep.subr.mxu0 0.0
      %2280 = vmatpush1.msra.mxu0 0.0
      %2281 = vmatprep.subr.mxu0 0.0
      %2282 = vmatpush1.msra.mxu0 0.0
      %2283 = vmatprep.subr.mxu0 0.0
      %2284 = vmatpush1.msra.mxu0 0.0
      %2285 = vmatprep.subr.mxu0 0.0
      %2286 = vmatpush1.msra.mxu0 0.0
      %2287 = vmatprep.subr.mxu0 0.0
      %2288 = vmatpush1.msra.mxu0 0.0
      %2289 = vmatprep.mubr.f32.mxu0 0.0
      %2290 = vmatmul.mubr.f32.gmra.mrb[0].mxu0 %v2223
      %v2291 = vpop.f32.mrb[0].mxu0
      %v2292 = vadd.f32 0.0, %v2291
      %v2293 = vpop.f32.mrb[0].mxu0
      %2294 = vdwg.mxu0
      %2295 = vmatprep.subr.mxu0 0.0
      %2296 = vmatpush1.msra.mxu0 %v1439
      %2297 = vmatprep.subr.mxu0 0.0
      %2298 = vmatpush1.msra.mxu0 %v1440
      %2299 = vmatprep.subr.mxu0 0.0
      %2300 = vmatpush1.msra.mxu0 0.0
      %2301 = vmatprep.subr.mxu0 0.0
      %2302 = vmatpush1.msra.mxu0 0.0
      %2303 = vmatprep.subr.mxu0 0.0
      %2304 = vmatpush1.msra.mxu0 0.0
      %2305 = vmatprep.subr.mxu0 0.0
      %2306 = vmatpush1.msra.mxu0 0.0
      %2307 = vmatprep.subr.mxu0 0.0
      %2308 = vmatpush1.msra.mxu0 0.0
      %2309 = vmatprep.subr.mxu0 0.0
      %2310 = vmatpush1.msra.mxu0 0.0
      %2311 = vmatprep.subr.mxu0 0.0
      %2312 = vmatpush1.msra.mxu0 0.0
      %2313 = vmatprep.subr.mxu0 0.0
      %2314 = vmatpush1.msra.mxu0 0.0
      %2315 = vmatprep.subr.mxu0 0.0
      %2316 = vmatpush1.msra.mxu0 0.0
      %2317 = vmatprep.subr.mxu0 0.0
      %2318 = vmatpush1.msra.mxu0 0.0
      %2319 = vmatprep.subr.mxu0 0.0
      %2320 = vmatpush1.msra.mxu0 0.0
      %2321 = vmatprep.subr.mxu0 0.0
      %2322 = vmatpush1.msra.mxu0 0.0
      %2323 = vmatprep.subr.mxu0 0.0
      %2324 = vmatpush1.msra.mxu0 0.0
      %2325 = vmatprep.subr.mxu0 0.0
      %2326 = vmatpush1.msra.mxu0 0.0
      %2327 = vmatprep.subr.mxu0 0.0
      %2328 = vmatpush1.msra.mxu0 0.0
      %2329 = vmatprep.subr.mxu0 0.0
      %2330 = vmatpush1.msra.mxu0 0.0
      %2331 = vmatprep.subr.mxu0 0.0
      %2332 = vmatpush1.msra.mxu0 0.0
      %2333 = vmatprep.subr.mxu0 0.0
      %2334 = vmatpush1.msra.mxu0 0.0
      %2335 = vmatprep.subr.mxu0 0.0
      %2336 = vmatpush1.msra.mxu0 0.0
      %2337 = vmatprep.subr.mxu0 0.0
      %2338 = vmatpush1.msra.mxu0 0.0
      %2339 = vmatprep.subr.mxu0 0.0
      %2340 = vmatpush1.msra.mxu0 0.0
      %2341 = vmatprep.subr.mxu0 0.0
      %2342 = vmatpush1.msra.mxu0 0.0
      %2343 = vmatprep.subr.mxu0 0.0
      %2344 = vmatpush1.msra.mxu0 0.0
      %2345 = vmatprep.subr.mxu0 0.0
      %2346 = vmatpush1.msra.mxu0 0.0
      %2347 = vmatprep.subr.mxu0 0.0
      %2348 = vmatpush1.msra.mxu0 0.0
      %2349 = vmatprep.subr.mxu0 0.0
      %2350 = vmatpush1.msra.mxu0 0.0
      %2351 = vmatprep.subr.mxu0 0.0
      %2352 = vmatpush1.msra.mxu0 0.0
      %2353 = vmatprep.subr.mxu0 0.0
      %2354 = vmatpush1.msra.mxu0 0.0
      %2355 = vmatprep.subr.mxu0 0.0
      %2356 = vmatpush1.msra.mxu0 0.0
      %2357 = vmatprep.subr.mxu0 0.0
      %2358 = vmatpush1.msra.mxu0 0.0
      %2359 = vmatprep.mubr.f32.mxu0 0.0
      %2360 = vmatmul.mubr.f32.gmra.mrb[0].mxu0 %v2223
      %v2361 = vpop.f32.mrb[0].mxu0
      %v2362 = vadd.f32 0.0, %v2361
      %v2363 = vpop.f32.mrb[0].mxu0
      %2364 = vdwg.mxu0
      %2365 = vmatprep.subr.mxu0 0.0
      %2366 = vmatpush1.msra.mxu0 %v1511
      %2367 = vmatprep.subr.mxu0 0.0
      %2368 = vmatpush1.msra.mxu0 %v1512
      %2369 = vmatprep.subr.mxu0 0.0
      %2370 = vmatpush1.msra.mxu0 0.0
      %2371 = vmatprep.subr.mxu0 0.0
      %2372 = vmatpush1.msra.mxu0 0.0
      %2373 = vmatprep.subr.mxu0 0.0
      %2374 = vmatpush1.msra.mxu0 0.0
      %2375 = vmatprep.subr.mxu0 0.0
      %2376 = vmatpush1.msra.mxu0 0.0
      %2377 = vmatprep.subr.mxu0 0.0
      %2378 = vmatpush1.msra.mxu0 0.0
      %2379 = vmatprep.subr.mxu0 0.0
      %2380 = vmatpush1.msra.mxu0 0.0
      %2381 = vmatprep.subr.mxu0 0.0
      %2382 = vmatpush1.msra.mxu0 0.0
      %2383 = vmatprep.subr.mxu0 0.0
      %2384 = vmatpush1.msra.mxu0 0.0
      %2385 = vmatprep.subr.mxu0 0.0
      %2386 = vmatpush1.msra.mxu0 0.0
      %2387 = vmatprep.subr.mxu0 0.0
      %2388 = vmatpush1.msra.mxu0 0.0
      %2389 = vmatprep.subr.mxu0 0.0
      %2390 = vmatpush1.msra.mxu0 0.0
      %2391 = vmatprep.subr.mxu0 0.0
      %2392 = vmatpush1.msra.mxu0 0.0
      %2393 = vmatprep.subr.mxu0 0.0
      %2394 = vmatpush1.msra.mxu0 0.0
      %2395 = vmatprep.subr.mxu0 0.0
      %2396 = vmatpush1.msra.mxu0 0.0
      %2397 = vmatprep.subr.mxu0 0.0
      %2398 = vmatpush1.msra.mxu0 0.0
      %2399 = vmatprep.subr.mxu0 0.0
      %2400 = vmatpush1.msra.mxu0 0.0
      %2401 = vmatprep.subr.mxu0 0.0
      %2402 = vmatpush1.msra.mxu0 0.0
      %2403 = vmatprep.subr.mxu0 0.0
      %2404 = vmatpush1.msra.mxu0 0.0
      %2405 = vmatprep.subr.mxu0 0.0
      %2406 = vmatpush1.msra.mxu0 0.0
      %2407 = vmatprep.subr.mxu0 0.0
      %2408 = vmatpush1.msra.mxu0 0.0
      %2409 = vmatprep.subr.mxu0 0.0
      %2410 = vmatpush1.msra.mxu0 0.0
      %2411 = vmatprep.subr.mxu0 0.0
      %2412 = vmatpush1.msra.mxu0 0.0
      %2413 = vmatprep.subr.mxu0 0.0
      %2414 = vmatpush1.msra.mxu0 0.0
      %2415 = vmatprep.subr.mxu0 0.0
      %2416 = vmatpush1.msra.mxu0 0.0
      %2417 = vmatprep.subr.mxu0 0.0
      %2418 = vmatpush1.msra.mxu0 0.0
      %2419 = vmatprep.subr.mxu0 0.0
      %2420 = vmatpush1.msra.mxu0 0.0
      %2421 = vmatprep.subr.mxu0 0.0
      %2422 = vmatpush1.msra.mxu0 0.0
      %2423 = vmatprep.subr.mxu0 0.0
      %2424 = vmatpush1.msra.mxu0 0.0
      %2425 = vmatprep.subr.mxu0 0.0
      %2426 = vmatpush1.msra.mxu0 0.0
      %2427 = vmatprep.subr.mxu0 0.0
      %2428 = vmatpush1.msra.mxu0 0.0
      %2429 = vmatprep.mubr.f32.mxu0 0.0
      %2430 = vmatmul.mubr.f32.gmra.mrb[0].mxu0 %v2223
      %v2431 = vpop.f32.mrb[0].mxu0
      %v2432 = vadd.f32 0.0, %v2431
      %v2433 = vpop.f32.mrb[0].mxu0
      %2434 = vdwg.mxu0
      %v2436 = vsel %vm1072, %v2292, 0
      %v2439 = vsel %vm1072, %v2362, 0
      %2441 = vmatprep.subr.mxu0 0.0
      %2442 = vmatpush1.xpose.msra.mxu0 %v2439
      %2443 = vmatprep.subr.mxu0 0.0
      %2444 = vmatpush1.xpose.msra.mxu0 0.0
      %2445 = vmatprep.subr.mxu0 0.0
      %2446 = vmatpush1.xpose.msra.mxu0 0.0
      %2447 = vmatprep.subr.mxu0 0.0
      %2448 = vmatpush1.xpose.msra.mxu0 0.0
      %2449 = vmatprep.subr.mxu0 0.0
      %2450 = vmatpush1.xpose.msra.mxu0 0.0
      %2451 = vmatprep.subr.mxu0 0.0
      %2452 = vmatpush1.xpose.msra.mxu0 0.0
      %2453 = vmatprep.subr.mxu0 0.0
      %2454 = vmatpush1.xpose.msra.mxu0 0.0
      %2455 = vmatprep.subr.mxu0 0.0
      %2456 = vmatpush1.xpose.msra.mxu0 0.0
      %2457 = vmatprep.subr.mxu0 0.0
      %2458 = vmatpush1.xpose.msra.mxu0 0.0
      %2459 = vmatprep.subr.mxu0 0.0
      %2460 = vmatpush1.xpose.msra.mxu0 0.0
      %2461 = vmatprep.subr.mxu0 0.0
      %2462 = vmatpush1.xpose.msra.mxu0 0.0
      %2463 = vmatprep.subr.mxu0 0.0
      %2464 = vmatpush1.xpose.msra.mxu0 0.0
      %2465 = vmatprep.subr.mxu0 0.0
      %2466 = vmatpush1.xpose.msra.mxu0 0.0
      %2467 = vmatprep.subr.mxu0 0.0
      %2468 = vmatpush1.xpose.msra.mxu0 0.0
      %2469 = vmatprep.subr.mxu0 0.0
      %2470 = vmatpush1.xpose.msra.mxu0 0.0
      %2471 = vmatprep.subr.mxu0 0.0
      %2472 = vmatpush1.xpose.msra.mxu0 0.0
      %2473 = vmatprep.subr.mxu0 0.0
      %2474 = vmatpush1.xpose.msra.mxu0 0.0
      %2475 = vmatprep.subr.mxu0 0.0
      %2476 = vmatpush1.xpose.msra.mxu0 0.0
      %2477 = vmatprep.subr.mxu0 0.0
      %2478 = vmatpush1.xpose.msra.mxu0 0.0
      %2479 = vmatprep.subr.mxu0 0.0
      %2480 = vmatpush1.xpose.msra.mxu0 0.0
      %2481 = vmatprep.subr.mxu0 0.0
      %2482 = vmatpush1.xpose.msra.mxu0 0.0
      %2483 = vmatprep.subr.mxu0 0.0
      %2484 = vmatpush1.xpose.msra.mxu0 0.0
      %2485 = vmatprep.subr.mxu0 0.0
      %2486 = vmatpush1.xpose.msra.mxu0 0.0
      %2487 = vmatprep.subr.mxu0 0.0
      %2488 = vmatpush1.xpose.msra.mxu0 0.0
      %2489 = vmatprep.subr.mxu0 0.0
      %2490 = vmatpush1.xpose.msra.mxu0 0.0
      %2491 = vmatprep.subr.mxu0 0.0
      %2492 = vmatpush1.xpose.msra.mxu0 0.0
      %2493 = vmatprep.subr.mxu0 0.0
      %2494 = vmatpush1.xpose.msra.mxu0 0.0
      %2495 = vmatprep.subr.mxu0 0.0
      %2496 = vmatpush1.xpose.msra.mxu0 0.0
      %2497 = vmatprep.subr.mxu0 0.0
      %2498 = vmatpush1.xpose.msra.mxu0 0.0
      %2499 = vmatprep.subr.mxu0 0.0
      %2500 = vmatpush1.xpose.msra.mxu0 0.0
      %2501 = vmatprep.subr.mxu0 0.0
      %2502 = vmatpush1.xpose.msra.mxu0 0.0
      %2503 = vmatprep.subr.mxu0 0.0
      %2504 = vmatpush1.xpose.msra.mxu0 0.0
      %2505 = vmatprep.mubr.f32.mxu0 0.0
      %2506 = vmatmul.mubr.f32.gmra.mrb[0].mxu0 %v2436
      %v2507 = vpop.f32.mrb[0].mxu0
      %v2508 = vadd.f32 0.0, %v2507
      %v2509 = vpop.f32.mrb[0].mxu0
      %2510 = vdwg.mxu0
      %v2511 = vmul.f32 %v2508, 0.25
      %v2512 = vsel %vm1660, %v2511, -inf
      %2513 = vmax.xlane.f32.xlu0 %v2512
      %v2514 = vpop.xlane.xlu0 %2513
      %v2515 = vsub.f32 %v2511, %v2514
      %v2516 = vmul.f32 %v2515, 1.442695
      %v2517 = vpow.pop %v2516
      %v2518 = vsel %vm1660, %v2517, 0.0
      %2519 = vadd.xlane.f32.xlu0 %v2518
      %v2520 = vpop.xlane.xlu0 %2519
      %v2521 = vrcp.pop %v2520
      %v2522 = vmul.f32 %v2517, %v2521
      %v2524 = vsel %vm1660, %v2522, 0
      %2526 = vmatprep.subr.mxu0 0.0
      %2527 = vmatpush1.msra.mxu0 %v2432
      %2528 = vmatprep.subr.mxu0 0.0
      %2529 = vmatpush1.msra.mxu0 0.0
      %2530 = vmatprep.subr.mxu0 0.0
      %2531 = vmatpush1.msra.mxu0 0.0
      %2532 = vmatprep.subr.mxu0 0.0
      %2533 = vmatpush1.msra.mxu0 0.0
      %2534 = vmatprep.subr.mxu0 0.0
      %2535 = vmatpush1.msra.mxu0 0.0
      %2536 = vmatprep.subr.mxu0 0.0
      %2537 = vmatpush1.msra.mxu0 0.0
      %2538 = vmatprep.subr.mxu0 0.0
      %2539 = vmatpush1.msra.mxu0 0.0
      %2540 = vmatprep.subr.mxu0 0.0
      %2541 = vmatpush1.msra.mxu0 0.0
      %2542 = vmatprep.subr.mxu0 0.0
      %2543 = vmatpush1.msra.mxu0 0.0
      %2544 = vmatprep.subr.mxu0 0.0
      %2545 = vmatpush1.msra.mxu0 0.0
      %2546 = vmatprep.subr.mxu0 0.0
      %2547 = vmatpush1.msra.mxu0 0.0
      %2548 = vmatprep.subr.mxu0 0.0
      %2549 = vmatpush1.msra.mxu0 0.0
      %2550 = vmatprep.subr.mxu0 0.0
      %2551 = vmatpush1.msra.mxu0 0.0
      %2552 = vmatprep.subr.mxu0 0.0
      %2553 = vmatpush1.msra.mxu0 0.0
      %2554 = vmatprep.subr.mxu0 0.0
      %2555 = vmatpush1.msra.mxu0 0.0
      %2556 = vmatprep.subr.mxu0 0.0
      %2557 = vmatpush1.msra.mxu0 0.0
      %2558 = vmatprep.subr.mxu0 0.0
      %2559 = vmatpush1.msra.mxu0 0.0
      %2560 = vmatprep.subr.mxu0 0.0
      %2561 = vmatpush1.msra.mxu0 0.0
      %2562 = vmatprep.subr.mxu0 0.0
      %2563 = vmatpush1.msra.mxu0 0.0
      %2564 = vmatprep.subr.mxu0 0.0
      %2565 = vmatpush1.msra.mxu0 0.0
      %2566 = vmatprep.subr.mxu0 0.0
      %2567 = vmatpush1.msra.mxu0 0.0
      %2568 = vmatprep.subr.mxu0 0.0
      %2569 = vmatpush1.msra.mxu0 0.0
      %2570 = vmatprep.subr.mxu0 0.0
      %2571 = vmatpush1.msra.mxu0 0.0
      %2572 = vmatprep.subr.mxu0 0.0
      %2573 = vmatpush1.msra.mxu0 0.0
      %2574 = vmatprep.subr.mxu0 0.0
      %2575 = vmatpush1.msra.mxu0 0.0
      %2576 = vmatprep.subr.mxu0 0.0
      %2577 = vmatpush1.msra.mxu0 0.0
      %2578 = vmatprep.subr.mxu0 0.0
      %2579 = vmatpush1.msra.mxu0 0.0
      %2580 = vmatprep.subr.mxu0 0.0
      %2581 = vmatpush1.msra.mxu0 0.0
      %2582 = vmatprep.subr.mxu0 0.0
      %2583 = vmatpush1.msra.mxu0 0.0
      %2584 = vmatprep.subr.mxu0 0.0
      %2585 = vmatpush1.msra.mxu0 0.0
      %2586 = vmatprep.subr.mxu0 0.0
      %2587 = vmatpush1.msra.mxu0 0.0
      %2588 = vmatprep.subr.mxu0 0.0
      %2589 = vmatpush1.msra.mxu0 0.0
      %2590 = vmatprep.mubr.f32.mxu0 0.0
      %2591 = vmatmul.mubr.f32.gmra.mrb[0].mxu0 %v2524
      %v2592 = vpop.f32.mrb[0].mxu0
      %v2593 = vadd.f32 0.0, %v2592
      %v2594 = vpop.f32.mrb[0].mxu0
      %2595 = vdwg.mxu0
      %s2596 = scalar_lea.vmem %s8, 1
      %v2597 = vld [vmem:[%s2596] sm:$0x1]
      %v2599 = vsel %vm1072, %v2597, 0
      %v2602 = vsel %vm1072, %v2593, 0
      %2604 = vmatprep.subr.mxu0 0.0
      %2605 = vmatpush1.xpose.msra.mxu0 %v2602
      %2606 = vmatprep.subr.mxu0 0.0
      %2607 = vmatpush1.xpose.msra.mxu0 0.0
      %2608 = vmatprep.subr.mxu0 0.0
      %2609 = vmatpush1.xpose.msra.mxu0 0.0
      %2610 = vmatprep.subr.mxu0 0.0
      %2611 = vmatpush1.xpose.msra.mxu0 0.0
      %2612 = vmatprep.subr.mxu0 0.0
      %2613 = vmatpush1.xpose.msra.mxu0 0.0
      %2614 = vmatprep.subr.mxu0 0.0
      %2615 = vmatpush1.xpose.msra.mxu0 0.0
      %2616 = vmatprep.subr.mxu0 0.0
      %2617 = vmatpush1.xpose.msra.mxu0 0.0
      %2618 = vmatprep.subr.mxu0 0.0
      %2619 = vmatpush1.xpose.msra.mxu0 0.0
      %2620 = vmatprep.subr.mxu0 0.0
      %2621 = vmatpush1.xpose.msra.mxu0 0.0
      %2622 = vmatprep.subr.mxu0 0.0
      %2623 = vmatpush1.xpose.msra.mxu0 0.0
      %2624 = vmatprep.subr.mxu0 0.0
      %2625 = vmatpush1.xpose.msra.mxu0 0.0
      %2626 = vmatprep.subr.mxu0 0.0
      %2627 = vmatpush1.xpose.msra.mxu0 0.0
      %2628 = vmatprep.subr.mxu0 0.0
      %2629 = vmatpush1.xpose.msra.mxu0 0.0
      %2630 = vmatprep.subr.mxu0 0.0
      %2631 = vmatpush1.xpose.msra.mxu0 0.0
      %2632 = vmatprep.subr.mxu0 0.0
      %2633 = vmatpush1.xpose.msra.mxu0 0.0
      %2634 = vmatprep.subr.mxu0 0.0
      %2635 = vmatpush1.xpose.msra.mxu0 0.0
      %2636 = vmatprep.subr.mxu0 0.0
      %2637 = vmatpush1.xpose.msra.mxu0 0.0
      %2638 = vmatprep.subr.mxu0 0.0
      %2639 = vmatpush1.xpose.msra.mxu0 0.0
      %2640 = vmatprep.subr.mxu0 0.0
      %2641 = vmatpush1.xpose.msra.mxu0 0.0
      %2642 = vmatprep.subr.mxu0 0.0
      %2643 = vmatpush1.xpose.msra.mxu0 0.0
      %2644 = vmatprep.subr.mxu0 0.0
      %2645 = vmatpush1.xpose.msra.mxu0 0.0
      %2646 = vmatprep.subr.mxu0 0.0
      %2647 = vmatpush1.xpose.msra.mxu0 0.0
      %2648 = vmatprep.subr.mxu0 0.0
      %2649 = vmatpush1.xpose.msra.mxu0 0.0
      %2650 = vmatprep.subr.mxu0 0.0
      %2651 = vmatpush1.xpose.msra.mxu0 0.0
      %2652 = vmatprep.subr.mxu0 0.0
      %2653 = vmatpush1.xpose.msra.mxu0 0.0
      %2654 = vmatprep.subr.mxu0 0.0
      %2655 = vmatpush1.xpose.msra.mxu0 0.0
      %2656 = vmatprep.subr.mxu0 0.0
      %2657 = vmatpush1.xpose.msra.mxu0 0.0
      %2658 = vmatprep.subr.mxu0 0.0
      %2659 = vmatpush1.xpose.msra.mxu0 0.0
      %2660 = vmatprep.subr.mxu0 0.0
      %2661 = vmatpush1.xpose.msra.mxu0 0.0
      %2662 = vmatprep.subr.mxu0 0.0
      %2663 = vmatpush1.xpose.msra.mxu0 0.0
      %2664 = vmatprep.subr.mxu0 0.0
      %2665 = vmatpush1.xpose.msra.mxu0 0.0
      %2666 = vmatprep.subr.mxu0 0.0
      %2667 = vmatpush1.xpose.msra.mxu0 0.0
      %2668 = vmatprep.mubr.f32.mxu0 0.0
      %2669 = vmatmul.mubr.f32.gmra.mrb[0].mxu0 %v2599
      %v2670 = vpop.f32.mrb[0].mxu0
      %v2671 = vadd.f32 0.0, %v2670
      %v2672 = vpop.f32.mrb[0].mxu0
      %2673 = vdwg.mxu0
      %v2675 = vsel %vm1660, %v2671, 0
      %2677 = vmatprep.subr.mxu0 %v2066
      %2678 = vmatpush1.msra.mxu0 %v2065
      %2679 = vmatprep.subr.mxu0 0.0
      %2680 = vmatpush1.msra.mxu0 0.0
      %2681 = vmatprep.subr.mxu0 0.0
      %2682 = vmatpush1.msra.mxu0 0.0
      %2683 = vmatprep.subr.mxu0 0.0
      %2684 = vmatpush1.msra.mxu0 0.0
      %2685 = vmatprep.subr.mxu0 0.0
      %2686 = vmatpush1.msra.mxu0 0.0
      %2687 = vmatprep.subr.mxu0 0.0
      %2688 = vmatpush1.msra.mxu0 0.0
      %2689 = vmatprep.subr.mxu0 0.0
      %2690 = vmatpush1.msra.mxu0 0.0
      %2691 = vmatprep.subr.mxu0 0.0
      %2692 = vmatpush1.msra.mxu0 0.0
      %2693 = vmatprep.subr.mxu0 0.0
      %2694 = vmatpush1.msra.mxu0 0.0
      %2695 = vmatprep.subr.mxu0 0.0
      %2696 = vmatpush1.msra.mxu0 0.0
      %2697 = vmatprep.subr.mxu0 0.0
      %2698 = vmatpush1.msra.mxu0 0.0
      %2699 = vmatprep.subr.mxu0 0.0
      %2700 = vmatpush1.msra.mxu0 0.0
      %2701 = vmatprep.subr.mxu0 0.0
      %2702 = vmatpush1.msra.mxu0 0.0
      %2703 = vmatprep.subr.mxu0 0.0
      %2704 = vmatpush1.msra.mxu0 0.0
      %2705 = vmatprep.subr.mxu0 0.0
      %2706 = vmatpush1.msra.mxu0 0.0
      %2707 = vmatprep.subr.mxu0 0.0
      %2708 = vmatpush1.msra.mxu0 0.0
      %2709 = vmatprep.subr.mxu0 0.0
      %2710 = vmatpush1.msra.mxu0 0.0
      %2711 = vmatprep.subr.mxu0 0.0
      %2712 = vmatpush1.msra.mxu0 0.0
      %2713 = vmatprep.subr.mxu0 0.0
      %2714 = vmatpush1.msra.mxu0 0.0
      %2715 = vmatprep.subr.mxu0 0.0
      %2716 = vmatpush1.msra.mxu0 0.0
      %2717 = vmatprep.subr.mxu0 0.0
      %2718 = vmatpush1.msra.mxu0 0.0
      %2719 = vmatprep.subr.mxu0 0.0
      %2720 = vmatpush1.msra.mxu0 0.0
      %2721 = vmatprep.subr.mxu0 0.0
      %2722 = vmatpush1.msra.mxu0 0.0
      %2723 = vmatprep.subr.mxu0 0.0
      %2724 = vmatpush1.msra.mxu0 0.0
      %2725 = vmatprep.subr.mxu0 0.0
      %2726 = vmatpush1.msra.mxu0 0.0
      %2727 = vmatprep.subr.mxu0 0.0
      %2728 = vmatpush1.msra.mxu0 0.0
      %2729 = vmatprep.subr.mxu0 0.0
      %2730 = vmatpush1.msra.mxu0 0.0
      %2731 = vmatprep.subr.mxu0 0.0
      %2732 = vmatpush1.msra.mxu0 0.0
      %2733 = vmatprep.subr.mxu0 0.0
      %2734 = vmatpush1.msra.mxu0 0.0
      %2735 = vmatprep.subr.mxu0 0.0
      %2736 = vmatpush1.msra.mxu0 0.0
      %2737 = vmatprep.subr.mxu0 0.0
      %2738 = vmatpush1.msra.mxu0 0.0
      %2739 = vmatprep.subr.mxu0 0.0
      %2740 = vmatpush1.msra.mxu0 0.0
      %2741 = vmatprep.mubr.f32.mxu0 0.0
      %2742 = vmatmul.mubr.f32.gmra.mrb[0].mxu0 %v2675
      %v2743 = vpop.f32.mrb[0].mxu0
      %v2744 = vadd.f32 0.0, %v2743
      %v2745 = vpop.f32.mrb[0].mxu0
      %v2746 = vadd.f32 0.0, %v2745
      %2747 = vdwg.mxu0
      %2748 = vmatprep.subr.mxu0 0.0
      %2749 = vmatpush1.msra.mxu0 %v2067
      %2750 = vmatprep.subr.mxu0 0.0
      %2751 = vmatpush1.msra.mxu0 0.0
      %2752 = vmatprep.subr.mxu0 0.0
      %2753 = vmatpush1.msra.mxu0 0.0
      %2754 = vmatprep.subr.mxu0 0.0
      %2755 = vmatpush1.msra.mxu0 0.0
      %2756 = vmatprep.subr.mxu0 0.0
      %2757 = vmatpush1.msra.mxu0 0.0
      %2758 = vmatprep.subr.mxu0 0.0
      %2759 = vmatpush1.msra.mxu0 0.0
      %2760 = vmatprep.subr.mxu0 0.0
      %2761 = vmatpush1.msra.mxu0 0.0
      %2762 = vmatprep.subr.mxu0 0.0
      %2763 = vmatpush1.msra.mxu0 0.0
      %2764 = vmatprep.subr.mxu0 0.0
      %2765 = vmatpush1.msra.mxu0 0.0
      %2766 = vmatprep.subr.mxu0 0.0
      %2767 = vmatpush1.msra.mxu0 0.0
      %2768 = vmatprep.subr.mxu0 0.0
      %2769 = vmatpush1.msra.mxu0 0.0
      %2770 = vmatprep.subr.mxu0 0.0
      %2771 = vmatpush1.msra.mxu0 0.0
      %2772 = vmatprep.subr.mxu0 0.0
      %2773 = vmatpush1.msra.mxu0 0.0
      %2774 = vmatprep.subr.mxu0 0.0
      %2775 = vmatpush1.msra.mxu0 0.0
      %2776 = vmatprep.subr.mxu0 0.0
      %2777 = vmatpush1.msra.mxu0 0.0
      %2778 = vmatprep.subr.mxu0 0.0
      %2779 = vmatpush1.msra.mxu0 0.0
      %2780 = vmatprep.subr.mxu0 0.0
      %2781 = vmatpush1.msra.mxu0 0.0
      %2782 = vmatprep.subr.mxu0 0.0
      %2783 = vmatpush1.msra.mxu0 0.0
      %2784 = vmatprep.subr.mxu0 0.0
      %2785 = vmatpush1.msra.mxu0 0.0
      %2786 = vmatprep.subr.mxu0 0.0
      %2787 = vmatpush1.msra.mxu0 0.0
      %2788 = vmatprep.subr.mxu0 0.0
      %2789 = vmatpush1.msra.mxu0 0.0
      %2790 = vmatprep.subr.mxu0 0.0
      %2791 = vmatpush1.msra.mxu0 0.0
      %2792 = vmatprep.subr.mxu0 0.0
      %2793 = vmatpush1.msra.mxu0 0.0
      %2794 = vmatprep.subr.mxu0 0.0
      %2795 = vmatpush1.msra.mxu0 0.0
      %2796 = vmatprep.subr.mxu0 0.0
      %2797 = vmatpush1.msra.mxu0 0.0
      %2798 = vmatprep.subr.mxu0 0.0
      %2799 = vmatpush1.msra.mxu0 0.0
      %2800 = vmatprep.subr.mxu0 0.0
      %2801 = vmatpush1.msra.mxu0 0.0
      %2802 = vmatprep.subr.mxu0 0.0
      %2803 = vmatpush1.msra.mxu0 0.0
      %2804 = vmatprep.subr.mxu0 0.0
      %2805 = vmatpush1.msra.mxu0 0.0
      %2806 = vmatprep.subr.mxu0 0.0
      %2807 = vmatpush1.msra.mxu0 0.0
      %2808 = vmatprep.subr.mxu0 0.0
      %2809 = vmatpush1.msra.mxu0 0.0
      %2810 = vmatprep.subr.mxu0 0.0
      %2811 = vmatpush1.msra.mxu0 0.0
      %2812 = vmatprep.mubr.f32.mxu0 0.0
      %2813 = vmatmul.mubr.f32.gmra.mrb[0].mxu0 %v2675
      %v2814 = vpop.f32.mrb[0].mxu0
      %v2815 = vadd.f32 0.0, %v2814
      %v2816 = vpop.f32.mrb[0].mxu0
      %2817 = vdwg.mxu0
      %v2819 = vsel %vm1660, %v1819, 0
      %2821 = vmatprep.subr.mxu0 %v1268
      %2822 = vmatpush1.msra.mxu0 %v1267
      %2823 = vmatprep.subr.mxu0 0.0
      %2824 = vmatpush1.msra.mxu0 0.0
      %2825 = vmatprep.subr.mxu0 0.0
      %2826 = vmatpush1.msra.mxu0 0.0
      %2827 = vmatprep.subr.mxu0 0.0
      %2828 = vmatpush1.msra.mxu0 0.0
      %2829 = vmatprep.subr.mxu0 0.0
      %2830 = vmatpush1.msra.mxu0 0.0
      %2831 = vmatprep.subr.mxu0 0.0
      %2832 = vmatpush1.msra.mxu0 0.0
      %2833 = vmatprep.subr.mxu0 0.0
      %2834 = vmatpush1.msra.mxu0 0.0
      %2835 = vmatprep.subr.mxu0 0.0
      %2836 = vmatpush1.msra.mxu0 0.0
      %2837 = vmatprep.subr.mxu0 0.0
      %2838 = vmatpush1.msra.mxu0 0.0
      %2839 = vmatprep.subr.mxu0 0.0
      %2840 = vmatpush1.msra.mxu0 0.0
      %2841 = vmatprep.subr.mxu0 0.0
      %2842 = vmatpush1.msra.mxu0 0.0
      %2843 = vmatprep.subr.mxu0 0.0
      %2844 = vmatpush1.msra.mxu0 0.0
      %2845 = vmatprep.subr.mxu0 0.0
      %2846 = vmatpush1.msra.mxu0 0.0
      %2847 = vmatprep.subr.mxu0 0.0
      %2848 = vmatpush1.msra.mxu0 0.0
      %2849 = vmatprep.subr.mxu0 0.0
      %2850 = vmatpush1.msra.mxu0 0.0
      %2851 = vmatprep.subr.mxu0 0.0
      %2852 = vmatpush1.msra.mxu0 0.0
      %2853 = vmatprep.subr.mxu0 0.0
      %2854 = vmatpush1.msra.mxu0 0.0
      %2855 = vmatprep.subr.mxu0 0.0
      %2856 = vmatpush1.msra.mxu0 0.0
      %2857 = vmatprep.subr.mxu0 0.0
      %2858 = vmatpush1.msra.mxu0 0.0
      %2859 = vmatprep.subr.mxu0 0.0
      %2860 = vmatpush1.msra.mxu0 0.0
      %2861 = vmatprep.subr.mxu0 0.0
      %2862 = vmatpush1.msra.mxu0 0.0
      %2863 = vmatprep.subr.mxu0 0.0
      %2864 = vmatpush1.msra.mxu0 0.0
      %2865 = vmatprep.subr.mxu0 0.0
      %2866 = vmatpush1.msra.mxu0 0.0
      %2867 = vmatprep.subr.mxu0 0.0
      %2868 = vmatpush1.msra.mxu0 0.0
      %2869 = vmatprep.subr.mxu0 0.0
      %2870 = vmatpush1.msra.mxu0 0.0
      %2871 = vmatprep.subr.mxu0 0.0
      %2872 = vmatpush1.msra.mxu0 0.0
      %2873 = vmatprep.subr.mxu0 0.0
      %2874 = vmatpush1.msra.mxu0 0.0
      %2875 = vmatprep.subr.mxu0 0.0
      %2876 = vmatpush1.msra.mxu0 0.0
      %2877 = vmatprep.subr.mxu0 0.0
      %2878 = vmatpush1.msra.mxu0 0.0
      %2879 = vmatprep.subr.mxu0 0.0
      %2880 = vmatpush1.msra.mxu0 0.0
      %2881 = vmatprep.subr.mxu0 0.0
      %2882 = vmatpush1.msra.mxu0 0.0
      %2883 = vmatprep.subr.mxu0 0.0
      %2884 = vmatpush1.msra.mxu0 0.0
      %2885 = vmatprep.mubr.f32.mxu0 0.0
      %2886 = vmatmul.mubr.f32.gmra.mrb[0].mxu0 %v2819
      %v2887 = vpop.f32.mrb[0].mxu0
      %v2888 = vadd.f32 %v2744, %v2887
      %v2889 = vpop.f32.mrb[0].mxu0
      %v2890 = vadd.f32 %v2746, %v2889
      %2891 = vdwg.mxu0
      %2892 = vmatprep.subr.mxu0 0.0
      %2893 = vmatpush1.msra.mxu0 %v1269
      %2894 = vmatprep.subr.mxu0 0.0
      %2895 = vmatpush1.msra.mxu0 0.0
      %2896 = vmatprep.subr.mxu0 0.0
      %2897 = vmatpush1.msra.mxu0 0.0
      %2898 = vmatprep.subr.mxu0 0.0
      %2899 = vmatpush1.msra.mxu0 0.0
      %2900 = vmatprep.subr.mxu0 0.0
      %2901 = vmatpush1.msra.mxu0 0.0
      %2902 = vmatprep.subr.mxu0 0.0
      %2903 = vmatpush1.msra.mxu0 0.0
      %2904 = vmatprep.subr.mxu0 0.0
      %2905 = vmatpush1.msra.mxu0 0.0
      %2906 = vmatprep.subr.mxu0 0.0
      %2907 = vmatpush1.msra.mxu0 0.0
      %2908 = vmatprep.subr.mxu0 0.0
      %2909 = vmatpush1.msra.mxu0 0.0
      %2910 = vmatprep.subr.mxu0 0.0
      %2911 = vmatpush1.msra.mxu0 0.0
      %2912 = vmatprep.subr.mxu0 0.0
      %2913 = vmatpush1.msra.mxu0 0.0
      %2914 = vmatprep.subr.mxu0 0.0
      %2915 = vmatpush1.msra.mxu0 0.0
      %2916 = vmatprep.subr.mxu0 0.0
      %2917 = vmatpush1.msra.mxu0 0.0
      %2918 = vmatprep.subr.mxu0 0.0
      %2919 = vmatpush1.msra.mxu0 0.0
      %2920 = vmatprep.subr.mxu0 0.0
      %2921 = vmatpush1.msra.mxu0 0.0
      %2922 = vmatprep.subr.mxu0 0.0
      %2923 = vmatpush1.msra.mxu0 0.0
      %2924 = vmatprep.subr.mxu0 0.0
      %2925 = vmatpush1.msra.mxu0 0.0
      %2926 = vmatprep.subr.mxu0 0.0
      %2927 = vmatpush1.msra.mxu0 0.0
      %2928 = vmatprep.subr.mxu0 0.0
      %2929 = vmatpush1.msra.mxu0 0.0
      %2930 = vmatprep.subr.mxu0 0.0
      %2931 = vmatpush1.msra.mxu0 0.0
      %2932 = vmatprep.subr.mxu0 0.0
      %2933 = vmatpush1.msra.mxu0 0.0
      %2934 = vmatprep.subr.mxu0 0.0
      %2935 = vmatpush1.msra.mxu0 0.0
      %2936 = vmatprep.subr.mxu0 0.0
      %2937 = vmatpush1.msra.mxu0 0.0
      %2938 = vmatprep.subr.mxu0 0.0
      %2939 = vmatpush1.msra.mxu0 0.0
      %2940 = vmatprep.subr.mxu0 0.0
      %2941 = vmatpush1.msra.mxu0 0.0
      %2942 = vmatprep.subr.mxu0 0.0
      %2943 = vmatpush1.msra.mxu0 0.0
      %2944 = vmatprep.subr.mxu0 0.0
      %2945 = vmatpush1.msra.mxu0 0.0
      %2946 = vmatprep.subr.mxu0 0.0
      %2947 = vmatpush1.msra.mxu0 0.0
      %2948 = vmatprep.subr.mxu0 0.0
      %2949 = vmatpush1.msra.mxu0 0.0
      %2950 = vmatprep.subr.mxu0 0.0
      %2951 = vmatpush1.msra.mxu0 0.0
      %2952 = vmatprep.subr.mxu0 0.0
      %2953 = vmatpush1.msra.mxu0 0.0
      %2954 = vmatprep.subr.mxu0 0.0
      %2955 = vmatpush1.msra.mxu0 0.0
      %2956 = vmatprep.mubr.f32.mxu0 0.0
      %2957 = vmatmul.mubr.f32.gmra.mrb[0].mxu0 %v2819
      %v2958 = vpop.f32.mrb[0].mxu0
      %v2959 = vadd.f32 %v2815, %v2958
      %v2960 = vpop.f32.mrb[0].mxu0
      %2961 = vdwg.mxu0
      %v2962 = vld [vmem:[#allocation3] sm:$0x1]
      %2964 = vset.pattern.permute.xlu0 0
      %2965 = vperm.xlu0 %2964, %v2962
      %v2966 = vpop.permute.xlu0 %2965
      %v2968 = vlaneseq
      %v2969 = vshrl.u32 %v2968, 7
      %v2970 = vsub.s32 0, %v2969
      %v2971 = vrot.slane %v2966, %v2970
      %v2972 = vadd.f32 %v2888, %v2971
      %v2973 = vadd.f32 %v2890, %v2971
      %v2974 = vadd.f32 %v2959, %v2971
      %v2978 = vcombine.low %v2972, %v2973
      %v2980 = vunpack.c.l.s4 1966171168
      %v2981 = vunpack.c.0.s8 %v2980
      %v2982 = vlaneseq
      %v2983 = vshrl.u32 %v2982, 7
      %v2984 = vsub.s32 %v2981, %v2983
      %v2985 = vrot.slane %v2978, %v2984
      %v2987 = vunpack.c.l.s4 1966171168
      %v2988 = vunpack.c.0.s8 %v2987
      %v2989 = vlaneseq
      %v2990 = vshrl.u32 %v2989, 7
      %v2991 = vsub.s32 %v2988, %v2990
      %v2992 = vrot.slane %v2974, %v2991
      %v2993 = vcombine.low %v2985, %v2992
      %v2995 = vunpack.c.l.s4 1966171168
      %v2996 = vunpack.c.0.s8 %v2995
      %v2997 = vlaneseq
      %v2998 = vshrl.u32 %v2997, 7
      %v2999 = vsub.s32 %v2996, %v2998
      %v3000 = vrot.slane %v2993, %v2999
      %v3002 = vlaneseq
      %vm3003 = vcmp.ge.s32.totalorder %v3002, 0
      %vm3004 = vcmp.lt.s32.totalorder %v3002, 320
      %vm3005 = vmand %vm3003, %vm3004
      %3006 = vst.msk [vmem:[%s359] sm:$0x7] %vm3005, %v3000
      %p3007 = scmp.lt.s32.totalorder %s23, 1
      %s3008 = scalar_select %p3007, %s23, 1
      %s3009 = smul.addr %s3008, 3
      %s3010 = scalar_lea.vmem %s10, %s3009
      // Predicated region
      $region61: #{physics_attention_forward.1} parent=59 // pred_check
        %p3011 = pneg %p256
      $region62: #{physics_attention_forward.1} parent=59 // pred_check_branch
        %3013 = sbr.rel (%p3011) target = $region64
      $region63: #{physics_attention_forward.1} parent=59 // pred_region
        _
      $region64: #{physics_attention_forward.1} parent=59 // pred_fallthru
        _
    $region60: #{physics_attention_forward.1} parent=5 // pred_fallthru
      _
    %p3014 = scmp.le.s32.totalorder 2, %s18
    // Predicated region
    $region65: #{physics_attention_forward.1} parent=5 // pred_check
      %p3015 = pneg %p3014
    $region66: #{physics_attention_forward.1} parent=5 // pred_check_branch
      %3017 = sbr.rel (%p3015) target = $region68
    $region67: #{physics_attention_forward.1} parent=5 // pred_region
      %s3018 = ssub.s32 %s18, 2
      // Predicated region
      $region69: #{physics_attention_forward.1} parent=67 // pred_check
        %p3019 = pneg %p262
      $region70: #{physics_attention_forward.1} parent=67 // pred_check_branch
        %3021 = sbr.rel (%p3019) target = $region72
      $region71: #{physics_attention_forward.1} parent=67 // pred_region
        %p3022 = scmp.lt.s32.totalorder %s24, 1
        %s3023 = scalar_select %p3022, %s24, 1
        %s3024 = smul.addr %s3023, 3
        %s3025 = scalar_lea.vmem %s10, %s3024
      $region72: #{physics_attention_forward.1} parent=67 // pred_fallthru
        _
    $region68: #{physics_attention_forward.1} parent=5 // pred_fallthru
      _
  $region6: #{physics_attention_forward.1} parent=0 // loop_footer
    %s22 = sadd.s32 1, %s18
  $region7: #{physics_attention_forward.1} parent=0 // loop_footer_branch
    %17 = sbr.rel target = $region3
  $region8: #{physics_attention_forward.1} parent=0 // loop_exit
    _

</llo_original>
